<compile_context>
chip_gen: v7x
topology: tpu7x:2x2x1
jax: 0.10.0
libtpu: 0.0.40
codegen_flags: <defaults>
</compile_context>

<pallas_src>
import jax
import jax.numpy as jnp
from jax.experimental import pallas as pl
from jax.experimental.pallas import tpu as pltpu


def _attention_kernel(xkv_ref, xq_ref, wq_ref, wk_ref, wv_ref, wo_ref, bo_ref,
                      out_ref):
    # xkv_ref: (1, C, N)   full spatial extent (source of K / V), bf16
    # xq_ref : (1, C, TQ)  this query tile, bf16
    # wq/wk/wv_ref: (H, Dh, C) bf16  (scale already folded into wq)
    # wo_ref : (H, C, Dh)  bf16
    # bo_ref : (C, 1)      f32
    # out_ref: (1, C, TQ)  f32
    x_kv = xkv_ref[0]                      # (C, N)
    x_q = xq_ref[0]                        # (C, TQ)
    num_heads = wq_ref.shape[0]
    C, TQ = x_q.shape

    def head_body(h, acc):
        # 1x1-conv qkv projection == channel matmul (MXU, f32 accumulation).
        q = jnp.dot(wq_ref[h], x_q, preferred_element_type=jnp.float32)    # (Dh, TQ)
        k = jnp.dot(wk_ref[h], x_kv, preferred_element_type=jnp.float32)   # (Dh, N)
        v = jnp.dot(wv_ref[h], x_kv, preferred_element_type=jnp.float32)   # (Dh, N)

        # simT[j, i] = sum_d k[d, j] * q[d, i]  -> keys on sublanes, queries on lanes.
        simT = jax.lax.dot_general(
            k.astype(jnp.bfloat16), q.astype(jnp.bfloat16),
            (((0,), (0,)), ((), ())),
            preferred_element_type=jnp.float32)                            # (N, TQ)

        # Numerically stable softmax over keys (axis 0), kept in f32.
        simT = simT - jnp.max(simT, axis=0, keepdims=True)
        p = jnp.exp(simT)
        l = jnp.sum(p, axis=0, keepdims=True)                              # (1, TQ)
        inv_l = pl.reciprocal(l, approx=True)                              # EUP, ~free

        # Unnormalized attention output, then a single (Dh, TQ) rescale.
        o = jnp.dot(v.astype(jnp.bfloat16), p.astype(jnp.bfloat16),
                    preferred_element_type=jnp.float32)                    # (Dh, TQ)
        o = o * inv_l

        # Accumulate this head's output projection into the (C, TQ) result.
        return acc + jnp.dot(wo_ref[h], o.astype(jnp.bfloat16),
                             preferred_element_type=jnp.float32)

    acc0 = jnp.zeros((C, TQ), jnp.float32)
    y = jax.lax.fori_loop(0, num_heads, head_body, acc0, unroll=True)

    # One lane-dense full-tile store (last dim = TQ = multiple of 128 or full N).
    out_ref[0] = (y + bo_ref[...]).astype(out_ref.dtype)


def attention_forward(x, w_qkv, w_out, b_out, *, num_heads: int, head_dim: int):
    """Forward of the PyTorch Attention module.

    x     : (B, C, H, W) float32
    w_qkv : (3*hidden, C, 1, 1)  to_qkv conv weight (no bias)
    w_out : (C, hidden, 1, 1)    to_out conv weight
    b_out : (C,)                 to_out conv bias
    returns (B, C, H, W) float32
    """
    B, C, H, W = x.shape
    hidden = num_heads * head_dim
    N = H * W
    scale = float(head_dim) ** -0.5

    # ---- host-side layout plumbing: pure reshapes, NO transposes of x ----
    x_flat = x.reshape(B, C, N).astype(jnp.bfloat16)                 # (B, C, N)

    w = w_qkv.reshape(3 * hidden, C).astype(jnp.float32)
    wq = (w[:hidden] * scale).reshape(num_heads, head_dim, C).astype(jnp.bfloat16)
    wk = w[hidden:2 * hidden].reshape(num_heads, head_dim, C).astype(jnp.bfloat16)
    wv = w[2 * hidden:].reshape(num_heads, head_dim, C).astype(jnp.bfloat16)
    wo = (w_out.reshape(C, num_heads, head_dim)
               .transpose(1, 0, 2).astype(jnp.bfloat16))             # (H, C, Dh)
    bo = b_out.reshape(C, 1).astype(jnp.float32)

    # Query tiling: 128 queries per grid step when N allows (lane-dense and a
    # size that suits v5e/v6e/v7x MXUs); otherwise a single full-extent tile.
    TQ = 128 if (N % 128 == 0 and N > 128) else N
    n_q_tiles = N // TQ

    out_flat = pl.pallas_call(
        _attention_kernel,
        out_shape=jax.ShapeDtypeStruct((B, C, N), jnp.float32),
        grid=(B, n_q_tiles),
        in_specs=[
            pl.BlockSpec((1, C, N), lambda b, qi: (b, 0, 0)),        # x for K/V
            pl.BlockSpec((1, C, TQ), lambda b, qi: (b, 0, qi)),      # x query tile
            # Weights: constant index_maps -> VMEM-resident across the grid.
            pl.BlockSpec((num_heads, head_dim, C), lambda b, qi: (0, 0, 0)),
            pl.BlockSpec((num_heads, head_dim, C), lambda b, qi: (0, 0, 0)),
            pl.BlockSpec((num_heads, head_dim, C), lambda b, qi: (0, 0, 0)),
            pl.BlockSpec((num_heads, C, head_dim), lambda b, qi: (0, 0, 0)),
            pl.BlockSpec((C, 1), lambda b, qi: (0, 0)),
        ],
        out_specs=pl.BlockSpec((1, C, TQ), lambda b, qi: (b, 0, qi)),
        compiler_params=pltpu.CompilerParams(
            dimension_semantics=("parallel", "parallel")),           # batch x q-tiles
    )(x_flat, x_flat, wq, wk, wv, wo, bo)

    # Direct reshape back to NCHW -- no transpose needed (channels-first kept).
    return out_flat.reshape(B, C, H, W)


def _reference(x, w_qkv, w_out, b_out, *, num_heads, head_dim):
    """Pure-JAX reference matching the PyTorch module exactly (f32, HIGHEST)."""
    B, C, H, W = x.shape
    hidden = num_heads * head_dim
    N = H * W
    scale = float(head_dim) ** -0.5
    hi = jax.lax.Precision.HIGHEST

    qkv = jnp.einsum('bchw,oc->bohw', x, w_qkv.reshape(3 * hidden, C), precision=hi)
    q, k, v = jnp.split(qkv, 3, axis=1)

    def heads(t):  # 'b (h c) x y -> b h c (x y)'
        return t.reshape(B, num_heads, head_dim, N)

    q = heads(q) * scale
    k = heads(k)
    v = heads(v)
    sim = jnp.einsum('bhdi,bhdj->bhij', q, k, precision=hi)
    sim = sim - jnp.max(sim, axis=-1, keepdims=True)
    attn = jax.nn.softmax(sim, axis=-1)
    out = jnp.einsum('bhij,bhdj->bhid', attn, v, precision=hi)          # (B, h, N, d)
    out = out.transpose(0, 1, 3, 2).reshape(B, hidden, H, W)            # 'b h (xy) d -> b (h d) x y'
    y = jnp.einsum('bchw,oc->bohw', out, w_out.reshape(C, hidden), precision=hi)
    return y + b_out.reshape(1, C, 1, 1)


if __name__ == "__main__":
    key = jax.random.PRNGKey(0)
    kx, kqkv, kwo, kbo = jax.random.split(key, 4)

    B, C, H, W = 2, 4, 16, 16
    num_heads, head_dim = 4, 32
    hidden = num_heads * head_dim

    x = jax.random.normal(kx, (B, C, H, W), dtype=jnp.float32)
    w_qkv = jax.random.normal(kqkv, (3 * hidden, C, 1, 1), dtype=jnp.float32) * 0.1
    w_out = jax.random.normal(kwo, (C, hidden, 1, 1), dtype=jnp.float32) * 0.1
    b_out = jax.random.normal(kbo, (C,), dtype=jnp.float32) * 0.1

    out = attention_forward(x, w_qkv, w_out, b_out,
                            num_heads=num_heads, head_dim=head_dim)
    out = jax.block_until_ready(out)

    ref = _reference(x, w_qkv, w_out, b_out,
                     num_heads=num_heads, head_dim=head_dim)
    assert out.shape == (B, C, H, W)
    err = float(jnp.max(jnp.abs(out - ref)))
    # Tolerance accounts for bf16 MXU inputs (f32 accumulation), EUP exp and
    # approximate reciprocal vs the f32 HIGHEST-precision XLA reference.
    assert err < 2e-2, f"mismatch vs reference: max abs err {err}"
    print("KERNEL_OK")
</pallas_src>

<mosaic_0001>
module attributes {stable_mosaic.version = 11 : i64} {
  func.func @_attention_kernel(%arg0: i32, %arg1: i32, %arg2: memref<1x4x256xbf16, #tpu.memory_space<vmem>>, %arg3: memref<1x4x128xbf16, #tpu.memory_space<vmem>>, %arg4: memref<4x32x4xbf16, #tpu.memory_space<vmem>>, %arg5: memref<4x32x4xbf16, #tpu.memory_space<vmem>>, %arg6: memref<4x32x4xbf16, #tpu.memory_space<vmem>>, %arg7: memref<4x4x32xbf16, #tpu.memory_space<vmem>>, %arg8: memref<4x1xf32, #tpu.memory_space<vmem>>, %arg9: memref<1x4x128xf32, #tpu.memory_space<vmem>>) attributes {dimension_semantics = [#tpu.dimension_semantics<parallel>, #tpu.dimension_semantics<parallel>], iteration_bounds = array<i64: 2, 2>, scalar_prefetch = 0 : i64, scratch_operands = 0 : i64, tpu.core_type = #tpu.core_type<tc>, window_params = [{transform_indices = @transform_0, window_bounds = array<i64: 1, 4, 256>}, {transform_indices = @transform_1, window_bounds = array<i64: 1, 4, 128>}, {pipeline_mode = #tpu.pipeline_mode<synchronous>, transform_indices = @transform_2, window_bounds = array<i64: 4, 32, 4>}, {pipeline_mode = #tpu.pipeline_mode<synchronous>, transform_indices = @transform_3, window_bounds = array<i64: 4, 32, 4>}, {pipeline_mode = #tpu.pipeline_mode<synchronous>, transform_indices = @transform_4, window_bounds = array<i64: 4, 32, 4>}, {pipeline_mode = #tpu.pipeline_mode<synchronous>, transform_indices = @transform_5, window_bounds = array<i64: 4, 4, 32>}, {pipeline_mode = #tpu.pipeline_mode<synchronous>, transform_indices = @transform_6, window_bounds = array<i64: 4, 1>}, {transform_indices = @transform_7, window_bounds = array<i64: 1, 4, 128>}]} {
    %c0 = arith.constant 0 : index
    %c0_0 = arith.constant 0 : index
    %c0_1 = arith.constant 0 : index
    %0 = vector.load %arg2[%c0, %c0_0, %c0_1] : memref<1x4x256xbf16, #tpu.memory_space<vmem>>, vector<1x4x256xbf16>
    %1 = vector.shape_cast %0 : vector<1x4x256xbf16> to vector<4x256xbf16>
    %c0_2 = arith.constant 0 : index
    %c0_3 = arith.constant 0 : index
    %c0_4 = arith.constant 0 : index
    %2 = vector.load %arg3[%c0_2, %c0_3, %c0_4] : memref<1x4x128xbf16, #tpu.memory_space<vmem>>, vector<1x4x128xbf16>
    %3 = vector.shape_cast %2 : vector<1x4x128xbf16> to vector<4x128xbf16>
    %cst = arith.constant 0.000000e+00 : f32
    %4 = vector.broadcast %cst : f32 to vector<4x128xf32>
    %c0_i32 = arith.constant 0 : i32
    %5 = arith.index_cast %c0_i32 : i32 to index
    %c0_5 = arith.constant 0 : index
    %c0_6 = arith.constant 0 : index
    %6 = vector.load %arg4[%5, %c0_5, %c0_6] : memref<4x32x4xbf16, #tpu.memory_space<vmem>>, vector<1x32x4xbf16>
    %7 = vector.shape_cast %6 : vector<1x32x4xbf16> to vector<32x4xbf16>
    %cst_7 = arith.constant dense<0.000000e+00> : vector<32x128xf32>
    %8 = tpu.matmul %7, %3, %cst_7 {dimension_numbers = #tpu.dot_dimension_numbers<[1], [0], [0], [1], [0, 0, 1, 1], [], []>} : vector<32x4xbf16>, vector<4x128xbf16>, vector<32x128xf32> -> vector<32x128xf32>
    %9 = arith.index_cast %c0_i32 : i32 to index
    %c0_8 = arith.constant 0 : index
    %c0_9 = arith.constant 0 : index
    %10 = vector.load %arg5[%9, %c0_8, %c0_9] : memref<4x32x4xbf16, #tpu.memory_space<vmem>>, vector<1x32x4xbf16>
    %11 = vector.shape_cast %10 : vector<1x32x4xbf16> to vector<32x4xbf16>
    %cst_10 = arith.constant dense<0.000000e+00> : vector<32x256xf32>
    %12 = tpu.matmul %11, %1, %cst_10 {dimension_numbers = #tpu.dot_dimension_numbers<[1], [0], [0], [1], [0, 0, 1, 1], [], []>} : vector<32x4xbf16>, vector<4x256xbf16>, vector<32x256xf32> -> vector<32x256xf32>
    %13 = arith.index_cast %c0_i32 : i32 to index
    %c0_11 = arith.constant 0 : index
    %c0_12 = arith.constant 0 : index
    %14 = vector.load %arg6[%13, %c0_11, %c0_12] : memref<4x32x4xbf16, #tpu.memory_space<vmem>>, vector<1x32x4xbf16>
    %15 = vector.shape_cast %14 : vector<1x32x4xbf16> to vector<32x4xbf16>
    %cst_13 = arith.constant dense<0.000000e+00> : vector<32x256xf32>
    %16 = tpu.matmul %15, %1, %cst_13 {dimension_numbers = #tpu.dot_dimension_numbers<[1], [0], [0], [1], [0, 0, 1, 1], [], []>} : vector<32x4xbf16>, vector<4x256xbf16>, vector<32x256xf32> -> vector<32x256xf32>
    %17 = arith.truncf %12 : vector<32x256xf32> to vector<32x256xbf16>
    %18 = arith.truncf %8 : vector<32x128xf32> to vector<32x128xbf16>
    %cst_14 = arith.constant dense<0.000000e+00> : vector<256x128xf32>
    %19 = tpu.matmul %17, %18, %cst_14 {dimension_numbers = #tpu.dot_dimension_numbers<[0], [0], [1], [1], [0, 1, 1, 1], [], []>} : vector<32x256xbf16>, vector<32x128xbf16>, vector<256x128xf32> -> vector<256x128xf32>
    %cst_15 = arith.constant dense<0xFF800000> : vector<128xf32>
    %20 = vector.multi_reduction <maximumf>, %19, %cst_15 [0] : vector<256x128xf32> to vector<128xf32>
    %21 = vector.shape_cast %20 : vector<128xf32> to vector<1x128xf32>
    %22 = vector.broadcast %21 : vector<1x128xf32> to vector<256x128xf32>
    %23 = arith.subf %19, %22 : vector<256x128xf32>
    %24 = math.exp %23 : vector<256x128xf32>
    %cst_16 = arith.constant dense<0.000000e+00> : vector<128xf32>
    %25 = vector.multi_reduction <add>, %24, %cst_16 [0] : vector<256x128xf32> to vector<128xf32>
    %26 = vector.shape_cast %25 : vector<128xf32> to vector<1x128xf32>
    %27 = tpu.reciprocal %26 {approx = true} : vector<1x128xf32> -> vector<1x128xf32>
    %28 = arith.truncf %16 : vector<32x256xf32> to vector<32x256xbf16>
    %29 = arith.truncf %24 : vector<256x128xf32> to vector<256x128xbf16>
    %cst_17 = arith.constant dense<0.000000e+00> : vector<32x128xf32>
    %30 = tpu.matmul %28, %29, %cst_17 {dimension_numbers = #tpu.dot_dimension_numbers<[1], [0], [0], [1], [0, 0, 1, 1], [], []>} : vector<32x256xbf16>, vector<256x128xbf16>, vector<32x128xf32> -> vector<32x128xf32>
    %31 = vector.broadcast %27 : vector<1x128xf32> to vector<32x128xf32>
    %32 = arith.mulf %30, %31 : vector<32x128xf32>
    %33 = arith.index_cast %c0_i32 : i32 to index
    %c0_18 = arith.constant 0 : index
    %c0_19 = arith.constant 0 : index
    %34 = vector.load %arg7[%33, %c0_18, %c0_19] : memref<4x4x32xbf16, #tpu.memory_space<vmem>>, vector<1x4x32xbf16>
    %35 = vector.shape_cast %34 : vector<1x4x32xbf16> to vector<4x32xbf16>
    %36 = arith.truncf %32 : vector<32x128xf32> to vector<32x128xbf16>
    %cst_20 = arith.constant dense<0.000000e+00> : vector<4x128xf32>
    %37 = tpu.matmul %35, %36, %cst_20 {dimension_numbers = #tpu.dot_dimension_numbers<[1], [0], [0], [1], [0, 0, 1, 1], [], []>} : vector<4x32xbf16>, vector<32x128xbf16>, vector<4x128xf32> -> vector<4x128xf32>
    %38 = arith.addf %4, %37 : vector<4x128xf32>
    %c1_i32 = arith.constant 1 : i32
    %39 = arith.index_cast %c1_i32 : i32 to index
    %c0_21 = arith.constant 0 : index
    %c0_22 = arith.constant 0 : index
    %40 = vector.load %arg4[%39, %c0_21, %c0_22] : memref<4x32x4xbf16, #tpu.memory_space<vmem>>, vector<1x32x4xbf16>
    %41 = vector.shape_cast %40 : vector<1x32x4xbf16> to vector<32x4xbf16>
    %cst_23 = arith.constant dense<0.000000e+00> : vector<32x128xf32>
    %42 = tpu.matmul %41, %3, %cst_23 {dimension_numbers = #tpu.dot_dimension_numbers<[1], [0], [0], [1], [0, 0, 1, 1], [], []>} : vector<32x4xbf16>, vector<4x128xbf16>, vector<32x128xf32> -> vector<32x128xf32>
    %43 = arith.index_cast %c1_i32 : i32 to index
    %c0_24 = arith.constant 0 : index
    %c0_25 = arith.constant 0 : index
    %44 = vector.load %arg5[%43, %c0_24, %c0_25] : memref<4x32x4xbf16, #tpu.memory_space<vmem>>, vector<1x32x4xbf16>
    %45 = vector.shape_cast %44 : vector<1x32x4xbf16> to vector<32x4xbf16>
    %cst_26 = arith.constant dense<0.000000e+00> : vector<32x256xf32>
    %46 = tpu.matmul %45, %1, %cst_26 {dimension_numbers = #tpu.dot_dimension_numbers<[1], [0], [0], [1], [0, 0, 1, 1], [], []>} : vector<32x4xbf16>, vector<4x256xbf16>, vector<32x256xf32> -> vector<32x256xf32>
    %47 = arith.index_cast %c1_i32 : i32 to index
    %c0_27 = arith.constant 0 : index
    %c0_28 = arith.constant 0 : index
    %48 = vector.load %arg6[%47, %c0_27, %c0_28] : memref<4x32x4xbf16, #tpu.memory_space<vmem>>, vector<1x32x4xbf16>
    %49 = vector.shape_cast %48 : vector<1x32x4xbf16> to vector<32x4xbf16>
    %cst_29 = arith.constant dense<0.000000e+00> : vector<32x256xf32>
    %50 = tpu.matmul %49, %1, %cst_29 {dimension_numbers = #tpu.dot_dimension_numbers<[1], [0], [0], [1], [0, 0, 1, 1], [], []>} : vector<32x4xbf16>, vector<4x256xbf16>, vector<32x256xf32> -> vector<32x256xf32>
    %51 = arith.truncf %46 : vector<32x256xf32> to vector<32x256xbf16>
    %52 = arith.truncf %42 : vector<32x128xf32> to vector<32x128xbf16>
    %cst_30 = arith.constant dense<0.000000e+00> : vector<256x128xf32>
    %53 = tpu.matmul %51, %52, %cst_30 {dimension_numbers = #tpu.dot_dimension_numbers<[0], [0], [1], [1], [0, 1, 1, 1], [], []>} : vector<32x256xbf16>, vector<32x128xbf16>, vector<256x128xf32> -> vector<256x128xf32>
    %cst_31 = arith.constant dense<0xFF800000> : vector<128xf32>
    %54 = vector.multi_reduction <maximumf>, %53, %cst_31 [0] : vector<256x128xf32> to vector<128xf32>
    %55 = vector.shape_cast %54 : vector<128xf32> to vector<1x128xf32>
    %56 = vector.broadcast %55 : vector<1x128xf32> to vector<256x128xf32>
    %57 = arith.subf %53, %56 : vector<256x128xf32>
    %58 = math.exp %57 : vector<256x128xf32>
    %cst_32 = arith.constant dense<0.000000e+00> : vector<128xf32>
    %59 = vector.multi_reduction <add>, %58, %cst_32 [0] : vector<256x128xf32> to vector<128xf32>
    %60 = vector.shape_cast %59 : vector<128xf32> to vector<1x128xf32>
    %61 = tpu.reciprocal %60 {approx = true} : vector<1x128xf32> -> vector<1x128xf32>
    %62 = arith.truncf %50 : vector<32x256xf32> to vector<32x256xbf16>
    %63 = arith.truncf %58 : vector<256x128xf32> to vector<256x128xbf16>
    %cst_33 = arith.constant dense<0.000000e+00> : vector<32x128xf32>
    %64 = tpu.matmul %62, %63, %cst_33 {dimension_numbers = #tpu.dot_dimension_numbers<[1], [0], [0], [1], [0, 0, 1, 1], [], []>} : vector<32x256xbf16>, vector<256x128xbf16>, vector<32x128xf32> -> vector<32x128xf32>
    %65 = vector.broadcast %61 : vector<1x128xf32> to vector<32x128xf32>
    %66 = arith.mulf %64, %65 : vector<32x128xf32>
    %67 = arith.index_cast %c1_i32 : i32 to index
    %c0_34 = arith.constant 0 : index
    %c0_35 = arith.constant 0 : index
    %68 = vector.load %arg7[%67, %c0_34, %c0_35] : memref<4x4x32xbf16, #tpu.memory_space<vmem>>, vector<1x4x32xbf16>
    %69 = vector.shape_cast %68 : vector<1x4x32xbf16> to vector<4x32xbf16>
    %70 = arith.truncf %66 : vector<32x128xf32> to vector<32x128xbf16>
    %cst_36 = arith.constant dense<0.000000e+00> : vector<4x128xf32>
    %71 = tpu.matmul %69, %70, %cst_36 {dimension_numbers = #tpu.dot_dimension_numbers<[1], [0], [0], [1], [0, 0, 1, 1], [], []>} : vector<4x32xbf16>, vector<32x128xbf16>, vector<4x128xf32> -> vector<4x128xf32>
    %72 = arith.addf %38, %71 : vector<4x128xf32>
    %c2_i32 = arith.constant 2 : i32
    %73 = arith.index_cast %c2_i32 : i32 to index
    %c0_37 = arith.constant 0 : index
    %c0_38 = arith.constant 0 : index
    %74 = vector.load %arg4[%73, %c0_37, %c0_38] : memref<4x32x4xbf16, #tpu.memory_space<vmem>>, vector<1x32x4xbf16>
    %75 = vector.shape_cast %74 : vector<1x32x4xbf16> to vector<32x4xbf16>
    %cst_39 = arith.constant dense<0.000000e+00> : vector<32x128xf32>
    %76 = tpu.matmul %75, %3, %cst_39 {dimension_numbers = #tpu.dot_dimension_numbers<[1], [0], [0], [1], [0, 0, 1, 1], [], []>} : vector<32x4xbf16>, vector<4x128xbf16>, vector<32x128xf32> -> vector<32x128xf32>
    %77 = arith.index_cast %c2_i32 : i32 to index
    %c0_40 = arith.constant 0 : index
    %c0_41 = arith.constant 0 : index
    %78 = vector.load %arg5[%77, %c0_40, %c0_41] : memref<4x32x4xbf16, #tpu.memory_space<vmem>>, vector<1x32x4xbf16>
    %79 = vector.shape_cast %78 : vector<1x32x4xbf16> to vector<32x4xbf16>
    %cst_42 = arith.constant dense<0.000000e+00> : vector<32x256xf32>
    %80 = tpu.matmul %79, %1, %cst_42 {dimension_numbers = #tpu.dot_dimension_numbers<[1], [0], [0], [1], [0, 0, 1, 1], [], []>} : vector<32x4xbf16>, vector<4x256xbf16>, vector<32x256xf32> -> vector<32x256xf32>
    %81 = arith.index_cast %c2_i32 : i32 to index
    %c0_43 = arith.constant 0 : index
    %c0_44 = arith.constant 0 : index
    %82 = vector.load %arg6[%81, %c0_43, %c0_44] : memref<4x32x4xbf16, #tpu.memory_space<vmem>>, vector<1x32x4xbf16>
    %83 = vector.shape_cast %82 : vector<1x32x4xbf16> to vector<32x4xbf16>
    %cst_45 = arith.constant dense<0.000000e+00> : vector<32x256xf32>
    %84 = tpu.matmul %83, %1, %cst_45 {dimension_numbers = #tpu.dot_dimension_numbers<[1], [0], [0], [1], [0, 0, 1, 1], [], []>} : vector<32x4xbf16>, vector<4x256xbf16>, vector<32x256xf32> -> vector<32x256xf32>
    %85 = arith.truncf %80 : vector<32x256xf32> to vector<32x256xbf16>
    %86 = arith.truncf %76 : vector<32x128xf32> to vector<32x128xbf16>
    %cst_46 = arith.constant dense<0.000000e+00> : vector<256x128xf32>
    %87 = tpu.matmul %85, %86, %cst_46 {dimension_numbers = #tpu.dot_dimension_numbers<[0], [0], [1], [1], [0, 1, 1, 1], [], []>} : vector<32x256xbf16>, vector<32x128xbf16>, vector<256x128xf32> -> vector<256x128xf32>
    %cst_47 = arith.constant dense<0xFF800000> : vector<128xf32>
    %88 = vector.multi_reduction <maximumf>, %87, %cst_47 [0] : vector<256x128xf32> to vector<128xf32>
    %89 = vector.shape_cast %88 : vector<128xf32> to vector<1x128xf32>
    %90 = vector.broadcast %89 : vector<1x128xf32> to vector<256x128xf32>
    %91 = arith.subf %87, %90 : vector<256x128xf32>
    %92 = math.exp %91 : vector<256x128xf32>
    %cst_48 = arith.constant dense<0.000000e+00> : vector<128xf32>
    %93 = vector.multi_reduction <add>, %92, %cst_48 [0] : vector<256x128xf32> to vector<128xf32>
    %94 = vector.shape_cast %93 : vector<128xf32> to vector<1x128xf32>
    %95 = tpu.reciprocal %94 {approx = true} : vector<1x128xf32> -> vector<1x128xf32>
    %96 = arith.truncf %84 : vector<32x256xf32> to vector<32x256xbf16>
    %97 = arith.truncf %92 : vector<256x128xf32> to vector<256x128xbf16>
    %cst_49 = arith.constant dense<0.000000e+00> : vector<32x128xf32>
    %98 = tpu.matmul %96, %97, %cst_49 {dimension_numbers = #tpu.dot_dimension_numbers<[1], [0], [0], [1], [0, 0, 1, 1], [], []>} : vector<32x256xbf16>, vector<256x128xbf16>, vector<32x128xf32> -> vector<32x128xf32>
    %99 = vector.broadcast %95 : vector<1x128xf32> to vector<32x128xf32>
    %100 = arith.mulf %98, %99 : vector<32x128xf32>
    %101 = arith.index_cast %c2_i32 : i32 to index
    %c0_50 = arith.constant 0 : index
    %c0_51 = arith.constant 0 : index
    %102 = vector.load %arg7[%101, %c0_50, %c0_51] : memref<4x4x32xbf16, #tpu.memory_space<vmem>>, vector<1x4x32xbf16>
    %103 = vector.shape_cast %102 : vector<1x4x32xbf16> to vector<4x32xbf16>
    %104 = arith.truncf %100 : vector<32x128xf32> to vector<32x128xbf16>
    %cst_52 = arith.constant dense<0.000000e+00> : vector<4x128xf32>
    %105 = tpu.matmul %103, %104, %cst_52 {dimension_numbers = #tpu.dot_dimension_numbers<[1], [0], [0], [1], [0, 0, 1, 1], [], []>} : vector<4x32xbf16>, vector<32x128xbf16>, vector<4x128xf32> -> vector<4x128xf32>
    %106 = arith.addf %72, %105 : vector<4x128xf32>
    %c3_i32 = arith.constant 3 : i32
    %107 = arith.index_cast %c3_i32 : i32 to index
    %c0_53 = arith.constant 0 : index
    %c0_54 = arith.constant 0 : index
    %108 = vector.load %arg4[%107, %c0_53, %c0_54] : memref<4x32x4xbf16, #tpu.memory_space<vmem>>, vector<1x32x4xbf16>
    %109 = vector.shape_cast %108 : vector<1x32x4xbf16> to vector<32x4xbf16>
    %cst_55 = arith.constant dense<0.000000e+00> : vector<32x128xf32>
    %110 = tpu.matmul %109, %3, %cst_55 {dimension_numbers = #tpu.dot_dimension_numbers<[1], [0], [0], [1], [0, 0, 1, 1], [], []>} : vector<32x4xbf16>, vector<4x128xbf16>, vector<32x128xf32> -> vector<32x128xf32>
    %111 = arith.index_cast %c3_i32 : i32 to index
    %c0_56 = arith.constant 0 : index
    %c0_57 = arith.constant 0 : index
    %112 = vector.load %arg5[%111, %c0_56, %c0_57] : memref<4x32x4xbf16, #tpu.memory_space<vmem>>, vector<1x32x4xbf16>
    %113 = vector.shape_cast %112 : vector<1x32x4xbf16> to vector<32x4xbf16>
    %cst_58 = arith.constant dense<0.000000e+00> : vector<32x256xf32>
    %114 = tpu.matmul %113, %1, %cst_58 {dimension_numbers = #tpu.dot_dimension_numbers<[1], [0], [0], [1], [0, 0, 1, 1], [], []>} : vector<32x4xbf16>, vector<4x256xbf16>, vector<32x256xf32> -> vector<32x256xf32>
    %115 = arith.index_cast %c3_i32 : i32 to index
    %c0_59 = arith.constant 0 : index
    %c0_60 = arith.constant 0 : index
    %116 = vector.load %arg6[%115, %c0_59, %c0_60] : memref<4x32x4xbf16, #tpu.memory_space<vmem>>, vector<1x32x4xbf16>
    %117 = vector.shape_cast %116 : vector<1x32x4xbf16> to vector<32x4xbf16>
    %cst_61 = arith.constant dense<0.000000e+00> : vector<32x256xf32>
    %118 = tpu.matmul %117, %1, %cst_61 {dimension_numbers = #tpu.dot_dimension_numbers<[1], [0], [0], [1], [0, 0, 1, 1], [], []>} : vector<32x4xbf16>, vector<4x256xbf16>, vector<32x256xf32> -> vector<32x256xf32>
    %119 = arith.truncf %114 : vector<32x256xf32> to vector<32x256xbf16>
    %120 = arith.truncf %110 : vector<32x128xf32> to vector<32x128xbf16>
    %cst_62 = arith.constant dense<0.000000e+00> : vector<256x128xf32>
    %121 = tpu.matmul %119, %120, %cst_62 {dimension_numbers = #tpu.dot_dimension_numbers<[0], [0], [1], [1], [0, 1, 1, 1], [], []>} : vector<32x256xbf16>, vector<32x128xbf16>, vector<256x128xf32> -> vector<256x128xf32>
    %cst_63 = arith.constant dense<0xFF800000> : vector<128xf32>
    %122 = vector.multi_reduction <maximumf>, %121, %cst_63 [0] : vector<256x128xf32> to vector<128xf32>
    %123 = vector.shape_cast %122 : vector<128xf32> to vector<1x128xf32>
    %124 = vector.broadcast %123 : vector<1x128xf32> to vector<256x128xf32>
    %125 = arith.subf %121, %124 : vector<256x128xf32>
    %126 = math.exp %125 : vector<256x128xf32>
    %cst_64 = arith.constant dense<0.000000e+00> : vector<128xf32>
    %127 = vector.multi_reduction <add>, %126, %cst_64 [0] : vector<256x128xf32> to vector<128xf32>
    %128 = vector.shape_cast %127 : vector<128xf32> to vector<1x128xf32>
    %129 = tpu.reciprocal %128 {approx = true} : vector<1x128xf32> -> vector<1x128xf32>
    %130 = arith.truncf %118 : vector<32x256xf32> to vector<32x256xbf16>
    %131 = arith.truncf %126 : vector<256x128xf32> to vector<256x128xbf16>
    %cst_65 = arith.constant dense<0.000000e+00> : vector<32x128xf32>
    %132 = tpu.matmul %130, %131, %cst_65 {dimension_numbers = #tpu.dot_dimension_numbers<[1], [0], [0], [1], [0, 0, 1, 1], [], []>} : vector<32x256xbf16>, vector<256x128xbf16>, vector<32x128xf32> -> vector<32x128xf32>
    %133 = vector.broadcast %129 : vector<1x128xf32> to vector<32x128xf32>
    %134 = arith.mulf %132, %133 : vector<32x128xf32>
    %135 = arith.index_cast %c3_i32 : i32 to index
    %c0_66 = arith.constant 0 : index
    %c0_67 = arith.constant 0 : index
    %136 = vector.load %arg7[%135, %c0_66, %c0_67] : memref<4x4x32xbf16, #tpu.memory_space<vmem>>, vector<1x4x32xbf16>
    %137 = vector.shape_cast %136 : vector<1x4x32xbf16> to vector<4x32xbf16>
    %138 = arith.truncf %134 : vector<32x128xf32> to vector<32x128xbf16>
    %cst_68 = arith.constant dense<0.000000e+00> : vector<4x128xf32>
    %139 = tpu.matmul %137, %138, %cst_68 {dimension_numbers = #tpu.dot_dimension_numbers<[1], [0], [0], [1], [0, 0, 1, 1], [], []>} : vector<4x32xbf16>, vector<32x128xbf16>, vector<4x128xf32> -> vector<4x128xf32>
    %140 = arith.addf %106, %139 : vector<4x128xf32>
    %c4_i32 = arith.constant 4 : i32
    %c0_69 = arith.constant 0 : index
    %c0_70 = arith.constant 0 : index
    %141 = vector.load %arg8[%c0_69, %c0_70] : memref<4x1xf32, #tpu.memory_space<vmem>>, vector<4x1xf32>
    %142 = vector.broadcast %141 : vector<4x1xf32> to vector<4x128xf32>
    %143 = arith.addf %140, %142 : vector<4x128xf32>
    %c0_71 = arith.constant 0 : index
    %c0_72 = arith.constant 0 : index
    %c0_73 = arith.constant 0 : index
    %144 = vector.load %arg9[%c0_71, %c0_72, %c0_73] : memref<1x4x128xf32, #tpu.memory_space<vmem>>, vector<1x4x128xf32>
    %145 = vector.shape_cast %144 : vector<1x4x128xf32> to vector<4x128xf32>
    %146 = vector.shape_cast %143 : vector<4x128xf32> to vector<1x4x128xf32>
    tpu.vector_store %arg9[%c0_71, %c0_72, %c0_73], %146 {strides = array<i32>} : memref<1x4x128xf32, #tpu.memory_space<vmem>>, vector<1x4x128xf32>,
    return
  }
  func.func @transform_0(%arg0: i32, %arg1: i32) -> (i32, i32, i32) {
    %c0_i32 = arith.constant 0 : i32
    %c0_i32_0 = arith.constant 0 : i32
    %c0_i32_1 = arith.constant 0 : i32
    return %arg0, %c0_i32, %c0_i32_0 : i32, i32, i32
  }
  func.func @transform_1(%arg0: i32, %arg1: i32) -> (i32, i32, i32) {
    %c0_i32 = arith.constant 0 : i32
    %c0_i32_0 = arith.constant 0 : i32
    return %arg0, %c0_i32, %arg1 : i32, i32, i32
  }
  func.func @transform_2(%arg0: i32, %arg1: i32) -> (i32, i32, i32) {
    %c0_i32 = arith.constant 0 : i32
    %c0_i32_0 = arith.constant 0 : i32
    %c0_i32_1 = arith.constant 0 : i32
    %c0_i32_2 = arith.constant 0 : i32
    return %c0_i32, %c0_i32_0, %c0_i32_1 : i32, i32, i32
  }
  func.func @transform_3(%arg0: i32, %arg1: i32) -> (i32, i32, i32) {
    %c0_i32 = arith.constant 0 : i32
    %c0_i32_0 = arith.constant 0 : i32
    %c0_i32_1 = arith.constant 0 : i32
    %c0_i32_2 = arith.constant 0 : i32
    return %c0_i32, %c0_i32_0, %c0_i32_1 : i32, i32, i32
  }
  func.func @transform_4(%arg0: i32, %arg1: i32) -> (i32, i32, i32) {
    %c0_i32 = arith.constant 0 : i32
    %c0_i32_0 = arith.constant 0 : i32
    %c0_i32_1 = arith.constant 0 : i32
    %c0_i32_2 = arith.constant 0 : i32
    return %c0_i32, %c0_i32_0, %c0_i32_1 : i32, i32, i32
  }
  func.func @transform_5(%arg0: i32, %arg1: i32) -> (i32, i32, i32) {
    %c0_i32 = arith.constant 0 : i32
    %c0_i32_0 = arith.constant 0 : i32
    %c0_i32_1 = arith.constant 0 : i32
    %c0_i32_2 = arith.constant 0 : i32
    return %c0_i32, %c0_i32_0, %c0_i32_1 : i32, i32, i32
  }
  func.func @transform_6(%arg0: i32, %arg1: i32) -> (i32, i32) {
    %c0_i32 = arith.constant 0 : i32
    %c0_i32_0 = arith.constant 0 : i32
    %c0_i32_1 = arith.constant 0 : i32
    return %c0_i32, %c0_i32_0 : i32, i32
  }
  func.func @transform_7(%arg0: i32, %arg1: i32) -> (i32, i32, i32) {
    %c0_i32 = arith.constant 0 : i32
    %c0_i32_0 = arith.constant 0 : i32
    return %arg0, %c0_i32, %arg1 : i32, i32, i32
  }
}

</mosaic_0001>

<llo_original>
// kernel: tpu_custom_call.1
$region0: #{tpu_custom_call.1}
  #allocation0 [shape = 'u32[]', space=smem, size = 0x4, offset = 0x4, fixed_abs, tag = 'smem constant byte address 0x4 - core index']
  #allocation1 [shape = 'u32[144,128]{1,0:T(1,128)}', space=vmem, size = 0x12000, scoped, tag = 'internal scratch']
  %s0 = inlined_call_operand.vmem [shape: bf16[2,4,256], index: 0, kind: input, shape index: {}]
  %s1 = inlined_call_operand.vmem [shape: bf16[2,4,256], index: 1, kind: input, shape index: {}]
  %s2 = inlined_call_operand.vmem [shape: bf16[4,32,4], index: 2, kind: input, shape index: {}]
  %s3 = inlined_call_operand.vmem [shape: bf16[4,32,4], index: 3, kind: input, shape index: {}]
  %s4 = inlined_call_operand.vmem [shape: bf16[4,32,4], index: 4, kind: input, shape index: {}]
  %s5 = inlined_call_operand.vmem [shape: bf16[4,4,32], index: 5, kind: input, shape index: {}]
  %s6 = inlined_call_operand.vmem [shape: f32[4,1], index: 6, kind: input, shape index: {}]
  %s7 = inlined_call_operand.hbm [shape: f32[2,4,256], index: 7, kind: output, shape index: {}]
  %s8 = sld [smem:[#allocation0]]
  $region61: #{tpu_custom_call.1} parent=0
    _
  %s10 = ssub.s32 1, %s8
  %s11 = scalar_select 0, %s10, %s8
  $region1: #{tpu_custom_call.1} parent=0
    #allocation2 [shape = 'u8[4096]{0}', space=vmem, size = 0x1000, scoped, tag = 'output window, operand 0']
    #allocation3 [shape = 's32[2]{0}', space=sflag, size = 0x8, scoped, tag = 'scoped memory for tpu_custom_call.1']
    %12 = vsyncpa [#allocation3], 0
    %s13 = scalar_lea.sflag [#allocation3], 1
    %14 = vsyncpa %s13, 0
    loop: start=0, step=1, limit=6
    $region2: #{tpu_custom_call.1} parent=1 // loop_pre_header
      _
    $region3: #{tpu_custom_call.1} parent=1 // loop_header
      %s16 = sphi 0, %s20
      %p17 = scmp.ge.s32.totalorder %s16, 6
      %s23 = sphi 0, %s35
      %s24 = sphi 0, %s31
      %s25 = sphi 0, %s23
      %s26 = sphi 0, %s24
      %s27 = sphi 0, %s25
      %s28 = sphi 0, %s26
      %s38 = sphi 0, %s40
      %s41 = sphi 0, %s38
      %s42 = sphi 0, %s41
      %s58 = sphi 0, %s42
      %s66 = sphi 0, %s68
      %s69 = sphi 0, %s66
      %s70 = sphi 0, %s69
      %s86 = sphi 0, %s70
      %s90 = sphi 0, %s90
      %s92 = sphi 0, %s90
      %s93 = sphi 0, %s92
      %s107 = sphi 0, %s93
      %s111 = sphi 0, %s111
      %s113 = sphi 0, %s111
      %s114 = sphi 0, %s113
      %s128 = sphi 0, %s114
      %s132 = sphi 0, %s132
      %s134 = sphi 0, %s132
      %s135 = sphi 0, %s134
      %s149 = sphi 0, %s135
      %s153 = sphi 0, %s153
      %s155 = sphi 0, %s153
      %s156 = sphi 0, %s155
      %s170 = sphi 0, %s156
      %s174 = sphi 0, %s174
      %s176 = sphi 0, %s174
      %s177 = sphi 0, %s176
      %s191 = sphi 0, %s177
      %s199 = sphi 0, %s201
      %s202 = sphi 0, %s199
      %s203 = sphi 0, %s202
      %s219 = sphi 0, %s203
    $region4: #{tpu_custom_call.1} parent=1 // loop_header_branch
      %19 = sbr.rel (%p17) target = $region8
    $region5: #{tpu_custom_call.1} parent=1 // loop_body
      %s21 = ssub.s32 %s16, 1
      %s22 = ssub.s32 %s16, 2
      %s29 = sadd.s32 1, %s24
      %p30 = scmp.ge.s32.totalorder %s29, 2
      %s31 = scalar_select %p30, 0, %s29
      %s32 = sadd.s32 1, %s23
      %s33 = scalar_select %p30, %s32, %s23
      %p34 = scmp.ge.s32.totalorder %s33, 2
      %s35 = scalar_select %p34, 0, %s33
      %s36 = ssub.s32 %s23, %s35
      %p37 = scmp.eq.s32.totalorder %s36, 0
      %s39 = sadd.s32 %s38, 1
      %s40 = scalar_select %p37, %s38, %s39
      %p43 = pneg %p37
      %p44 = scmp.eq.s32.totalorder %s16, 3
      %p45 = por %p43, %p44
      %p46 = scmp.ne.s32.totalorder %s38, %s41
      %p47 = scmp.eq.s32.totalorder %s16, 0
      %p48 = por %p46, %p47
      %p49 = scmp.ne.s32.totalorder %s38, %s41
      %p50 = scmp.eq.s32.totalorder %s21, 3
      %p51 = por %p49, %p50
      %p52 = scmp.ne.s32.totalorder %s41, %s42
      %p53 = scmp.eq.s32.totalorder %s21, 0
      %p54 = por %p52, %p53
      %p55 = scmp.ne.s32.totalorder %s41, %s42
      %p56 = scmp.eq.s32.totalorder %s22, 3
      %p57 = por %p55, %p56
      %p59 = scmp.ne.s32.totalorder %s42, %s58
      %p60 = scmp.eq.s32.totalorder %s22, 0
      %p61 = por %p59, %p60
      %s62 = ssub.s32 %s23, %s35
      %s63 = ssub.s32 %s24, %s31
      %s64 = sor.u32 %s62, %s63
      %p65 = scmp.eq.s32.totalorder %s64, 0
      %s67 = sadd.s32 %s66, 1
      %s68 = scalar_select %p65, %s66, %s67
      %p71 = pneg %p65
      %p72 = scmp.eq.s32.totalorder %s16, 3
      %p73 = por %p71, %p72
      %p74 = scmp.ne.s32.totalorder %s66, %s69
      %p75 = scmp.eq.s32.totalorder %s16, 0
      %p76 = por %p74, %p75
      %p77 = scmp.ne.s32.totalorder %s66, %s69
      %p78 = scmp.eq.s32.totalorder %s21, 3
      %p79 = por %p77, %p78
      %p80 = scmp.ne.s32.totalorder %s69, %s70
      %p81 = scmp.eq.s32.totalorder %s21, 0
      %p82 = por %p80, %p81
      %p83 = scmp.ne.s32.totalorder %s69, %s70
      %p84 = scmp.eq.s32.totalorder %s22, 3
      %p85 = por %p83, %p84
      %p87 = scmp.ne.s32.totalorder %s70, %s86
      %p88 = scmp.eq.s32.totalorder %s22, 0
      %p89 = por %p87, %p88
      %s91 = sadd.s32 %s90, 1
      %p94 = scmp.eq.s32.totalorder %s16, 3
      %p95 = scmp.ne.s32.totalorder %s90, %s92
      %p96 = scmp.eq.s32.totalorder %s16, 0
      %p97 = por %p95, %p96
      %p98 = scmp.ne.s32.totalorder %s90, %s92
      %p99 = scmp.eq.s32.totalorder %s21, 3
      %p100 = por %p98, %p99
      %p101 = scmp.ne.s32.totalorder %s92, %s93
      %p102 = scmp.eq.s32.totalorder %s21, 0
      %p103 = por %p101, %p102
      %p104 = scmp.ne.s32.totalorder %s92, %s93
      %p105 = scmp.eq.s32.totalorder %s22, 3
      %p106 = por %p104, %p105
      %p108 = scmp.ne.s32.totalorder %s93, %s107
      %p109 = scmp.eq.s32.totalorder %s22, 0
      %p110 = por %p108, %p109
      %s112 = sadd.s32 %s111, 1
      %p115 = scmp.eq.s32.totalorder %s16, 3
      %p116 = scmp.ne.s32.totalorder %s111, %s113
      %p117 = scmp.eq.s32.totalorder %s16, 0
      %p118 = por %p116, %p117
      %p119 = scmp.ne.s32.totalorder %s111, %s113
      %p120 = scmp.eq.s32.totalorder %s21, 3
      %p121 = por %p119, %p120
      %p122 = scmp.ne.s32.totalorder %s113, %s114
      %p123 = scmp.eq.s32.totalorder %s21, 0
      %p124 = por %p122, %p123
      %p125 = scmp.ne.s32.totalorder %s113, %s114
      %p126 = scmp.eq.s32.totalorder %s22, 3
      %p127 = por %p125, %p126
      %p129 = scmp.ne.s32.totalorder %s114, %s128
      %p130 = scmp.eq.s32.totalorder %s22, 0
      %p131 = por %p129, %p130
      %s133 = sadd.s32 %s132, 1
      %p136 = scmp.eq.s32.totalorder %s16, 3
      %p137 = scmp.ne.s32.totalorder %s132, %s134
      %p138 = scmp.eq.s32.totalorder %s16, 0
      %p139 = por %p137, %p138
      %p140 = scmp.ne.s32.totalorder %s132, %s134
      %p141 = scmp.eq.s32.totalorder %s21, 3
      %p142 = por %p140, %p141
      %p143 = scmp.ne.s32.totalorder %s134, %s135
      %p144 = scmp.eq.s32.totalorder %s21, 0
      %p145 = por %p143, %p144
      %p146 = scmp.ne.s32.totalorder %s134, %s135
      %p147 = scmp.eq.s32.totalorder %s22, 3
      %p148 = por %p146, %p147
      %p150 = scmp.ne.s32.totalorder %s135, %s149
      %p151 = scmp.eq.s32.totalorder %s22, 0
      %p152 = por %p150, %p151
      %s154 = sadd.s32 %s153, 1
      %p157 = scmp.eq.s32.totalorder %s16, 3
      %p158 = scmp.ne.s32.totalorder %s153, %s155
      %p159 = scmp.eq.s32.totalorder %s16, 0
      %p160 = por %p158, %p159
      %p161 = scmp.ne.s32.totalorder %s153, %s155
      %p162 = scmp.eq.s32.totalorder %s21, 3
      %p163 = por %p161, %p162
      %p164 = scmp.ne.s32.totalorder %s155, %s156
      %p165 = scmp.eq.s32.totalorder %s21, 0
      %p166 = por %p164, %p165
      %p167 = scmp.ne.s32.totalorder %s155, %s156
      %p168 = scmp.eq.s32.totalorder %s22, 3
      %p169 = por %p167, %p168
      %p171 = scmp.ne.s32.totalorder %s156, %s170
      %p172 = scmp.eq.s32.totalorder %s22, 0
      %p173 = por %p171, %p172
      %s175 = sadd.s32 %s174, 1
      %p178 = scmp.eq.s32.totalorder %s16, 3
      %p179 = scmp.ne.s32.totalorder %s174, %s176
      %p180 = scmp.eq.s32.totalorder %s16, 0
      %p181 = por %p179, %p180
      %p182 = scmp.ne.s32.totalorder %s174, %s176
      %p183 = scmp.eq.s32.totalorder %s21, 3
      %p184 = por %p182, %p183
      %p185 = scmp.ne.s32.totalorder %s176, %s177
      %p186 = scmp.eq.s32.totalorder %s21, 0
      %p187 = por %p185, %p186
      %p188 = scmp.ne.s32.totalorder %s176, %s177
      %p189 = scmp.eq.s32.totalorder %s22, 3
      %p190 = por %p188, %p189
      %p192 = scmp.ne.s32.totalorder %s177, %s191
      %p193 = scmp.eq.s32.totalorder %s22, 0
      %p194 = por %p192, %p193
      %s195 = ssub.s32 %s23, %s35
      %s196 = ssub.s32 %s24, %s31
      %s197 = sor.u32 %s195, %s196
      %p198 = scmp.eq.s32.totalorder %s197, 0
      %s200 = sadd.s32 %s199, 1
      %s201 = scalar_select %p198, %s199, %s200
      %p204 = pneg %p198
      %p205 = scmp.eq.s32.totalorder %s16, 3
      %p206 = por %p204, %p205
      %p207 = scmp.ne.s32.totalorder %s199, %s202
      %p208 = scmp.eq.s32.totalorder %s16, 0
      %p209 = por %p207, %p208
      %p210 = scmp.ne.s32.totalorder %s199, %s202
      %p211 = scmp.eq.s32.totalorder %s21, 3
      %p212 = por %p210, %p211
      %p213 = scmp.ne.s32.totalorder %s202, %s203
      %p214 = scmp.eq.s32.totalorder %s21, 0
      %p215 = por %p213, %p214
      %p216 = scmp.ne.s32.totalorder %s202, %s203
      %p217 = scmp.eq.s32.totalorder %s22, 3
      %p218 = por %p216, %p217
      %p220 = scmp.ne.s32.totalorder %s203, %s219
      %p221 = scmp.eq.s32.totalorder %s22, 0
      %p222 = por %p220, %p221
      %p223 = scmp.le.s32.totalorder 1, %s16
      %p224 = scmp.lt.s32.totalorder %s16, 5
      %p225 = pnand %p223, %p224
      %p226 = pneg %p225
      // Predicated region
      $region9: #{tpu_custom_call.1} parent=5 // pred_check
        _
      $region10: #{tpu_custom_call.1} parent=5 // pred_check_branch
        %228 = sbr.rel (%p225) target = $region12
      $region11: #{tpu_custom_call.1} parent=5 // pred_region
        %s229 = ssub.s32 %s16, 1
        // Predicated region
        $region13: #{tpu_custom_call.1} parent=11 // pred_check
          %p230 = pneg %p103
        $region14: #{tpu_custom_call.1} parent=11 // pred_check_branch
          %232 = sbr.rel (%p230) target = $region16
        $region15: #{tpu_custom_call.1} parent=11 // pred_region
          _
        $region16: #{tpu_custom_call.1} parent=11 // pred_fallthru
          _
        // Predicated region
        $region17: #{tpu_custom_call.1} parent=11 // pred_check
          %p233 = pneg %p124
        $region18: #{tpu_custom_call.1} parent=11 // pred_check_branch
          %235 = sbr.rel (%p233) target = $region20
        $region19: #{tpu_custom_call.1} parent=11 // pred_region
          _
        $region20: #{tpu_custom_call.1} parent=11 // pred_fallthru
          _
        // Predicated region
        $region21: #{tpu_custom_call.1} parent=11 // pred_check
          %p236 = pneg %p145
        $region22: #{tpu_custom_call.1} parent=11 // pred_check_branch
          %238 = sbr.rel (%p236) target = $region24
        $region23: #{tpu_custom_call.1} parent=11 // pred_region
          _
        $region24: #{tpu_custom_call.1} parent=11 // pred_fallthru
          _
        // Predicated region
        $region25: #{tpu_custom_call.1} parent=11 // pred_check
          %p239 = pneg %p166
        $region26: #{tpu_custom_call.1} parent=11 // pred_check_branch
          %241 = sbr.rel (%p239) target = $region28
        $region27: #{tpu_custom_call.1} parent=11 // pred_region
          _
        $region28: #{tpu_custom_call.1} parent=11 // pred_fallthru
          _
        // Predicated region
        $region29: #{tpu_custom_call.1} parent=11 // pred_check
          %p242 = pneg %p187
        $region30: #{tpu_custom_call.1} parent=11 // pred_check_branch
          %244 = sbr.rel (%p242) target = $region32
        $region31: #{tpu_custom_call.1} parent=11 // pred_region
          _
        $region32: #{tpu_custom_call.1} parent=11 // pred_fallthru
          _
      $region12: #{tpu_custom_call.1} parent=5 // pred_fallthru
        _
      %p245 = scmp.lt.s32.totalorder %s16, 4
      // Predicated region
      $region33: #{tpu_custom_call.1} parent=5 // pred_check
        %p246 = pneg %p245
      $region34: #{tpu_custom_call.1} parent=5 // pred_check_branch
        %248 = sbr.rel (%p246) target = $region36
      $region35: #{tpu_custom_call.1} parent=5 // pred_region
        // Predicated region
        $region37: #{tpu_custom_call.1} parent=35 // pred_check
          %p249 = pneg %p48
        $region38: #{tpu_custom_call.1} parent=35 // pred_check_branch
          %251 = sbr.rel (%p249) target = $region40
        $region39: #{tpu_custom_call.1} parent=35 // pred_region
          %p252 = scmp.lt.s32.totalorder %s23, 1
          %s253 = scalar_select %p252, %s23, 1
          %s254 = smul.addr %s253, 2
          %s255 = smul.addr %s254, 2
          %s256 = scalar_lea.vmem %s0, %s255
        $region40: #{tpu_custom_call.1} parent=35 // pred_fallthru
          _
        // Predicated region
        $region41: #{tpu_custom_call.1} parent=35 // pred_check
          %p257 = pneg %p76
        $region42: #{tpu_custom_call.1} parent=35 // pred_check_branch
          %259 = sbr.rel (%p257) target = $region44
        $region43: #{tpu_custom_call.1} parent=35 // pred_region
          %p260 = scmp.lt.s32.totalorder %s23, 1
          %s261 = scalar_select %p260, %s23, 1
          %p262 = scmp.lt.s32.totalorder %s24, 1
          %s263 = scalar_select %p262, %s24, 1
          %s264 = smul.addr %s261, 2
          %s265 = sadd.s32 %s263, %s264
          %s266 = smul.addr %s265, 2
          %s267 = scalar_lea.vmem %s1, %s266
        $region44: #{tpu_custom_call.1} parent=35 // pred_fallthru
          _
      $region36: #{tpu_custom_call.1} parent=5 // pred_fallthru
        _
      %p268 = scmp.le.s32.totalorder 1, %s16
      %p269 = scmp.lt.s32.totalorder %s16, 5
      %p270 = pnand %p268, %p269
      %p271 = pneg %p270
      // Predicated region
      $region45: #{tpu_custom_call.1} parent=5 // pred_check
        _
      $region46: #{tpu_custom_call.1} parent=5 // pred_check_branch
        %273 = sbr.rel (%p270) target = $region48
      $region47: #{tpu_custom_call.1} parent=5 // pred_region
        %s274 = ssub.s32 %s16, 1
        %p275 = scmp.lt.s32.totalorder %s25, 1
        %s276 = scalar_select %p275, %s25, 1
        %s277 = smul.addr %s276, 2
        %s278 = smul.addr %s277, 2
        %s279 = scalar_lea.vmem %s0, %s278
        %p280 = pneg %p54
        %p281 = pneg %p51
        %p282 = scmp.lt.s32.totalorder %s25, 1
        %s283 = scalar_select %p282, %s25, 1
        %p284 = scmp.lt.s32.totalorder %s26, 1
        %s285 = scalar_select %p284, %s26, 1
        %s286 = smul.addr %s283, 2
        %s287 = sadd.s32 %s285, %s286
        %s288 = smul.addr %s287, 2
        %s289 = scalar_lea.vmem %s1, %s288
        %p290 = pneg %p82
        %p291 = pneg %p79
        %p292 = pneg %p103
        %p293 = pneg %p100
        %p294 = pneg %p124
        %p295 = pneg %p121
        %p296 = pneg %p145
        %p297 = pneg %p142
        %p298 = pneg %p166
        %p299 = pneg %p163
        %p300 = pneg %p187
        %p301 = pneg %p184
        %p302 = pneg %p215
        %p303 = pneg %p212
        %s304 = sand.u32 %s202, 1
        %s305 = scalar_lea.sflag [#allocation3], %s304
        %s306 = sand.u32 %s202, 1
        %s307 = smul.addr %s306, 4
        %s308 = scalar_lea.vmem [#allocation2], %s307
        %p309 = scmp.lt.s32.totalorder %s25, 1
        %s310 = scalar_select %p309, %s25, 1
        %s311 = smul.addr %s310, 2
        %s312 = smul.addr %s311, 2
        %s313 = scalar_lea.vmem %s0, %s312
        %p314 = scmp.lt.s32.totalorder %s25, 1
        %s315 = scalar_select %p314, %s25, 1
        %p316 = scmp.lt.s32.totalorder %s26, 1
        %s317 = scalar_select %p316, %s26, 1
        %s318 = smul.addr %s315, 2
        %s319 = sadd.s32 %s317, %s318
        %s320 = smul.addr %s319, 2
        %s321 = scalar_lea.vmem %s1, %s320
        %v323 = vld [vmem:[%s313] sm:$0xf]
        %v324 = vld [vmem:[%s321] sm:$0x3]
        %v325 = vld [vmem:[%s2] sm:$0xf]
        %v326 = vld [vmem:[%s2 + $0x4] sm:$0xf]
        %v327 = vld [vmem:[%s2 + $0x8] sm:$0xf]
        %v328 = vld [vmem:[%s2 + $0xc] sm:$0xf]
        %v333 = vunpack.c.l.b16 %v325
        %v334 = vunpack.c.l.b16 %v326
        %v335 = vunpack.c.l.b16 %v327
        %v336 = vunpack.c.l.b16 %v328
        %v337 = vpack.c.b16 %v334, %v333
        %v338 = vpack.c.b16 %v336, %v335
        %vm339 = vcmask 31744
        %v341 = vsel %vm339, %v337, 0
        %v344 = vsel %vm339, %v338, 0
        %vm346 = vcmask 1041408
        %v348 = vsel %vm346, %v324, 0
        %350 = vmatprep.subr.bf16.mxu0 0
        %351 = vmatpush1.bf16.msra.mxu0 %v348
        %352 = vmatprep.subr.bf16.mxu0 0
        %353 = vmatpush1.bf16.msra.mxu0 0
        %354 = vmatprep.subr.bf16.mxu0 0
        %355 = vmatpush1.bf16.msra.mxu0 0
        %356 = vmatprep.subr.bf16.mxu0 0
        %357 = vmatpush1.bf16.msra.mxu0 0
        %358 = vmatprep.subr.bf16.mxu0 0
        %359 = vmatpush1.bf16.msra.mxu0 0
        %360 = vmatprep.subr.bf16.mxu0 0
        %361 = vmatpush1.bf16.msra.mxu0 0
        %362 = vmatprep.subr.bf16.mxu0 0
        %363 = vmatpush1.bf16.msra.mxu0 0
        %364 = vmatprep.subr.bf16.mxu0 0
        %365 = vmatpush1.bf16.msra.mxu0 0
        %366 = vmatprep.subr.bf16.mxu0 0
        %367 = vmatpush1.bf16.msra.mxu0 0
        %368 = vmatprep.subr.bf16.mxu0 0
        %369 = vmatpush1.bf16.msra.mxu0 0
        %370 = vmatprep.subr.bf16.mxu0 0
        %371 = vmatpush1.bf16.msra.mxu0 0
        %372 = vmatprep.subr.bf16.mxu0 0
        %373 = vmatpush1.bf16.msra.mxu0 0
        %374 = vmatprep.subr.bf16.mxu0 0
        %375 = vmatpush1.bf16.msra.mxu0 0
        %376 = vmatprep.subr.bf16.mxu0 0
        %377 = vmatpush1.bf16.msra.mxu0 0
        %378 = vmatprep.subr.bf16.mxu0 0
        %379 = vmatpush1.bf16.msra.mxu0 0
        %380 = vmatprep.subr.bf16.mxu0 0
        %381 = vmatpush1.bf16.msra.mxu0 0
        %382 = vmatprep.mubr.bf16.mxu0 0
        %383 = vmatmul.mubr.bf16.gmra.mrb[0].mxu0 %v341
        %v384 = vpop.f32.mrb[0].mxu0
        %v385 = vadd.f32 0.0, %v384
        %v386 = vpop.f32.mrb[0].mxu0
        %v387 = vpop.f32.mrb[0].mxu0
        %v388 = vadd.f32 0.0, %v387
        %v389 = vpop.f32.mrb[0].mxu0
        %390 = vmatprep.mubr.bf16.mxu0 0
        %391 = vmatmul.mubr.bf16.gmra.mrb[0].mxu0 %v344
        %v392 = vpop.f32.mrb[0].mxu0
        %v393 = vadd.f32 0.0, %v392
        %v394 = vpop.f32.mrb[0].mxu0
        %v395 = vpop.f32.mrb[0].mxu0
        %v396 = vadd.f32 0.0, %v395
        %v397 = vpop.f32.mrb[0].mxu0
        %398 = vdwg.mxu0
        %v399 = vld [vmem:[%s3] sm:$0xf]
        %v400 = vld [vmem:[%s3 + $0x4] sm:$0xf]
        %v401 = vld [vmem:[%s3 + $0x8] sm:$0xf]
        %v402 = vld [vmem:[%s3 + $0xc] sm:$0xf]
        %v407 = vunpack.c.l.b16 %v399
        %v408 = vunpack.c.l.b16 %v400
        %v409 = vunpack.c.l.b16 %v401
        %v410 = vunpack.c.l.b16 %v402
        %v411 = vpack.c.b16 %v408, %v407
        %v412 = vpack.c.b16 %v410, %v409
        %v415 = vunpack.c.l.s4 1983009808
        %v416 = vunpack.c.0.s8 %v415
        %v417 = vlaneseq
        %v418 = vshrl.u32 %v417, 7
        %v419 = vsub.s32 %v416, %v418
        %v420 = vrot.slane %v323, %v419
        %v421 = vcombine.high %v420, %v420
        %v423 = vsel %vm339, %v411, 0
        %v426 = vsel %vm339, %v412, 0
        %v429 = vsel %vm346, %v420, 0
        %v432 = vsel %vm346, %v421, 0
        %434 = vmatprep.subr.bf16.mxu0 %v432
        %435 = vmatpush1.bf16.msra.mxu0 %v429
        %436 = vmatprep.subr.bf16.mxu0 0
        %437 = vmatpush1.bf16.msra.mxu0 0
        %438 = vmatprep.subr.bf16.mxu0 0
        %439 = vmatpush1.bf16.msra.mxu0 0
        %440 = vmatprep.subr.bf16.mxu0 0
        %441 = vmatpush1.bf16.msra.mxu0 0
        %442 = vmatprep.subr.bf16.mxu0 0
        %443 = vmatpush1.bf16.msra.mxu0 0
        %444 = vmatprep.subr.bf16.mxu0 0
        %445 = vmatpush1.bf16.msra.mxu0 0
        %446 = vmatprep.subr.bf16.mxu0 0
        %447 = vmatpush1.bf16.msra.mxu0 0
        %448 = vmatprep.subr.bf16.mxu0 0
        %449 = vmatpush1.bf16.msra.mxu0 0
        %450 = vmatprep.subr.bf16.mxu0 0
        %451 = vmatpush1.bf16.msra.mxu0 0
        %452 = vmatprep.subr.bf16.mxu0 0
        %453 = vmatpush1.bf16.msra.mxu0 0
        %454 = vmatprep.subr.bf16.mxu0 0
        %455 = vmatpush1.bf16.msra.mxu0 0
        %456 = vmatprep.subr.bf16.mxu0 0
        %457 = vmatpush1.bf16.msra.mxu0 0
        %458 = vmatprep.subr.bf16.mxu0 0
        %459 = vmatpush1.bf16.msra.mxu0 0
        %460 = vmatprep.subr.bf16.mxu0 0
        %461 = vmatpush1.bf16.msra.mxu0 0
        %462 = vmatprep.subr.bf16.mxu0 0
        %463 = vmatpush1.bf16.msra.mxu0 0
        %464 = vmatprep.subr.bf16.mxu0 0
        %465 = vmatpush1.bf16.msra.mxu0 0
        %466 = vmatprep.mubr.bf16.mxu0 0
        %467 = vmatmul.mubr.bf16.gmra.mrb[0].mxu0 %v423
        %v468 = vpop.f32.mrb[0].mxu0
        %v469 = vadd.f32 0.0, %v468
        %v470 = vpop.f32.mrb[0].mxu0
        %v471 = vadd.f32 0.0, %v470
        %v472 = vpop.f32.mrb[0].mxu0
        %v473 = vadd.f32 0.0, %v472
        %v474 = vpop.f32.mrb[0].mxu0
        %v475 = vadd.f32 0.0, %v474
        %476 = vmatprep.mubr.bf16.mxu0 0
        %477 = vmatmul.mubr.bf16.gmra.mrb[0].mxu0 %v426
        %v478 = vpop.f32.mrb[0].mxu0
        %v479 = vadd.f32 0.0, %v478
        %v480 = vpop.f32.mrb[0].mxu0
        %v481 = vadd.f32 0.0, %v480
        %v482 = vpop.f32.mrb[0].mxu0
        %v483 = vadd.f32 0.0, %v482
        %v484 = vpop.f32.mrb[0].mxu0
        %v485 = vadd.f32 0.0, %v484
        %486 = vdwg.mxu0
        %v487 = vld [vmem:[%s4] sm:$0xf]
        %v488 = vld [vmem:[%s4 + $0x4] sm:$0xf]
        %v489 = vld [vmem:[%s4 + $0x8] sm:$0xf]
        %v490 = vld [vmem:[%s4 + $0xc] sm:$0xf]
        %v495 = vunpack.c.l.b16 %v487
        %v496 = vunpack.c.l.b16 %v488
        %v497 = vunpack.c.l.b16 %v489
        %v498 = vunpack.c.l.b16 %v490
        %v499 = vpack.c.b16 %v496, %v495
        %v500 = vpack.c.b16 %v498, %v497
        %v502 = vsel %vm339, %v499, 0
        %v505 = vsel %vm339, %v500, 0
        %507 = vmatprep.subr.bf16.mxu0 %v432
        %508 = vmatpush1.bf16.msra.mxu0 %v429
        %509 = vmatprep.subr.bf16.mxu0 0
        %510 = vmatpush1.bf16.msra.mxu0 0
        %511 = vmatprep.subr.bf16.mxu0 0
        %512 = vmatpush1.bf16.msra.mxu0 0
        %513 = vmatprep.subr.bf16.mxu0 0
        %514 = vmatpush1.bf16.msra.mxu0 0
        %515 = vmatprep.subr.bf16.mxu0 0
        %516 = vmatpush1.bf16.msra.mxu0 0
        %517 = vmatprep.subr.bf16.mxu0 0
        %518 = vmatpush1.bf16.msra.mxu0 0
        %519 = vmatprep.subr.bf16.mxu0 0
        %520 = vmatpush1.bf16.msra.mxu0 0
        %521 = vmatprep.subr.bf16.mxu0 0
        %522 = vmatpush1.bf16.msra.mxu0 0
        %523 = vmatprep.subr.bf16.mxu0 0
        %524 = vmatpush1.bf16.msra.mxu0 0
        %525 = vmatprep.subr.bf16.mxu0 0
        %526 = vmatpush1.bf16.msra.mxu0 0
        %527 = vmatprep.subr.bf16.mxu0 0
        %528 = vmatpush1.bf16.msra.mxu0 0
        %529 = vmatprep.subr.bf16.mxu0 0
        %530 = vmatpush1.bf16.msra.mxu0 0
        %531 = vmatprep.subr.bf16.mxu0 0
        %532 = vmatpush1.bf16.msra.mxu0 0
        %533 = vmatprep.subr.bf16.mxu0 0
        %534 = vmatpush1.bf16.msra.mxu0 0
        %535 = vmatprep.subr.bf16.mxu0 0
        %536 = vmatpush1.bf16.msra.mxu0 0
        %537 = vmatprep.subr.bf16.mxu0 0
        %538 = vmatpush1.bf16.msra.mxu0 0
        %539 = vmatprep.mubr.bf16.mxu0 0
        %540 = vmatmul.mubr.bf16.gmra.mrb[0].mxu0 %v502
        %v541 = vpop.f32.mrb[0].mxu0
        %v542 = vadd.f32 0.0, %v541
        %v543 = vpop.f32.mrb[0].mxu0
        %v544 = vadd.f32 0.0, %v543
        %v545 = vpop.f32.mrb[0].mxu0
        %v546 = vadd.f32 0.0, %v545
        %v547 = vpop.f32.mrb[0].mxu0
        %v548 = vadd.f32 0.0, %v547
        %549 = vmatprep.mubr.bf16.mxu0 0
        %550 = vmatmul.mubr.bf16.gmra.mrb[0].mxu0 %v505
        %v551 = vpop.f32.mrb[0].mxu0
        %v552 = vadd.f32 0.0, %v551
        %v553 = vpop.f32.mrb[0].mxu0
        %v554 = vadd.f32 0.0, %v553
        %v555 = vpop.f32.mrb[0].mxu0
        %v556 = vadd.f32 0.0, %v555
        %v557 = vpop.f32.mrb[0].mxu0
        %v558 = vadd.f32 0.0, %v557
        %559 = vdwg.mxu0
        %v560 = vpack.c.bf16 %v473, %v469
        %v561 = vpack.c.bf16 %v475, %v471
        %v562 = vpack.c.bf16 %v483, %v479
        %v563 = vpack.c.bf16 %v485, %v481
        %v564 = vpack.c.bf16 %v388, %v385
        %v565 = vpack.c.bf16 %v396, %v393
        %566 = vxpose.xlu0.c.b16.start [1/8] %v560, 128
        %567 = vxpose.xlu0.c.b16.cont [2/8] %v562, 128
        %568 = vxpose.xlu0.c.b16.cont [3/8] 0, 128
        %569 = vxpose.xlu0.c.b16.cont [4/8] 0, 128
        %570 = vxpose.xlu0.c.b16.cont [5/8] 0, 128
        %571 = vxpose.xlu0.c.b16.cont [6/8] 0, 128
        %572 = vxpose.xlu0.c.b16.cont [7/8] 0, 128
        %573 = vxpose.xlu0.c.b16.end [8/8] 0, 128
        %v574 = vpop.trf.xlu0
        %v575 = vpop.trf.xlu0
        %v576 = vpop.trf.xlu0
        %v577 = vpop.trf.xlu0
        %v578 = vpop.trf.xlu0
        %v579 = vpop.trf.xlu0
        %v580 = vpop.trf.xlu0
        %v581 = vpop.trf.xlu0
        %582 = vxpose.xlu0.c.b16.start [1/8] %v561, 128
        %583 = vxpose.xlu0.c.b16.cont [2/8] %v563, 128
        %584 = vxpose.xlu0.c.b16.cont [3/8] 0, 128
        %585 = vxpose.xlu0.c.b16.cont [4/8] 0, 128
        %586 = vxpose.xlu0.c.b16.cont [5/8] 0, 128
        %587 = vxpose.xlu0.c.b16.cont [6/8] 0, 128
        %588 = vxpose.xlu0.c.b16.cont [7/8] 0, 128
        %589 = vxpose.xlu0.c.b16.end [8/8] 0, 128
        %v590 = vpop.trf.xlu0
        %v591 = vpop.trf.xlu0
        %v592 = vpop.trf.xlu0
        %v593 = vpop.trf.xlu0
        %v594 = vpop.trf.xlu0
        %v595 = vpop.trf.xlu0
        %v596 = vpop.trf.xlu0
        %v597 = vpop.trf.xlu0
        %vm598 = vcmask 261120
        %v600 = vsel %vm598, %v574, 0
        %v603 = vsel %vm598, %v575, 0
        %v606 = vsel %vm598, %v576, 0
        %v609 = vsel %vm598, %v577, 0
        %v612 = vsel %vm598, %v578, 0
        %v615 = vsel %vm598, %v579, 0
        %v618 = vsel %vm598, %v580, 0
        %v621 = vsel %vm598, %v581, 0
        %v624 = vsel %vm598, %v590, 0
        %v627 = vsel %vm598, %v591, 0
        %v630 = vsel %vm598, %v592, 0
        %v633 = vsel %vm598, %v593, 0
        %v636 = vsel %vm598, %v594, 0
        %v639 = vsel %vm598, %v595, 0
        %v642 = vsel %vm598, %v596, 0
        %v645 = vsel %vm598, %v597, 0
        %647 = vmatprep.subr.bf16.mxu0 0
        %648 = vmatpush1.bf16.msra.mxu0 %v564
        %649 = vmatprep.subr.bf16.mxu0 0
        %650 = vmatpush1.bf16.msra.mxu0 %v565
        %651 = vmatprep.subr.bf16.mxu0 0
        %652 = vmatpush1.bf16.msra.mxu0 0
        %653 = vmatprep.subr.bf16.mxu0 0
        %654 = vmatpush1.bf16.msra.mxu0 0
        %655 = vmatprep.subr.bf16.mxu0 0
        %656 = vmatpush1.bf16.msra.mxu0 0
        %657 = vmatprep.subr.bf16.mxu0 0
        %658 = vmatpush1.bf16.msra.mxu0 0
        %659 = vmatprep.subr.bf16.mxu0 0
        %660 = vmatpush1.bf16.msra.mxu0 0
        %661 = vmatprep.subr.bf16.mxu0 0
        %662 = vmatpush1.bf16.msra.mxu0 0
        %663 = vmatprep.subr.bf16.mxu0 0
        %664 = vmatpush1.bf16.msra.mxu0 0
        %665 = vmatprep.subr.bf16.mxu0 0
        %666 = vmatpush1.bf16.msra.mxu0 0
        %667 = vmatprep.subr.bf16.mxu0 0
        %668 = vmatpush1.bf16.msra.mxu0 0
        %669 = vmatprep.subr.bf16.mxu0 0
        %670 = vmatpush1.bf16.msra.mxu0 0
        %671 = vmatprep.subr.bf16.mxu0 0
        %672 = vmatpush1.bf16.msra.mxu0 0
        %673 = vmatprep.subr.bf16.mxu0 0
        %674 = vmatpush1.bf16.msra.mxu0 0
        %675 = vmatprep.subr.bf16.mxu0 0
        %676 = vmatpush1.bf16.msra.mxu0 0
        %677 = vmatprep.subr.bf16.mxu0 0
        %678 = vmatpush1.bf16.msra.mxu0 0
        %679 = vmatprep.mubr.bf16.mxu0 0
        %680 = vmatmul.mubr.bf16.gmra.mrb[0].mxu0 %v600
        %v681 = vpop.f32.mrb[0].mxu0
        %v682 = vadd.f32 0.0, %v681
        %v683 = vpop.f32.mrb[0].mxu0
        %v684 = vpop.f32.mrb[0].mxu0
        %v685 = vadd.f32 0.0, %v684
        %v686 = vpop.f32.mrb[0].mxu0
        %687 = vmatprep.mubr.bf16.mxu0 0
        %688 = vmatmul.mubr.bf16.gmra.mrb[0].mxu0 %v603
        %v689 = vpop.f32.mrb[0].mxu0
        %v690 = vadd.f32 0.0, %v689
        %v691 = vpop.f32.mrb[0].mxu0
        %v692 = vpop.f32.mrb[0].mxu0
        %v693 = vadd.f32 0.0, %v692
        %v694 = vpop.f32.mrb[0].mxu0
        %695 = vmatprep.mubr.bf16.mxu0 0
        %696 = vmatmul.mubr.bf16.gmra.mrb[0].mxu0 %v606
        %v697 = vpop.f32.mrb[0].mxu0
        %v698 = vadd.f32 0.0, %v697
        %v699 = vpop.f32.mrb[0].mxu0
        %v700 = vpop.f32.mrb[0].mxu0
        %v701 = vadd.f32 0.0, %v700
        %v702 = vpop.f32.mrb[0].mxu0
        %703 = vmatprep.mubr.bf16.mxu0 0
        %704 = vmatmul.mubr.bf16.gmra.mrb[0].mxu0 %v609
        %v705 = vpop.f32.mrb[0].mxu0
        %v706 = vadd.f32 0.0, %v705
        %v707 = vpop.f32.mrb[0].mxu0
        %v708 = vpop.f32.mrb[0].mxu0
        %v709 = vadd.f32 0.0, %v708
        %v710 = vpop.f32.mrb[0].mxu0
        %711 = vmatprep.mubr.bf16.mxu0 0
        %712 = vmatmul.mubr.bf16.gmra.mrb[0].mxu0 %v612
        %v713 = vpop.f32.mrb[0].mxu0
        %v714 = vadd.f32 0.0, %v713
        %v715 = vpop.f32.mrb[0].mxu0
        %v716 = vpop.f32.mrb[0].mxu0
        %v717 = vadd.f32 0.0, %v716
        %v718 = vpop.f32.mrb[0].mxu0
        %719 = vmatprep.mubr.bf16.mxu0 0
        %720 = vmatmul.mubr.bf16.gmra.mrb[0].mxu0 %v615
        %v721 = vpop.f32.mrb[0].mxu0
        %v722 = vadd.f32 0.0, %v721
        %v723 = vpop.f32.mrb[0].mxu0
        %v724 = vpop.f32.mrb[0].mxu0
        %v725 = vadd.f32 0.0, %v724
        %v726 = vpop.f32.mrb[0].mxu0
        %727 = vmatprep.mubr.bf16.mxu0 0
        %728 = vmatmul.mubr.bf16.gmra.mrb[0].mxu0 %v618
        %v729 = vpop.f32.mrb[0].mxu0
        %v730 = vadd.f32 0.0, %v729
        %v731 = vpop.f32.mrb[0].mxu0
        %v732 = vpop.f32.mrb[0].mxu0
        %v733 = vadd.f32 0.0, %v732
        %v734 = vpop.f32.mrb[0].mxu0
        %735 = vmatprep.mubr.bf16.mxu0 0
        %736 = vmatmul.mubr.bf16.gmra.mrb[0].mxu0 %v621
        %v737 = vpop.f32.mrb[0].mxu0
        %v738 = vadd.f32 0.0, %v737
        %v739 = vpop.f32.mrb[0].mxu0
        %v740 = vpop.f32.mrb[0].mxu0
        %v741 = vadd.f32 0.0, %v740
        %v742 = vpop.f32.mrb[0].mxu0
        %743 = vmatprep.mubr.bf16.mxu0 0
        %744 = vmatmul.mubr.bf16.gmra.mrb[0].mxu0 %v624
        %v745 = vpop.f32.mrb[0].mxu0
        %v746 = vadd.f32 0.0, %v745
        %v747 = vpop.f32.mrb[0].mxu0
        %v748 = vpop.f32.mrb[0].mxu0
        %v749 = vadd.f32 0.0, %v748
        %v750 = vpop.f32.mrb[0].mxu0
        %751 = vmatprep.mubr.bf16.mxu0 0
        %752 = vmatmul.mubr.bf16.gmra.mrb[0].mxu0 %v627
        %v753 = vpop.f32.mrb[0].mxu0
        %v754 = vadd.f32 0.0, %v753
        %v755 = vpop.f32.mrb[0].mxu0
        %v756 = vpop.f32.mrb[0].mxu0
        %v757 = vadd.f32 0.0, %v756
        %v758 = vpop.f32.mrb[0].mxu0
        %759 = vmatprep.mubr.bf16.mxu0 0
        %760 = vmatmul.mubr.bf16.gmra.mrb[0].mxu0 %v630
        %v761 = vpop.f32.mrb[0].mxu0
        %v762 = vadd.f32 0.0, %v761
        %v763 = vpop.f32.mrb[0].mxu0
        %v764 = vpop.f32.mrb[0].mxu0
        %v765 = vadd.f32 0.0, %v764
        %v766 = vpop.f32.mrb[0].mxu0
        %767 = vmatprep.mubr.bf16.mxu0 0
        %768 = vmatmul.mubr.bf16.gmra.mrb[0].mxu0 %v633
        %v769 = vpop.f32.mrb[0].mxu0
        %v770 = vadd.f32 0.0, %v769
        %v771 = vpop.f32.mrb[0].mxu0
        %v772 = vpop.f32.mrb[0].mxu0
        %v773 = vadd.f32 0.0, %v772
        %v774 = vpop.f32.mrb[0].mxu0
        %775 = vmatprep.mubr.bf16.mxu0 0
        %776 = vmatmul.mubr.bf16.gmra.mrb[0].mxu0 %v636
        %v777 = vpop.f32.mrb[0].mxu0
        %v778 = vadd.f32 0.0, %v777
        %v779 = vpop.f32.mrb[0].mxu0
        %v780 = vpop.f32.mrb[0].mxu0
        %v781 = vadd.f32 0.0, %v780
        %v782 = vpop.f32.mrb[0].mxu0
        %783 = vmatprep.mubr.bf16.mxu0 0
        %784 = vmatmul.mubr.bf16.gmra.mrb[0].mxu0 %v639
        %v785 = vpop.f32.mrb[0].mxu0
        %v786 = vadd.f32 0.0, %v785
        %v787 = vpop.f32.mrb[0].mxu0
        %v788 = vpop.f32.mrb[0].mxu0
        %v789 = vadd.f32 0.0, %v788
        %v790 = vpop.f32.mrb[0].mxu0
        %791 = vmatprep.mubr.bf16.mxu0 0
        %792 = vmatmul.mubr.bf16.gmra.mrb[0].mxu0 %v642
        %v793 = vpop.f32.mrb[0].mxu0
        %v794 = vadd.f32 0.0, %v793
        %v795 = vpop.f32.mrb[0].mxu0
        %v796 = vpop.f32.mrb[0].mxu0
        %v797 = vadd.f32 0.0, %v796
        %v798 = vpop.f32.mrb[0].mxu0
        %799 = vmatprep.mubr.bf16.mxu0 0
        %800 = vmatmul.mubr.bf16.gmra.mrb[0].mxu0 %v645
        %v801 = vpop.f32.mrb[0].mxu0
        %v802 = vadd.f32 0.0, %v801
        %v803 = vpop.f32.mrb[0].mxu0
        %v804 = vpop.f32.mrb[0].mxu0
        %v805 = vadd.f32 0.0, %v804
        %v806 = vpop.f32.mrb[0].mxu0
        %807 = vdwg.mxu0
        %v808 = vmax.f32 %v682, %v698
        %v809 = vmax.f32 %v685, %v701
        %v810 = vmax.f32 %v690, %v706
        %v811 = vmax.f32 %v693, %v709
        %v812 = vmax.f32 %v808, %v714
        %v813 = vmax.f32 %v809, %v717
        %v814 = vmax.f32 %v810, %v722
        %v815 = vmax.f32 %v811, %v725
        %v816 = vmax.f32 %v812, %v730
        %v817 = vmax.f32 %v813, %v733
        %v818 = vmax.f32 %v814, %v738
        %v819 = vmax.f32 %v815, %v741
        %v820 = vmax.f32 %v816, %v746
        %v821 = vmax.f32 %v817, %v749
        %v822 = vmax.f32 %v818, %v754
        %v823 = vmax.f32 %v819, %v757
        %v824 = vmax.f32 %v820, %v762
        %v825 = vmax.f32 %v821, %v765
        %v826 = vmax.f32 %v822, %v770
        %v827 = vmax.f32 %v823, %v773
        %v828 = vmax.f32 %v824, %v778
        %v829 = vmax.f32 %v825, %v781
        %v830 = vmax.f32 %v826, %v786
        %v831 = vmax.f32 %v827, %v789
        %v832 = vmax.f32 %v828, %v794
        %v833 = vmax.f32 %v829, %v797
        %v834 = vmax.f32 %v830, %v802
        %v835 = vmax.f32 %v831, %v805
        %v836 = vmax.f32 %v832, %v833
        %v837 = vmax.f32 %v834, %v835
        %v838 = vmax.f32 %v836, %v837
        %v839 = vrot.slane %v838, 4
        %v840 = vmax.f32 %v838, %v839
        %v841 = vrot.slane %v840, 2
        %v842 = vmax.f32 %v840, %v841
        %v843 = vrot.slane %v842, 1
        %v844 = vmax.f32 %v842, %v843
        %v845 = vsub.f32 %v682, %v844
        %v846 = vsub.f32 %v685, %v844
        %v847 = vsub.f32 %v690, %v844
        %v848 = vsub.f32 %v693, %v844
        %v849 = vsub.f32 %v698, %v844
        %v850 = vsub.f32 %v701, %v844
        %v851 = vsub.f32 %v706, %v844
        %v852 = vsub.f32 %v709, %v844
        %v853 = vsub.f32 %v714, %v844
        %v854 = vsub.f32 %v717, %v844
        %v855 = vsub.f32 %v722, %v844
        %v856 = vsub.f32 %v725, %v844
        %v857 = vsub.f32 %v730, %v844
        %v858 = vsub.f32 %v733, %v844
        %v859 = vsub.f32 %v738, %v844
        %v860 = vsub.f32 %v741, %v844
        %v861 = vsub.f32 %v746, %v844
        %v862 = vsub.f32 %v749, %v844
        %v863 = vsub.f32 %v754, %v844
        %v864 = vsub.f32 %v757, %v844
        %v865 = vsub.f32 %v762, %v844
        %v866 = vsub.f32 %v765, %v844
        %v867 = vsub.f32 %v770, %v844
        %v868 = vsub.f32 %v773, %v844
        %v869 = vsub.f32 %v778, %v844
        %v870 = vsub.f32 %v781, %v844
        %v871 = vsub.f32 %v786, %v844
        %v872 = vsub.f32 %v789, %v844
        %v873 = vsub.f32 %v794, %v844
        %v874 = vsub.f32 %v797, %v844
        %v875 = vsub.f32 %v802, %v844
        %v876 = vsub.f32 %v805, %v844
        %v877 = vmul.f32 %v845, 1.442695
        %v878 = vpow.pop %v877
        %v879 = vmul.f32 %v846, 1.442695
        %v880 = vpow.pop %v879
        %v881 = vmul.f32 %v847, 1.442695
        %v882 = vpow.pop %v881
        %v883 = vmul.f32 %v848, 1.442695
        %v884 = vpow.pop %v883
        %v885 = vmul.f32 %v849, 1.442695
        %v886 = vpow.pop %v885
        %v887 = vmul.f32 %v850, 1.442695
        %v888 = vpow.pop %v887
        %v889 = vmul.f32 %v851, 1.442695
        %v890 = vpow.pop %v889
        %v891 = vmul.f32 %v852, 1.442695
        %v892 = vpow.pop %v891
        %v893 = vmul.f32 %v853, 1.442695
        %v894 = vpow.pop %v893
        %v895 = vmul.f32 %v854, 1.442695
        %v896 = vpow.pop %v895
        %v897 = vmul.f32 %v855, 1.442695
        %v898 = vpow.pop %v897
        %v899 = vmul.f32 %v856, 1.442695
        %v900 = vpow.pop %v899
        %v901 = vmul.f32 %v857, 1.442695
        %v902 = vpow.pop %v901
        %v903 = vmul.f32 %v858, 1.442695
        %v904 = vpow.pop %v903
        %v905 = vmul.f32 %v859, 1.442695
        %v906 = vpow.pop %v905
        %v907 = vmul.f32 %v860, 1.442695
        %v908 = vpow.pop %v907
        %v909 = vmul.f32 %v861, 1.442695
        %v910 = vpow.pop %v909
        %v911 = vmul.f32 %v862, 1.442695
        %v912 = vpow.pop %v911
        %v913 = vmul.f32 %v863, 1.442695
        %v914 = vpow.pop %v913
        %v915 = vmul.f32 %v864, 1.442695
        %v916 = vpow.pop %v915
        %v917 = vmul.f32 %v865, 1.442695
        %v918 = vpow.pop %v917
        %v919 = vmul.f32 %v866, 1.442695
        %v920 = vpow.pop %v919
        %v921 = vmul.f32 %v867, 1.442695
        %v922 = vpow.pop %v921
        %v923 = vmul.f32 %v868, 1.442695
        %v924 = vpow.pop %v923
        %v925 = vmul.f32 %v869, 1.442695
        %v926 = vpow.pop %v925
        %v927 = vmul.f32 %v870, 1.442695
        %v928 = vpow.pop %v927
        %v929 = vmul.f32 %v871, 1.442695
        %v930 = vpow.pop %v929
        %v931 = vmul.f32 %v872, 1.442695
        %v932 = vpow.pop %v931
        %v933 = vmul.f32 %v873, 1.442695
        %v934 = vpow.pop %v933
        %v935 = vmul.f32 %v874, 1.442695
        %v936 = vpow.pop %v935
        %v937 = vmul.f32 %v875, 1.442695
        %v938 = vpow.pop %v937
        %v939 = vmul.f32 %v876, 1.442695
        %v940 = vpow.pop %v939
        %v941 = vadd.f32 %v878, %v880
        %v942 = vadd.f32 %v941, %v882
        %v943 = vadd.f32 %v942, %v884
        %v944 = vadd.f32 %v943, %v886
        %v945 = vadd.f32 %v944, %v888
        %v946 = vadd.f32 %v945, %v890
        %v947 = vadd.f32 %v946, %v892
        %v948 = vadd.f32 %v947, %v894
        %v949 = vadd.f32 %v948, %v896
        %v950 = vadd.f32 %v949, %v898
        %v951 = vadd.f32 %v950, %v900
        %v952 = vadd.f32 %v951, %v902
        %v953 = vadd.f32 %v952, %v904
        %v954 = vadd.f32 %v953, %v906
        %v955 = vadd.f32 %v954, %v908
        %v956 = vadd.f32 %v955, %v910
        %v957 = vadd.f32 %v956, %v912
        %v958 = vadd.f32 %v957, %v914
        %v959 = vadd.f32 %v958, %v916
        %v960 = vadd.f32 %v959, %v918
        %v961 = vadd.f32 %v960, %v920
        %v962 = vadd.f32 %v961, %v922
        %v963 = vadd.f32 %v962, %v924
        %v964 = vadd.f32 %v963, %v926
        %v965 = vadd.f32 %v964, %v928
        %v966 = vadd.f32 %v965, %v930
        %v967 = vadd.f32 %v966, %v932
        %v968 = vadd.f32 %v967, %v934
        %v969 = vadd.f32 %v968, %v936
        %v970 = vadd.f32 %v969, %v938
        %v971 = vadd.f32 %v970, %v940
        %v972 = vrot.slane %v971, 4
        %v973 = vadd.f32 %v971, %v972
        %v974 = vrot.slane %v973, 2
        %v975 = vadd.f32 %v973, %v974
        %v976 = vrot.slane %v975, 1
        %v977 = vadd.f32 %v975, %v976
        %v978 = vrcp.pop %v977
        %v979 = vpack.c.bf16 %v546, %v542
        %v980 = vpack.c.bf16 %v548, %v544
        %v981 = vpack.c.bf16 %v556, %v552
        %v982 = vpack.c.bf16 %v558, %v554
        %v983 = vpack.c.bf16 %v880, %v878
        %v984 = vpack.c.bf16 %v884, %v882
        %v985 = vpack.c.bf16 %v888, %v886
        %v986 = vpack.c.bf16 %v892, %v890
        %v987 = vpack.c.bf16 %v896, %v894
        %v988 = vpack.c.bf16 %v900, %v898
        %v989 = vpack.c.bf16 %v904, %v902
        %v990 = vpack.c.bf16 %v908, %v906
        %v991 = vpack.c.bf16 %v912, %v910
        %v992 = vpack.c.bf16 %v916, %v914
        %v993 = vpack.c.bf16 %v920, %v918
        %v994 = vpack.c.bf16 %v924, %v922
        %v995 = vpack.c.bf16 %v928, %v926
        %v996 = vpack.c.bf16 %v932, %v930
        %v997 = vpack.c.bf16 %v936, %v934
        %v998 = vpack.c.bf16 %v940, %v938
        %999 = vmatprep.subr.bf16.mxu0 0
        %1000 = vmatpush1.bf16.msra.mxu0 %v983
        %1001 = vmatprep.subr.bf16.mxu0 0
        %1002 = vmatpush1.bf16.msra.mxu0 %v984
        %1003 = vmatprep.subr.bf16.mxu0 0
        %1004 = vmatpush1.bf16.msra.mxu0 %v985
        %1005 = vmatprep.subr.bf16.mxu0 0
        %1006 = vmatpush1.bf16.msra.mxu0 %v986
        %1007 = vmatprep.subr.bf16.mxu0 0
        %1008 = vmatpush1.bf16.msra.mxu0 %v987
        %1009 = vmatprep.subr.bf16.mxu0 0
        %1010 = vmatpush1.bf16.msra.mxu0 %v988
        %1011 = vmatprep.subr.bf16.mxu0 0
        %1012 = vmatpush1.bf16.msra.mxu0 %v989
        %1013 = vmatprep.subr.bf16.mxu0 0
        %1014 = vmatpush1.bf16.msra.mxu0 %v990
        %1015 = vmatprep.subr.bf16.mxu0 0
        %1016 = vmatpush1.bf16.msra.mxu0 %v991
        %1017 = vmatprep.subr.bf16.mxu0 0
        %1018 = vmatpush1.bf16.msra.mxu0 %v992
        %1019 = vmatprep.subr.bf16.mxu0 0
        %1020 = vmatpush1.bf16.msra.mxu0 %v993
        %1021 = vmatprep.subr.bf16.mxu0 0
        %1022 = vmatpush1.bf16.msra.mxu0 %v994
        %1023 = vmatprep.subr.bf16.mxu0 0
        %1024 = vmatpush1.bf16.msra.mxu0 %v995
        %1025 = vmatprep.subr.bf16.mxu0 0
        %1026 = vmatpush1.bf16.msra.mxu0 %v996
        %1027 = vmatprep.subr.bf16.mxu0 0
        %1028 = vmatpush1.bf16.msra.mxu0 %v997
        %1029 = vmatprep.subr.bf16.mxu0 0
        %1030 = vmatpush1.bf16.msra.mxu0 %v998
        %1031 = vmatprep.mubr.bf16.mxu0 %v980
        %1032 = vmatmul.mubr.bf16.gmra.mrb[0].mxu0 %v979
        %v1033 = vpop.f32.mrb[0].mxu0
        %v1034 = vadd.f32 0.0, %v1033
        %v1035 = vpop.f32.mrb[0].mxu0
        %v1036 = vpop.f32.mrb[0].mxu0
        %v1037 = vadd.f32 0.0, %v1036
        %v1038 = vpop.f32.mrb[0].mxu0
        %1039 = vmatprep.mubr.bf16.mxu0 %v982
        %1040 = vmatmul.mubr.bf16.gmra.mrb[0].mxu0 %v981
        %v1041 = vpop.f32.mrb[0].mxu0
        %v1042 = vadd.f32 0.0, %v1041
        %v1043 = vpop.f32.mrb[0].mxu0
        %v1044 = vpop.f32.mrb[0].mxu0
        %v1045 = vadd.f32 0.0, %v1044
        %v1046 = vpop.f32.mrb[0].mxu0
        %1047 = vdwg.mxu0
        %v1048 = vmul.f32 %v1034, %v978
        %v1049 = vmul.f32 %v1037, %v978
        %v1050 = vmul.f32 %v1042, %v978
        %v1051 = vmul.f32 %v1045, %v978
        %v1052 = vld [vmem:[%s5] sm:$0x3]
        %v1053 = vpack.c.bf16 %v1049, %v1048
        %v1054 = vpack.c.bf16 %v1051, %v1050
        %s1055 = scalar_lea.vmem %s2, 16
        %v1056 = vld [vmem:[%s1055] sm:$0xf]
        %v1057 = vld [vmem:[%s1055 + $0x4] sm:$0xf]
        %v1058 = vld [vmem:[%s1055 + $0x8] sm:$0xf]
        %v1059 = vld [vmem:[%s1055 + $0xc] sm:$0xf]
        %v1064 = vunpack.c.l.b16 %v1056
        %v1065 = vunpack.c.l.b16 %v1057
        %v1066 = vunpack.c.l.b16 %v1058
        %v1067 = vunpack.c.l.b16 %v1059
        %v1068 = vpack.c.b16 %v1065, %v1064
        %v1069 = vpack.c.b16 %v1067, %v1066
        %v1071 = vsel %vm339, %v1068, 0
        %v1074 = vsel %vm339, %v1069, 0
        %1076 = vmatprep.subr.bf16.mxu0 0
        %1077 = vmatpush1.bf16.msra.mxu0 %v348
        %1078 = vmatprep.subr.bf16.mxu0 0
        %1079 = vmatpush1.bf16.msra.mxu0 0
        %1080 = vmatprep.subr.bf16.mxu0 0
        %1081 = vmatpush1.bf16.msra.mxu0 0
        %1082 = vmatprep.subr.bf16.mxu0 0
        %1083 = vmatpush1.bf16.msra.mxu0 0
        %1084 = vmatprep.subr.bf16.mxu0 0
        %1085 = vmatpush1.bf16.msra.mxu0 0
        %1086 = vmatprep.subr.bf16.mxu0 0
        %1087 = vmatpush1.bf16.msra.mxu0 0
        %1088 = vmatprep.subr.bf16.mxu0 0
        %1089 = vmatpush1.bf16.msra.mxu0 0
        %1090 = vmatprep.subr.bf16.mxu0 0
        %1091 = vmatpush1.bf16.msra.mxu0 0
        %1092 = vmatprep.subr.bf16.mxu0 0
        %1093 = vmatpush1.bf16.msra.mxu0 0
        %1094 = vmatprep.subr.bf16.mxu0 0
        %1095 = vmatpush1.bf16.msra.mxu0 0
        %1096 = vmatprep.subr.bf16.mxu0 0
        %1097 = vmatpush1.bf16.msra.mxu0 0
        %1098 = vmatprep.subr.bf16.mxu0 0
        %1099 = vmatpush1.bf16.msra.mxu0 0
        %1100 = vmatprep.subr.bf16.mxu0 0
        %1101 = vmatpush1.bf16.msra.mxu0 0
        %1102 = vmatprep.subr.bf16.mxu0 0
        %1103 = vmatpush1.bf16.msra.mxu0 0
        %1104 = vmatprep.subr.bf16.mxu0 0
        %1105 = vmatpush1.bf16.msra.mxu0 0
        %1106 = vmatprep.subr.bf16.mxu0 0
        %1107 = vmatpush1.bf16.msra.mxu0 0
        %1108 = vmatprep.mubr.bf16.mxu0 0
        %1109 = vmatmul.mubr.bf16.gmra.mrb[0].mxu0 %v1071
        %v1110 = vpop.f32.mrb[0].mxu0
        %v1111 = vadd.f32 0.0, %v1110
        %v1112 = vpop.f32.mrb[0].mxu0
        %v1113 = vpop.f32.mrb[0].mxu0
        %v1114 = vadd.f32 0.0, %v1113
        %v1115 = vpop.f32.mrb[0].mxu0
        %1116 = vmatprep.mubr.bf16.mxu0 0
        %1117 = vmatmul.mubr.bf16.gmra.mrb[0].mxu0 %v1074
        %v1118 = vpop.f32.mrb[0].mxu0
        %v1119 = vadd.f32 0.0, %v1118
        %v1120 = vpop.f32.mrb[0].mxu0
        %v1121 = vpop.f32.mrb[0].mxu0
        %v1122 = vadd.f32 0.0, %v1121
        %v1123 = vpop.f32.mrb[0].mxu0
        %1124 = vdwg.mxu0
        %s1125 = scalar_lea.vmem %s3, 16
        %v1126 = vld [vmem:[%s1125] sm:$0xf]
        %v1127 = vld [vmem:[%s1125 + $0x4] sm:$0xf]
        %v1128 = vld [vmem:[%s1125 + $0x8] sm:$0xf]
        %v1129 = vld [vmem:[%s1125 + $0xc] sm:$0xf]
        %v1134 = vunpack.c.l.b16 %v1126
        %v1135 = vunpack.c.l.b16 %v1127
        %v1136 = vunpack.c.l.b16 %v1128
        %v1137 = vunpack.c.l.b16 %v1129
        %v1138 = vpack.c.b16 %v1135, %v1134
        %v1139 = vpack.c.b16 %v1137, %v1136
        %v1141 = vsel %vm339, %v1138, 0
        %v1144 = vsel %vm339, %v1139, 0
        %1146 = vmatprep.subr.bf16.mxu0 %v432
        %1147 = vmatpush1.bf16.msra.mxu0 %v429
        %1148 = vmatprep.subr.bf16.mxu0 0
        %1149 = vmatpush1.bf16.msra.mxu0 0
        %1150 = vmatprep.subr.bf16.mxu0 0
        %1151 = vmatpush1.bf16.msra.mxu0 0
        %1152 = vmatprep.subr.bf16.mxu0 0
        %1153 = vmatpush1.bf16.msra.mxu0 0
        %1154 = vmatprep.subr.bf16.mxu0 0
        %1155 = vmatpush1.bf16.msra.mxu0 0
        %1156 = vmatprep.subr.bf16.mxu0 0
        %1157 = vmatpush1.bf16.msra.mxu0 0
        %1158 = vmatprep.subr.bf16.mxu0 0
        %1159 = vmatpush1.bf16.msra.mxu0 0
        %1160 = vmatprep.subr.bf16.mxu0 0
        %1161 = vmatpush1.bf16.msra.mxu0 0
        %1162 = vmatprep.subr.bf16.mxu0 0
        %1163 = vmatpush1.bf16.msra.mxu0 0
        %1164 = vmatprep.subr.bf16.mxu0 0
        %1165 = vmatpush1.bf16.msra.mxu0 0
        %1166 = vmatprep.subr.bf16.mxu0 0
        %1167 = vmatpush1.bf16.msra.mxu0 0
        %1168 = vmatprep.subr.bf16.mxu0 0
        %1169 = vmatpush1.bf16.msra.mxu0 0
        %1170 = vmatprep.subr.bf16.mxu0 0
        %1171 = vmatpush1.bf16.msra.mxu0 0
        %1172 = vmatprep.subr.bf16.mxu0 0
        %1173 = vmatpush1.bf16.msra.mxu0 0
        %1174 = vmatprep.subr.bf16.mxu0 0
        %1175 = vmatpush1.bf16.msra.mxu0 0
        %1176 = vmatprep.subr.bf16.mxu0 0
        %1177 = vmatpush1.bf16.msra.mxu0 0
        %1178 = vmatprep.mubr.bf16.mxu0 0
        %1179 = vmatmul.mubr.bf16.gmra.mrb[0].mxu0 %v1141
        %v1180 = vpop.f32.mrb[0].mxu0
        %v1181 = vadd.f32 0.0, %v1180
        %v1182 = vpop.f32.mrb[0].mxu0
        %v1183 = vadd.f32 0.0, %v1182
        %v1184 = vpop.f32.mrb[0].mxu0
        %v1185 = vadd.f32 0.0, %v1184
        %v1186 = vpop.f32.mrb[0].mxu0
        %v1187 = vadd.f32 0.0, %v1186
        %1188 = vmatprep.mubr.bf16.mxu0 0
        %1189 = vmatmul.mubr.bf16.gmra.mrb[0].mxu0 %v1144
        %v1190 = vpop.f32.mrb[0].mxu0
        %v1191 = vadd.f32 0.0, %v1190
        %v1192 = vpop.f32.mrb[0].mxu0
        %v1193 = vadd.f32 0.0, %v1192
        %v1194 = vpop.f32.mrb[0].mxu0
        %v1195 = vadd.f32 0.0, %v1194
        %v1196 = vpop.f32.mrb[0].mxu0
        %v1197 = vadd.f32 0.0, %v1196
        %1198 = vdwg.mxu0
        %s1199 = scalar_lea.vmem %s4, 16
        %v1200 = vld [vmem:[%s1199] sm:$0xf]
        %v1201 = vld [vmem:[%s1199 + $0x4] sm:$0xf]
        %v1202 = vld [vmem:[%s1199 + $0x8] sm:$0xf]
        %v1203 = vld [vmem:[%s1199 + $0xc] sm:$0xf]
        %v1208 = vunpack.c.l.b16 %v1200
        %v1209 = vunpack.c.l.b16 %v1201
        %v1210 = vunpack.c.l.b16 %v1202
        %v1211 = vunpack.c.l.b16 %v1203
        %v1212 = vpack.c.b16 %v1209, %v1208
        %v1213 = vpack.c.b16 %v1211, %v1210
        %v1215 = vsel %vm339, %v1212, 0
        %v1218 = vsel %vm339, %v1213, 0
        %1220 = vmatprep.subr.bf16.mxu0 %v432
        %1221 = vmatpush1.bf16.msra.mxu0 %v429
        %1222 = vmatprep.subr.bf16.mxu0 0
        %1223 = vmatpush1.bf16.msra.mxu0 0
        %1224 = vmatprep.subr.bf16.mxu0 0
        %1225 = vmatpush1.bf16.msra.mxu0 0
        %1226 = vmatprep.subr.bf16.mxu0 0
        %1227 = vmatpush1.bf16.msra.mxu0 0
        %1228 = vmatprep.subr.bf16.mxu0 0
        %1229 = vmatpush1.bf16.msra.mxu0 0
        %1230 = vmatprep.subr.bf16.mxu0 0
        %1231 = vmatpush1.bf16.msra.mxu0 0
        %1232 = vmatprep.subr.bf16.mxu0 0
        %1233 = vmatpush1.bf16.msra.mxu0 0
        %1234 = vmatprep.subr.bf16.mxu0 0
        %1235 = vmatpush1.bf16.msra.mxu0 0
        %1236 = vmatprep.subr.bf16.mxu0 0
        %1237 = vmatpush1.bf16.msra.mxu0 0
        %1238 = vmatprep.subr.bf16.mxu0 0
        %1239 = vmatpush1.bf16.msra.mxu0 0
        %1240 = vmatprep.subr.bf16.mxu0 0
        %1241 = vmatpush1.bf16.msra.mxu0 0
        %1242 = vmatprep.subr.bf16.mxu0 0
        %1243 = vmatpush1.bf16.msra.mxu0 0
        %1244 = vmatprep.subr.bf16.mxu0 0
        %1245 = vmatpush1.bf16.msra.mxu0 0
        %1246 = vmatprep.subr.bf16.mxu0 0
        %1247 = vmatpush1.bf16.msra.mxu0 0
        %1248 = vmatprep.subr.bf16.mxu0 0
        %1249 = vmatpush1.bf16.msra.mxu0 0
        %1250 = vmatprep.subr.bf16.mxu0 0
        %1251 = vmatpush1.bf16.msra.mxu0 0
        %1252 = vmatprep.mubr.bf16.mxu0 0
        %1253 = vmatmul.mubr.bf16.gmra.mrb[0].mxu0 %v1215
        %v1254 = vpop.f32.mrb[0].mxu0
        %v1255 = vadd.f32 0.0, %v1254
        %v1256 = vpop.f32.mrb[0].mxu0
        %v1257 = vadd.f32 0.0, %v1256
        %v1258 = vpop.f32.mrb[0].mxu0
        %v1259 = vadd.f32 0.0, %v1258
        %v1260 = vpop.f32.mrb[0].mxu0
        %v1261 = vadd.f32 0.0, %v1260
        %1262 = vmatprep.mubr.bf16.mxu0 0
        %1263 = vmatmul.mubr.bf16.gmra.mrb[0].mxu0 %v1218
        %v1264 = vpop.f32.mrb[0].mxu0
        %v1265 = vadd.f32 0.0, %v1264
        %v1266 = vpop.f32.mrb[0].mxu0
        %v1267 = vadd.f32 0.0, %v1266
        %v1268 = vpop.f32.mrb[0].mxu0
        %v1269 = vadd.f32 0.0, %v1268
        %v1270 = vpop.f32.mrb[0].mxu0
        %v1271 = vadd.f32 0.0, %v1270
        %1272 = vdwg.mxu0
        %v1273 = vpack.c.bf16 %v1185, %v1181
        %v1274 = vpack.c.bf16 %v1187, %v1183
        %v1275 = vpack.c.bf16 %v1195, %v1191
        %v1276 = vpack.c.bf16 %v1197, %v1193
        %v1277 = vpack.c.bf16 %v1114, %v1111
        %v1278 = vpack.c.bf16 %v1122, %v1119
        %1279 = vxpose.xlu0.c.b16.start [1/8] %v1273, 128
        %1280 = vxpose.xlu0.c.b16.cont [2/8] %v1275, 128
        %1281 = vxpose.xlu0.c.b16.cont [3/8] 0, 128
        %1282 = vxpose.xlu0.c.b16.cont [4/8] 0, 128
        %1283 = vxpose.xlu0.c.b16.cont [5/8] 0, 128
        %1284 = vxpose.xlu0.c.b16.cont [6/8] 0, 128
        %1285 = vxpose.xlu0.c.b16.cont [7/8] 0, 128
        %1286 = vxpose.xlu0.c.b16.end [8/8] 0, 128
        %v1287 = vpop.trf.xlu0
        %v1288 = vpop.trf.xlu0
        %v1289 = vpop.trf.xlu0
        %v1290 = vpop.trf.xlu0
        %v1291 = vpop.trf.xlu0
        %v1292 = vpop.trf.xlu0
        %v1293 = vpop.trf.xlu0
        %v1294 = vpop.trf.xlu0
        %1295 = vxpose.xlu0.c.b16.start [1/8] %v1274, 128
        %1296 = vxpose.xlu0.c.b16.cont [2/8] %v1276, 128
        %1297 = vxpose.xlu0.c.b16.cont [3/8] 0, 128
        %1298 = vxpose.xlu0.c.b16.cont [4/8] 0, 128
        %1299 = vxpose.xlu0.c.b16.cont [5/8] 0, 128
        %1300 = vxpose.xlu0.c.b16.cont [6/8] 0, 128
        %1301 = vxpose.xlu0.c.b16.cont [7/8] 0, 128
        %1302 = vxpose.xlu0.c.b16.end [8/8] 0, 128
        %v1303 = vpop.trf.xlu0
        %v1304 = vpop.trf.xlu0
        %v1305 = vpop.trf.xlu0
        %v1306 = vpop.trf.xlu0
        %v1307 = vpop.trf.xlu0
        %v1308 = vpop.trf.xlu0
        %v1309 = vpop.trf.xlu0
        %v1310 = vpop.trf.xlu0
        %v1312 = vsel %vm598, %v1287, 0
        %v1315 = vsel %vm598, %v1288, 0
        %v1318 = vsel %vm598, %v1289, 0
        %v1321 = vsel %vm598, %v1290, 0
        %v1324 = vsel %vm598, %v1291, 0
        %v1327 = vsel %vm598, %v1292, 0
        %v1330 = vsel %vm598, %v1293, 0
        %v1333 = vsel %vm598, %v1294, 0
        %v1336 = vsel %vm598, %v1303, 0
        %v1339 = vsel %vm598, %v1304, 0
        %v1342 = vsel %vm598, %v1305, 0
        %v1345 = vsel %vm598, %v1306, 0
        %v1348 = vsel %vm598, %v1307, 0
        %v1351 = vsel %vm598, %v1308, 0
        %v1354 = vsel %vm598, %v1309, 0
        %v1357 = vsel %vm598, %v1310, 0
        %1359 = vmatprep.subr.bf16.mxu0 0
        %1360 = vmatpush1.bf16.msra.mxu0 %v1277
        %1361 = vmatprep.subr.bf16.mxu0 0
        %1362 = vmatpush1.bf16.msra.mxu0 %v1278
        %1363 = vmatprep.subr.bf16.mxu0 0
        %1364 = vmatpush1.bf16.msra.mxu0 0
        %1365 = vmatprep.subr.bf16.mxu0 0
        %1366 = vmatpush1.bf16.msra.mxu0 0
        %1367 = vmatprep.subr.bf16.mxu0 0
        %1368 = vmatpush1.bf16.msra.mxu0 0
        %1369 = vmatprep.subr.bf16.mxu0 0
        %1370 = vmatpush1.bf16.msra.mxu0 0
        %1371 = vmatprep.subr.bf16.mxu0 0
        %1372 = vmatpush1.bf16.msra.mxu0 0
        %1373 = vmatprep.subr.bf16.mxu0 0
        %1374 = vmatpush1.bf16.msra.mxu0 0
        %1375 = vmatprep.subr.bf16.mxu0 0
        %1376 = vmatpush1.bf16.msra.mxu0 0
        %1377 = vmatprep.subr.bf16.mxu0 0
        %1378 = vmatpush1.bf16.msra.mxu0 0
        %1379 = vmatprep.subr.bf16.mxu0 0
        %1380 = vmatpush1.bf16.msra.mxu0 0
        %1381 = vmatprep.subr.bf16.mxu0 0
        %1382 = vmatpush1.bf16.msra.mxu0 0
        %1383 = vmatprep.subr.bf16.mxu0 0
        %1384 = vmatpush1.bf16.msra.mxu0 0
        %1385 = vmatprep.subr.bf16.mxu0 0
        %1386 = vmatpush1.bf16.msra.mxu0 0
        %1387 = vmatprep.subr.bf16.mxu0 0
        %1388 = vmatpush1.bf16.msra.mxu0 0
        %1389 = vmatprep.subr.bf16.mxu0 0
        %1390 = vmatpush1.bf16.msra.mxu0 0
        %1391 = vmatprep.mubr.bf16.mxu0 0
        %1392 = vmatmul.mubr.bf16.gmra.mrb[0].mxu0 %v1312
        %v1393 = vpop.f32.mrb[0].mxu0
        %v1394 = vadd.f32 0.0, %v1393
        %v1395 = vpop.f32.mrb[0].mxu0
        %v1396 = vpop.f32.mrb[0].mxu0
        %v1397 = vadd.f32 0.0, %v1396
        %v1398 = vpop.f32.mrb[0].mxu0
        %1399 = vmatprep.mubr.bf16.mxu0 0
        %1400 = vmatmul.mubr.bf16.gmra.mrb[0].mxu0 %v1315
        %v1401 = vpop.f32.mrb[0].mxu0
        %v1402 = vadd.f32 0.0, %v1401
        %v1403 = vpop.f32.mrb[0].mxu0
        %v1404 = vpop.f32.mrb[0].mxu0
        %v1405 = vadd.f32 0.0, %v1404
        %v1406 = vpop.f32.mrb[0].mxu0
        %1407 = vmatprep.mubr.bf16.mxu0 0
        %1408 = vmatmul.mubr.bf16.gmra.mrb[0].mxu0 %v1318
        %v1409 = vpop.f32.mrb[0].mxu0
        %v1410 = vadd.f32 0.0, %v1409
        %v1411 = vpop.f32.mrb[0].mxu0
        %v1412 = vpop.f32.mrb[0].mxu0
        %v1413 = vadd.f32 0.0, %v1412
        %v1414 = vpop.f32.mrb[0].mxu0
        %1415 = vmatprep.mubr.bf16.mxu0 0
        %1416 = vmatmul.mubr.bf16.gmra.mrb[0].mxu0 %v1321
        %v1417 = vpop.f32.mrb[0].mxu0
        %v1418 = vadd.f32 0.0, %v1417
        %v1419 = vpop.f32.mrb[0].mxu0
        %v1420 = vpop.f32.mrb[0].mxu0
        %v1421 = vadd.f32 0.0, %v1420
        %v1422 = vpop.f32.mrb[0].mxu0
        %1423 = vmatprep.mubr.bf16.mxu0 0
        %1424 = vmatmul.mubr.bf16.gmra.mrb[0].mxu0 %v1324
        %v1425 = vpop.f32.mrb[0].mxu0
        %v1426 = vadd.f32 0.0, %v1425
        %v1427 = vpop.f32.mrb[0].mxu0
        %v1428 = vpop.f32.mrb[0].mxu0
        %v1429 = vadd.f32 0.0, %v1428
        %v1430 = vpop.f32.mrb[0].mxu0
        %1431 = vmatprep.mubr.bf16.mxu0 0
        %1432 = vmatmul.mubr.bf16.gmra.mrb[0].mxu0 %v1327
        %v1433 = vpop.f32.mrb[0].mxu0
        %v1434 = vadd.f32 0.0, %v1433
        %v1435 = vpop.f32.mrb[0].mxu0
        %v1436 = vpop.f32.mrb[0].mxu0
        %v1437 = vadd.f32 0.0, %v1436
        %v1438 = vpop.f32.mrb[0].mxu0
        %1439 = vmatprep.mubr.bf16.mxu0 0
        %1440 = vmatmul.mubr.bf16.gmra.mrb[0].mxu0 %v1330
        %v1441 = vpop.f32.mrb[0].mxu0
        %v1442 = vadd.f32 0.0, %v1441
        %v1443 = vpop.f32.mrb[0].mxu0
        %v1444 = vpop.f32.mrb[0].mxu0
        %v1445 = vadd.f32 0.0, %v1444
        %v1446 = vpop.f32.mrb[0].mxu0
        %1447 = vmatprep.mubr.bf16.mxu0 0
        %1448 = vmatmul.mubr.bf16.gmra.mrb[0].mxu0 %v1333
        %v1449 = vpop.f32.mrb[0].mxu0
        %v1450 = vadd.f32 0.0, %v1449
        %v1451 = vpop.f32.mrb[0].mxu0
        %v1452 = vpop.f32.mrb[0].mxu0
        %v1453 = vadd.f32 0.0, %v1452
        %v1454 = vpop.f32.mrb[0].mxu0
        %1455 = vmatprep.mubr.bf16.mxu0 0
        %1456 = vmatmul.mubr.bf16.gmra.mrb[0].mxu0 %v1336
        %v1457 = vpop.f32.mrb[0].mxu0
        %v1458 = vadd.f32 0.0, %v1457
        %v1459 = vpop.f32.mrb[0].mxu0
        %v1460 = vpop.f32.mrb[0].mxu0
        %v1461 = vadd.f32 0.0, %v1460
        %v1462 = vpop.f32.mrb[0].mxu0
        %1463 = vmatprep.mubr.bf16.mxu0 0
        %1464 = vmatmul.mubr.bf16.gmra.mrb[0].mxu0 %v1339
        %v1465 = vpop.f32.mrb[0].mxu0
        %v1466 = vadd.f32 0.0, %v1465
        %v1467 = vpop.f32.mrb[0].mxu0
        %v1468 = vpop.f32.mrb[0].mxu0
        %v1469 = vadd.f32 0.0, %v1468
        %v1470 = vpop.f32.mrb[0].mxu0
        %1471 = vmatprep.mubr.bf16.mxu0 0
        %1472 = vmatmul.mubr.bf16.gmra.mrb[0].mxu0 %v1342
        %v1473 = vpop.f32.mrb[0].mxu0
        %v1474 = vadd.f32 0.0, %v1473
        %v1475 = vpop.f32.mrb[0].mxu0
        %v1476 = vpop.f32.mrb[0].mxu0
        %v1477 = vadd.f32 0.0, %v1476
        %v1478 = vpop.f32.mrb[0].mxu0
        %1479 = vmatprep.mubr.bf16.mxu0 0
        %1480 = vmatmul.mubr.bf16.gmra.mrb[0].mxu0 %v1345
        %v1481 = vpop.f32.mrb[0].mxu0
        %v1482 = vadd.f32 0.0, %v1481
        %v1483 = vpop.f32.mrb[0].mxu0
        %v1484 = vpop.f32.mrb[0].mxu0
        %v1485 = vadd.f32 0.0, %v1484
        %v1486 = vpop.f32.mrb[0].mxu0
        %1487 = vmatprep.mubr.bf16.mxu0 0
        %1488 = vmatmul.mubr.bf16.gmra.mrb[0].mxu0 %v1348
        %v1489 = vpop.f32.mrb[0].mxu0
        %v1490 = vadd.f32 0.0, %v1489
        %v1491 = vpop.f32.mrb[0].mxu0
        %v1492 = vpop.f32.mrb[0].mxu0
        %v1493 = vadd.f32 0.0, %v1492
        %v1494 = vpop.f32.mrb[0].mxu0
        %1495 = vmatprep.mubr.bf16.mxu0 0
        %1496 = vmatmul.mubr.bf16.gmra.mrb[0].mxu0 %v1351
        %v1497 = vpop.f32.mrb[0].mxu0
        %v1498 = vadd.f32 0.0, %v1497
        %v1499 = vpop.f32.mrb[0].mxu0
        %v1500 = vpop.f32.mrb[0].mxu0
        %v1501 = vadd.f32 0.0, %v1500
        %v1502 = vpop.f32.mrb[0].mxu0
        %1503 = vmatprep.mubr.bf16.mxu0 0
        %1504 = vmatmul.mubr.bf16.gmra.mrb[0].mxu0 %v1354
        %v1505 = vpop.f32.mrb[0].mxu0
        %v1506 = vadd.f32 0.0, %v1505
        %v1507 = vpop.f32.mrb[0].mxu0
        %v1508 = vpop.f32.mrb[0].mxu0
        %v1509 = vadd.f32 0.0, %v1508
        %v1510 = vpop.f32.mrb[0].mxu0
        %1511 = vmatprep.mubr.bf16.mxu0 0
        %1512 = vmatmul.mubr.bf16.gmra.mrb[0].mxu0 %v1357
        %v1513 = vpop.f32.mrb[0].mxu0
        %v1514 = vadd.f32 0.0, %v1513
        %v1515 = vpop.f32.mrb[0].mxu0
        %v1516 = vpop.f32.mrb[0].mxu0
        %v1517 = vadd.f32 0.0, %v1516
        %v1518 = vpop.f32.mrb[0].mxu0
        %1519 = vdwg.mxu0
        %v1520 = vmax.f32 %v1394, %v1410
        %v1521 = vmax.f32 %v1397, %v1413
        %v1522 = vmax.f32 %v1402, %v1418
        %v1523 = vmax.f32 %v1405, %v1421
        %v1524 = vmax.f32 %v1520, %v1426
        %v1525 = vmax.f32 %v1521, %v1429
        %v1526 = vmax.f32 %v1522, %v1434
        %v1527 = vmax.f32 %v1523, %v1437
        %v1528 = vmax.f32 %v1524, %v1442
        %v1529 = vmax.f32 %v1525, %v1445
        %v1530 = vmax.f32 %v1526, %v1450
        %v1531 = vmax.f32 %v1527, %v1453
        %v1532 = vmax.f32 %v1528, %v1458
        %v1533 = vmax.f32 %v1529, %v1461
        %v1534 = vmax.f32 %v1530, %v1466
        %v1535 = vmax.f32 %v1531, %v1469
        %v1536 = vmax.f32 %v1532, %v1474
        %v1537 = vmax.f32 %v1533, %v1477
        %v1538 = vmax.f32 %v1534, %v1482
        %v1539 = vmax.f32 %v1535, %v1485
        %v1540 = vmax.f32 %v1536, %v1490
        %v1541 = vmax.f32 %v1537, %v1493
        %v1542 = vmax.f32 %v1538, %v1498
        %v1543 = vmax.f32 %v1539, %v1501
        %v1544 = vmax.f32 %v1540, %v1506
        %v1545 = vmax.f32 %v1541, %v1509
        %v1546 = vmax.f32 %v1542, %v1514
        %v1547 = vmax.f32 %v1543, %v1517
        %v1548 = vmax.f32 %v1544, %v1545
        %v1549 = vmax.f32 %v1546, %v1547
        %v1550 = vmax.f32 %v1548, %v1549
        %v1551 = vrot.slane %v1550, 4
        %v1552 = vmax.f32 %v1550, %v1551
        %v1553 = vrot.slane %v1552, 2
        %v1554 = vmax.f32 %v1552, %v1553
        %v1555 = vrot.slane %v1554, 1
        %v1556 = vmax.f32 %v1554, %v1555
        %v1557 = vsub.f32 %v1394, %v1556
        %v1558 = vsub.f32 %v1397, %v1556
        %v1559 = vsub.f32 %v1402, %v1556
        %v1560 = vsub.f32 %v1405, %v1556
        %v1561 = vsub.f32 %v1410, %v1556
        %v1562 = vsub.f32 %v1413, %v1556
        %v1563 = vsub.f32 %v1418, %v1556
        %v1564 = vsub.f32 %v1421, %v1556
        %v1565 = vsub.f32 %v1426, %v1556
        %v1566 = vsub.f32 %v1429, %v1556
        %v1567 = vsub.f32 %v1434, %v1556
        %v1568 = vsub.f32 %v1437, %v1556
        %v1569 = vsub.f32 %v1442, %v1556
        %v1570 = vsub.f32 %v1445, %v1556
        %v1571 = vsub.f32 %v1450, %v1556
        %v1572 = vsub.f32 %v1453, %v1556
        %v1573 = vsub.f32 %v1458, %v1556
        %v1574 = vsub.f32 %v1461, %v1556
        %v1575 = vsub.f32 %v1466, %v1556
        %v1576 = vsub.f32 %v1469, %v1556
        %v1577 = vsub.f32 %v1474, %v1556
        %v1578 = vsub.f32 %v1477, %v1556
        %v1579 = vsub.f32 %v1482, %v1556
        %v1580 = vsub.f32 %v1485, %v1556
        %v1581 = vsub.f32 %v1490, %v1556
        %v1582 = vsub.f32 %v1493, %v1556
        %v1583 = vsub.f32 %v1498, %v1556
        %v1584 = vsub.f32 %v1501, %v1556
        %v1585 = vsub.f32 %v1506, %v1556
        %v1586 = vsub.f32 %v1509, %v1556
        %v1587 = vsub.f32 %v1514, %v1556
        %v1588 = vsub.f32 %v1517, %v1556
        %v1589 = vmul.f32 %v1557, 1.442695
        %v1590 = vpow.pop %v1589
        %v1591 = vmul.f32 %v1558, 1.442695
        %v1592 = vpow.pop %v1591
        %v1593 = vmul.f32 %v1559, 1.442695
        %v1594 = vpow.pop %v1593
        %v1595 = vmul.f32 %v1560, 1.442695
        %v1596 = vpow.pop %v1595
        %v1597 = vmul.f32 %v1561, 1.442695
        %v1598 = vpow.pop %v1597
        %v1599 = vmul.f32 %v1562, 1.442695
        %v1600 = vpow.pop %v1599
        %v1601 = vmul.f32 %v1563, 1.442695
        %v1602 = vpow.pop %v1601
        %v1603 = vmul.f32 %v1564, 1.442695
        %v1604 = vpow.pop %v1603
        %v1605 = vmul.f32 %v1565, 1.442695
        %v1606 = vpow.pop %v1605
        %v1607 = vmul.f32 %v1566, 1.442695
        %v1608 = vpow.pop %v1607
        %v1609 = vmul.f32 %v1567, 1.442695
        %v1610 = vpow.pop %v1609
        %v1611 = vmul.f32 %v1568, 1.442695
        %v1612 = vpow.pop %v1611
        %v1613 = vmul.f32 %v1569, 1.442695
        %v1614 = vpow.pop %v1613
        %v1615 = vmul.f32 %v1570, 1.442695
        %v1616 = vpow.pop %v1615
        %v1617 = vmul.f32 %v1571, 1.442695
        %v1618 = vpow.pop %v1617
        %v1619 = vmul.f32 %v1572, 1.442695
        %v1620 = vpow.pop %v1619
        %v1621 = vmul.f32 %v1573, 1.442695
        %v1622 = vpow.pop %v1621
        %v1623 = vmul.f32 %v1574, 1.442695
        %v1624 = vpow.pop %v1623
        %v1625 = vmul.f32 %v1575, 1.442695
        %v1626 = vpow.pop %v1625
        %v1627 = vmul.f32 %v1576, 1.442695
        %v1628 = vpow.pop %v1627
        %v1629 = vmul.f32 %v1577, 1.442695
        %v1630 = vpow.pop %v1629
        %v1631 = vmul.f32 %v1578, 1.442695
        %v1632 = vpow.pop %v1631
        %v1633 = vmul.f32 %v1579, 1.442695
        %v1634 = vpow.pop %v1633
        %v1635 = vmul.f32 %v1580, 1.442695
        %v1636 = vpow.pop %v1635
        %v1637 = vmul.f32 %v1581, 1.442695
        %v1638 = vpow.pop %v1637
        %v1639 = vmul.f32 %v1582, 1.442695
        %v1640 = vpow.pop %v1639
        %v1641 = vmul.f32 %v1583, 1.442695
        %v1642 = vpow.pop %v1641
        %v1643 = vmul.f32 %v1584, 1.442695
        %v1644 = vpow.pop %v1643
        %v1645 = vmul.f32 %v1585, 1.442695
        %v1646 = vpow.pop %v1645
        %v1647 = vmul.f32 %v1586, 1.442695
        %v1648 = vpow.pop %v1647
        %v1649 = vmul.f32 %v1587, 1.442695
        %v1650 = vpow.pop %v1649
        %v1651 = vmul.f32 %v1588, 1.442695
        %v1652 = vpow.pop %v1651
        %v1653 = vadd.f32 %v1590, %v1592
        %v1654 = vadd.f32 %v1653, %v1594
        %v1655 = vadd.f32 %v1654, %v1596
        %v1656 = vadd.f32 %v1655, %v1598
        %v1657 = vadd.f32 %v1656, %v1600
        %v1658 = vadd.f32 %v1657, %v1602
        %v1659 = vadd.f32 %v1658, %v1604
        %v1660 = vadd.f32 %v1659, %v1606
        %v1661 = vadd.f32 %v1660, %v1608
        %v1662 = vadd.f32 %v1661, %v1610
        %v1663 = vadd.f32 %v1662, %v1612
        %v1664 = vadd.f32 %v1663, %v1614
        %v1665 = vadd.f32 %v1664, %v1616
        %v1666 = vadd.f32 %v1665, %v1618
        %v1667 = vadd.f32 %v1666, %v1620
        %v1668 = vadd.f32 %v1667, %v1622
        %v1669 = vadd.f32 %v1668, %v1624
        %v1670 = vadd.f32 %v1669, %v1626
        %v1671 = vadd.f32 %v1670, %v1628
        %v1672 = vadd.f32 %v1671, %v1630
        %v1673 = vadd.f32 %v1672, %v1632
        %v1674 = vadd.f32 %v1673, %v1634
        %v1675 = vadd.f32 %v1674, %v1636
        %v1676 = vadd.f32 %v1675, %v1638
        %v1677 = vadd.f32 %v1676, %v1640
        %v1678 = vadd.f32 %v1677, %v1642
        %v1679 = vadd.f32 %v1678, %v1644
        %v1680 = vadd.f32 %v1679, %v1646
        %v1681 = vadd.f32 %v1680, %v1648
        %v1682 = vadd.f32 %v1681, %v1650
        %v1683 = vadd.f32 %v1682, %v1652
        %v1684 = vrot.slane %v1683, 4
        %v1685 = vadd.f32 %v1683, %v1684
        %v1686 = vrot.slane %v1685, 2
        %v1687 = vadd.f32 %v1685, %v1686
        %v1688 = vrot.slane %v1687, 1
        %v1689 = vadd.f32 %v1687, %v1688
        %v1690 = vrcp.pop %v1689
        %v1691 = vpack.c.bf16 %v1259, %v1255
        %v1692 = vpack.c.bf16 %v1261, %v1257
        %v1693 = vpack.c.bf16 %v1269, %v1265
        %v1694 = vpack.c.bf16 %v1271, %v1267
        %v1695 = vpack.c.bf16 %v1592, %v1590
        %v1696 = vpack.c.bf16 %v1596, %v1594
        %v1697 = vpack.c.bf16 %v1600, %v1598
        %v1698 = vpack.c.bf16 %v1604, %v1602
        %v1699 = vpack.c.bf16 %v1608, %v1606
        %v1700 = vpack.c.bf16 %v1612, %v1610
        %v1701 = vpack.c.bf16 %v1616, %v1614
        %v1702 = vpack.c.bf16 %v1620, %v1618
        %v1703 = vpack.c.bf16 %v1624, %v1622
        %v1704 = vpack.c.bf16 %v1628, %v1626
        %v1705 = vpack.c.bf16 %v1632, %v1630
        %v1706 = vpack.c.bf16 %v1636, %v1634
        %v1707 = vpack.c.bf16 %v1640, %v1638
        %v1708 = vpack.c.bf16 %v1644, %v1642
        %v1709 = vpack.c.bf16 %v1648, %v1646
        %v1710 = vpack.c.bf16 %v1652, %v1650
        %1711 = vmatprep.subr.bf16.mxu0 0
        %1712 = vmatpush1.bf16.msra.mxu0 %v1695
        %1713 = vmatprep.subr.bf16.mxu0 0
        %1714 = vmatpush1.bf16.msra.mxu0 %v1696
        %1715 = vmatprep.subr.bf16.mxu0 0
        %1716 = vmatpush1.bf16.msra.mxu0 %v1697
        %1717 = vmatprep.subr.bf16.mxu0 0
        %1718 = vmatpush1.bf16.msra.mxu0 %v1698
        %1719 = vmatprep.subr.bf16.mxu0 0
        %1720 = vmatpush1.bf16.msra.mxu0 %v1699
        %1721 = vmatprep.subr.bf16.mxu0 0
        %1722 = vmatpush1.bf16.msra.mxu0 %v1700
        %1723 = vmatprep.subr.bf16.mxu0 0
        %1724 = vmatpush1.bf16.msra.mxu0 %v1701
        %1725 = vmatprep.subr.bf16.mxu0 0
        %1726 = vmatpush1.bf16.msra.mxu0 %v1702
        %1727 = vmatprep.subr.bf16.mxu0 0
        %1728 = vmatpush1.bf16.msra.mxu0 %v1703
        %1729 = vmatprep.subr.bf16.mxu0 0
        %1730 = vmatpush1.bf16.msra.mxu0 %v1704
        %1731 = vmatprep.subr.bf16.mxu0 0
        %1732 = vmatpush1.bf16.msra.mxu0 %v1705
        %1733 = vmatprep.subr.bf16.mxu0 0
        %1734 = vmatpush1.bf16.msra.mxu0 %v1706
        %1735 = vmatprep.subr.bf16.mxu0 0
        %1736 = vmatpush1.bf16.msra.mxu0 %v1707
        %1737 = vmatprep.subr.bf16.mxu0 0
        %1738 = vmatpush1.bf16.msra.mxu0 %v1708
        %1739 = vmatprep.subr.bf16.mxu0 0
        %1740 = vmatpush1.bf16.msra.mxu0 %v1709
        %1741 = vmatprep.subr.bf16.mxu0 0
        %1742 = vmatpush1.bf16.msra.mxu0 %v1710
        %1743 = vmatprep.mubr.bf16.mxu0 %v1692
        %1744 = vmatmul.mubr.bf16.gmra.mrb[0].mxu0 %v1691
        %v1745 = vpop.f32.mrb[0].mxu0
        %v1746 = vadd.f32 0.0, %v1745
        %v1747 = vpop.f32.mrb[0].mxu0
        %v1748 = vpop.f32.mrb[0].mxu0
        %v1749 = vadd.f32 0.0, %v1748
        %v1750 = vpop.f32.mrb[0].mxu0
        %1751 = vmatprep.mubr.bf16.mxu0 %v1694
        %1752 = vmatmul.mubr.bf16.gmra.mrb[0].mxu0 %v1693
        %v1753 = vpop.f32.mrb[0].mxu0
        %v1754 = vadd.f32 0.0, %v1753
        %v1755 = vpop.f32.mrb[0].mxu0
        %v1756 = vpop.f32.mrb[0].mxu0
        %v1757 = vadd.f32 0.0, %v1756
        %v1758 = vpop.f32.mrb[0].mxu0
        %1759 = vdwg.mxu0
        %v1760 = vmul.f32 %v1746, %v1690
        %v1761 = vmul.f32 %v1749, %v1690
        %v1762 = vmul.f32 %v1754, %v1690
        %v1763 = vmul.f32 %v1757, %v1690
        %s1764 = scalar_lea.vmem %s5, 2
        %v1765 = vld [vmem:[%s1764] sm:$0x3]
        %v1766 = vpack.c.bf16 %v1761, %v1760
        %v1767 = vpack.c.bf16 %v1763, %v1762
        %v1769 = vsel %vm598, %v1765, 0
        %1771 = vmatprep.subr.bf16.mxu0 0
        %1772 = vmatpush1.bf16.msra.mxu0 %v1766
        %1773 = vmatprep.subr.bf16.mxu0 0
        %1774 = vmatpush1.bf16.msra.mxu0 %v1767
        %1775 = vmatprep.subr.bf16.mxu0 0
        %1776 = vmatpush1.bf16.msra.mxu0 0
        %1777 = vmatprep.subr.bf16.mxu0 0
        %1778 = vmatpush1.bf16.msra.mxu0 0
        %1779 = vmatprep.subr.bf16.mxu0 0
        %1780 = vmatpush1.bf16.msra.mxu0 0
        %1781 = vmatprep.subr.bf16.mxu0 0
        %1782 = vmatpush1.bf16.msra.mxu0 0
        %1783 = vmatprep.subr.bf16.mxu0 0
        %1784 = vmatpush1.bf16.msra.mxu0 0
        %1785 = vmatprep.subr.bf16.mxu0 0
        %1786 = vmatpush1.bf16.msra.mxu0 0
        %1787 = vmatprep.subr.bf16.mxu0 0
        %1788 = vmatpush1.bf16.msra.mxu0 0
        %1789 = vmatprep.subr.bf16.mxu0 0
        %1790 = vmatpush1.bf16.msra.mxu0 0
        %1791 = vmatprep.subr.bf16.mxu0 0
        %1792 = vmatpush1.bf16.msra.mxu0 0
        %1793 = vmatprep.subr.bf16.mxu0 0
        %1794 = vmatpush1.bf16.msra.mxu0 0
        %1795 = vmatprep.subr.bf16.mxu0 0
        %1796 = vmatpush1.bf16.msra.mxu0 0
        %1797 = vmatprep.subr.bf16.mxu0 0
        %1798 = vmatpush1.bf16.msra.mxu0 0
        %1799 = vmatprep.subr.bf16.mxu0 0
        %1800 = vmatpush1.bf16.msra.mxu0 0
        %1801 = vmatprep.subr.bf16.mxu0 0
        %1802 = vmatpush1.bf16.msra.mxu0 0
        %1803 = vmatprep.mubr.bf16.mxu0 0
        %1804 = vmatmul.mubr.bf16.gmra.mrb[0].mxu0 %v1769
        %v1805 = vpop.f32.mrb[0].mxu0
        %v1806 = vadd.f32 0.0, %v1805
        %v1807 = vpop.f32.mrb[0].mxu0
        %v1808 = vpop.f32.mrb[0].mxu0
        %v1809 = vpop.f32.mrb[0].mxu0
        %1810 = vdwg.mxu0
        %v1812 = vsel %vm598, %v1052, 0
        %1814 = vmatprep.subr.bf16.mxu0 0
        %1815 = vmatpush1.bf16.msra.mxu0 %v1053
        %1816 = vmatprep.subr.bf16.mxu0 0
        %1817 = vmatpush1.bf16.msra.mxu0 %v1054
        %1818 = vmatprep.subr.bf16.mxu0 0
        %1819 = vmatpush1.bf16.msra.mxu0 0
        %1820 = vmatprep.subr.bf16.mxu0 0
        %1821 = vmatpush1.bf16.msra.mxu0 0
        %1822 = vmatprep.subr.bf16.mxu0 0
        %1823 = vmatpush1.bf16.msra.mxu0 0
        %1824 = vmatprep.subr.bf16.mxu0 0
        %1825 = vmatpush1.bf16.msra.mxu0 0
        %1826 = vmatprep.subr.bf16.mxu0 0
        %1827 = vmatpush1.bf16.msra.mxu0 0
        %1828 = vmatprep.subr.bf16.mxu0 0
        %1829 = vmatpush1.bf16.msra.mxu0 0
        %1830 = vmatprep.subr.bf16.mxu0 0
        %1831 = vmatpush1.bf16.msra.mxu0 0
        %1832 = vmatprep.subr.bf16.mxu0 0
        %1833 = vmatpush1.bf16.msra.mxu0 0
        %1834 = vmatprep.subr.bf16.mxu0 0
        %1835 = vmatpush1.bf16.msra.mxu0 0
        %1836 = vmatprep.subr.bf16.mxu0 0
        %1837 = vmatpush1.bf16.msra.mxu0 0
        %1838 = vmatprep.subr.bf16.mxu0 0
        %1839 = vmatpush1.bf16.msra.mxu0 0
        %1840 = vmatprep.subr.bf16.mxu0 0
        %1841 = vmatpush1.bf16.msra.mxu0 0
        %1842 = vmatprep.subr.bf16.mxu0 0
        %1843 = vmatpush1.bf16.msra.mxu0 0
        %1844 = vmatprep.subr.bf16.mxu0 0
        %1845 = vmatpush1.bf16.msra.mxu0 0
        %1846 = vmatprep.mubr.bf16.mxu0 0
        %1847 = vmatmul.mubr.bf16.gmra.mrb[0].mxu0 %v1812
        %v1848 = vpop.f32.mrb[0].mxu0
        %v1849 = vadd.f32 %v1806, %v1848
        %v1850 = vpop.f32.mrb[0].mxu0
        %v1851 = vpop.f32.mrb[0].mxu0
        %v1852 = vpop.f32.mrb[0].mxu0
        %1853 = vdwg.mxu0
        %s1854 = scalar_lea.vmem %s2, 32
        %v1855 = vld [vmem:[%s1854] sm:$0xf]
        %v1856 = vld [vmem:[%s1854 + $0x4] sm:$0xf]
        %v1857 = vld [vmem:[%s1854 + $0x8] sm:$0xf]
        %v1858 = vld [vmem:[%s1854 + $0xc] sm:$0xf]
        %v1863 = vunpack.c.l.b16 %v1855
        %v1864 = vunpack.c.l.b16 %v1856
        %v1865 = vunpack.c.l.b16 %v1857
        %v1866 = vunpack.c.l.b16 %v1858
        %v1867 = vpack.c.b16 %v1864, %v1863
        %v1868 = vpack.c.b16 %v1866, %v1865
        %v1870 = vsel %vm339, %v1867, 0
        %v1873 = vsel %vm339, %v1868, 0
        %1875 = vmatprep.subr.bf16.mxu0 0
        %1876 = vmatpush1.bf16.msra.mxu0 %v348
        %1877 = vmatprep.subr.bf16.mxu0 0
        %1878 = vmatpush1.bf16.msra.mxu0 0
        %1879 = vmatprep.subr.bf16.mxu0 0
        %1880 = vmatpush1.bf16.msra.mxu0 0
        %1881 = vmatprep.subr.bf16.mxu0 0
        %1882 = vmatpush1.bf16.msra.mxu0 0
        %1883 = vmatprep.subr.bf16.mxu0 0
        %1884 = vmatpush1.bf16.msra.mxu0 0
        %1885 = vmatprep.subr.bf16.mxu0 0
        %1886 = vmatpush1.bf16.msra.mxu0 0
        %1887 = vmatprep.subr.bf16.mxu0 0
        %1888 = vmatpush1.bf16.msra.mxu0 0
        %1889 = vmatprep.subr.bf16.mxu0 0
        %1890 = vmatpush1.bf16.msra.mxu0 0
        %1891 = vmatprep.subr.bf16.mxu0 0
        %1892 = vmatpush1.bf16.msra.mxu0 0
        %1893 = vmatprep.subr.bf16.mxu0 0
        %1894 = vmatpush1.bf16.msra.mxu0 0
        %1895 = vmatprep.subr.bf16.mxu0 0
        %1896 = vmatpush1.bf16.msra.mxu0 0
        %1897 = vmatprep.subr.bf16.mxu0 0
        %1898 = vmatpush1.bf16.msra.mxu0 0
        %1899 = vmatprep.subr.bf16.mxu0 0
        %1900 = vmatpush1.bf16.msra.mxu0 0
        %1901 = vmatprep.subr.bf16.mxu0 0
        %1902 = vmatpush1.bf16.msra.mxu0 0
        %1903 = vmatprep.subr.bf16.mxu0 0
        %1904 = vmatpush1.bf16.msra.mxu0 0
        %1905 = vmatprep.subr.bf16.mxu0 0
        %1906 = vmatpush1.bf16.msra.mxu0 0
        %1907 = vmatprep.mubr.bf16.mxu0 0
        %1908 = vmatmul.mubr.bf16.gmra.mrb[0].mxu0 %v1870
        %v1909 = vpop.f32.mrb[0].mxu0
        %v1910 = vadd.f32 0.0, %v1909
        %v1911 = vpop.f32.mrb[0].mxu0
        %v1912 = vpop.f32.mrb[0].mxu0
        %v1913 = vadd.f32 0.0, %v1912
        %v1914 = vpop.f32.mrb[0].mxu0
        %1915 = vmatprep.mubr.bf16.mxu0 0
        %1916 = vmatmul.mubr.bf16.gmra.mrb[0].mxu0 %v1873
        %v1917 = vpop.f32.mrb[0].mxu0
        %v1918 = vadd.f32 0.0, %v1917
        %v1919 = vpop.f32.mrb[0].mxu0
        %v1920 = vpop.f32.mrb[0].mxu0
        %v1921 = vadd.f32 0.0, %v1920
        %v1922 = vpop.f32.mrb[0].mxu0
        %1923 = vdwg.mxu0
        %s1924 = scalar_lea.vmem %s3, 32
        %v1925 = vld [vmem:[%s1924] sm:$0xf]
        %v1926 = vld [vmem:[%s1924 + $0x4] sm:$0xf]
        %v1927 = vld [vmem:[%s1924 + $0x8] sm:$0xf]
        %v1928 = vld [vmem:[%s1924 + $0xc] sm:$0xf]
        %v1933 = vunpack.c.l.b16 %v1925
        %v1934 = vunpack.c.l.b16 %v1926
        %v1935 = vunpack.c.l.b16 %v1927
        %v1936 = vunpack.c.l.b16 %v1928
        %v1937 = vpack.c.b16 %v1934, %v1933
        %v1938 = vpack.c.b16 %v1936, %v1935
        %v1940 = vsel %vm339, %v1937, 0
        %v1943 = vsel %vm339, %v1938, 0
        %1945 = vmatprep.subr.bf16.mxu0 %v432
        %1946 = vmatpush1.bf16.msra.mxu0 %v429
        %1947 = vmatprep.subr.bf16.mxu0 0
        %1948 = vmatpush1.bf16.msra.mxu0 0
        %1949 = vmatprep.subr.bf16.mxu0 0
        %1950 = vmatpush1.bf16.msra.mxu0 0
        %1951 = vmatprep.subr.bf16.mxu0 0
        %1952 = vmatpush1.bf16.msra.mxu0 0
        %1953 = vmatprep.subr.bf16.mxu0 0
        %1954 = vmatpush1.bf16.msra.mxu0 0
        %1955 = vmatprep.subr.bf16.mxu0 0
        %1956 = vmatpush1.bf16.msra.mxu0 0
        %1957 = vmatprep.subr.bf16.mxu0 0
        %1958 = vmatpush1.bf16.msra.mxu0 0
        %1959 = vmatprep.subr.bf16.mxu0 0
        %1960 = vmatpush1.bf16.msra.mxu0 0
        %1961 = vmatprep.subr.bf16.mxu0 0
        %1962 = vmatpush1.bf16.msra.mxu0 0
        %1963 = vmatprep.subr.bf16.mxu0 0
        %1964 = vmatpush1.bf16.msra.mxu0 0
        %1965 = vmatprep.subr.bf16.mxu0 0
        %1966 = vmatpush1.bf16.msra.mxu0 0
        %1967 = vmatprep.subr.bf16.mxu0 0
        %1968 = vmatpush1.bf16.msra.mxu0 0
        %1969 = vmatprep.subr.bf16.mxu0 0
        %1970 = vmatpush1.bf16.msra.mxu0 0
        %1971 = vmatprep.subr.bf16.mxu0 0
        %1972 = vmatpush1.bf16.msra.mxu0 0
        %1973 = vmatprep.subr.bf16.mxu0 0
        %1974 = vmatpush1.bf16.msra.mxu0 0
        %1975 = vmatprep.subr.bf16.mxu0 0
        %1976 = vmatpush1.bf16.msra.mxu0 0
        %1977 = vmatprep.mubr.bf16.mxu0 0
        %1978 = vmatmul.mubr.bf16.gmra.mrb[0].mxu0 %v1940
        %v1979 = vpop.f32.mrb[0].mxu0
        %v1980 = vadd.f32 0.0, %v1979
        %v1981 = vpop.f32.mrb[0].mxu0
        %v1982 = vadd.f32 0.0, %v1981
        %v1983 = vpop.f32.mrb[0].mxu0
        %v1984 = vadd.f32 0.0, %v1983
        %v1985 = vpop.f32.mrb[0].mxu0
        %v1986 = vadd.f32 0.0, %v1985
        %1987 = vmatprep.mubr.bf16.mxu0 0
        %1988 = vmatmul.mubr.bf16.gmra.mrb[0].mxu0 %v1943
        %v1989 = vpop.f32.mrb[0].mxu0
        %v1990 = vadd.f32 0.0, %v1989
        %v1991 = vpop.f32.mrb[0].mxu0
        %v1992 = vadd.f32 0.0, %v1991
        %v1993 = vpop.f32.mrb[0].mxu0
        %v1994 = vadd.f32 0.0, %v1993
        %v1995 = vpop.f32.mrb[0].mxu0
        %v1996 = vadd.f32 0.0, %v1995
        %1997 = vdwg.mxu0
        %s1998 = scalar_lea.vmem %s4, 32
        %v1999 = vld [vmem:[%s1998] sm:$0xf]
        %v2000 = vld [vmem:[%s1998 + $0x4] sm:$0xf]
        %v2001 = vld [vmem:[%s1998 + $0x8] sm:$0xf]
        %v2002 = vld [vmem:[%s1998 + $0xc] sm:$0xf]
        %v2007 = vunpack.c.l.b16 %v1999
        %v2008 = vunpack.c.l.b16 %v2000
        %v2009 = vunpack.c.l.b16 %v2001
        %v2010 = vunpack.c.l.b16 %v2002
        %v2011 = vpack.c.b16 %v2008, %v2007
        %v2012 = vpack.c.b16 %v2010, %v2009
        %v2014 = vsel %vm339, %v2011, 0
        %v2017 = vsel %vm339, %v2012, 0
        %2019 = vmatprep.subr.bf16.mxu0 %v432
        %2020 = vmatpush1.bf16.msra.mxu0 %v429
        %2021 = vmatprep.subr.bf16.mxu0 0
        %2022 = vmatpush1.bf16.msra.mxu0 0
        %2023 = vmatprep.subr.bf16.mxu0 0
        %2024 = vmatpush1.bf16.msra.mxu0 0
        %2025 = vmatprep.subr.bf16.mxu0 0
        %2026 = vmatpush1.bf16.msra.mxu0 0
        %2027 = vmatprep.subr.bf16.mxu0 0
        %2028 = vmatpush1.bf16.msra.mxu0 0
        %2029 = vmatprep.subr.bf16.mxu0 0
        %2030 = vmatpush1.bf16.msra.mxu0 0
        %2031 = vmatprep.subr.bf16.mxu0 0
        %2032 = vmatpush1.bf16.msra.mxu0 0
        %2033 = vmatprep.subr.bf16.mxu0 0
        %2034 = vmatpush1.bf16.msra.mxu0 0
        %2035 = vmatprep.subr.bf16.mxu0 0
        %2036 = vmatpush1.bf16.msra.mxu0 0
        %2037 = vmatprep.subr.bf16.mxu0 0
        %2038 = vmatpush1.bf16.msra.mxu0 0
        %2039 = vmatprep.subr.bf16.mxu0 0
        %2040 = vmatpush1.bf16.msra.mxu0 0
        %2041 = vmatprep.subr.bf16.mxu0 0
        %2042 = vmatpush1.bf16.msra.mxu0 0
        %2043 = vmatprep.subr.bf16.mxu0 0
        %2044 = vmatpush1.bf16.msra.mxu0 0
        %2045 = vmatprep.subr.bf16.mxu0 0
        %2046 = vmatpush1.bf16.msra.mxu0 0
        %2047 = vmatprep.subr.bf16.mxu0 0
        %2048 = vmatpush1.bf16.msra.mxu0 0
        %2049 = vmatprep.subr.bf16.mxu0 0
        %2050 = vmatpush1.bf16.msra.mxu0 0
        %2051 = vmatprep.mubr.bf16.mxu0 0
        %2052 = vmatmul.mubr.bf16.gmra.mrb[0].mxu0 %v2014
        %v2053 = vpop.f32.mrb[0].mxu0
        %v2054 = vadd.f32 0.0, %v2053
        %v2055 = vpop.f32.mrb[0].mxu0
        %v2056 = vadd.f32 0.0, %v2055
        %v2057 = vpop.f32.mrb[0].mxu0
        %v2058 = vadd.f32 0.0, %v2057
        %v2059 = vpop.f32.mrb[0].mxu0
        %v2060 = vadd.f32 0.0, %v2059
        %2061 = vmatprep.mubr.bf16.mxu0 0
        %2062 = vmatmul.mubr.bf16.gmra.mrb[0].mxu0 %v2017
        %v2063 = vpop.f32.mrb[0].mxu0
        %v2064 = vadd.f32 0.0, %v2063
        %v2065 = vpop.f32.mrb[0].mxu0
        %v2066 = vadd.f32 0.0, %v2065
        %v2067 = vpop.f32.mrb[0].mxu0
        %v2068 = vadd.f32 0.0, %v2067
        %v2069 = vpop.f32.mrb[0].mxu0
        %v2070 = vadd.f32 0.0, %v2069
        %2071 = vdwg.mxu0
        %v2072 = vpack.c.bf16 %v1984, %v1980
        %v2073 = vpack.c.bf16 %v1986, %v1982
        %v2074 = vpack.c.bf16 %v1994, %v1990
        %v2075 = vpack.c.bf16 %v1996, %v1992
        %v2076 = vpack.c.bf16 %v1913, %v1910
        %v2077 = vpack.c.bf16 %v1921, %v1918
        %2078 = vxpose.xlu0.c.b16.start [1/8] %v2072, 128
        %2079 = vxpose.xlu0.c.b16.cont [2/8] %v2074, 128
        %2080 = vxpose.xlu0.c.b16.cont [3/8] 0, 128
        %2081 = vxpose.xlu0.c.b16.cont [4/8] 0, 128
        %2082 = vxpose.xlu0.c.b16.cont [5/8] 0, 128
        %2083 = vxpose.xlu0.c.b16.cont [6/8] 0, 128
        %2084 = vxpose.xlu0.c.b16.cont [7/8] 0, 128
        %2085 = vxpose.xlu0.c.b16.end [8/8] 0, 128
        %v2086 = vpop.trf.xlu0
        %v2087 = vpop.trf.xlu0
        %v2088 = vpop.trf.xlu0
        %v2089 = vpop.trf.xlu0
        %v2090 = vpop.trf.xlu0
        %v2091 = vpop.trf.xlu0
        %v2092 = vpop.trf.xlu0
        %v2093 = vpop.trf.xlu0
        %2094 = vxpose.xlu0.c.b16.start [1/8] %v2073, 128
        %2095 = vxpose.xlu0.c.b16.cont [2/8] %v2075, 128
        %2096 = vxpose.xlu0.c.b16.cont [3/8] 0, 128
        %2097 = vxpose.xlu0.c.b16.cont [4/8] 0, 128
        %2098 = vxpose.xlu0.c.b16.cont [5/8] 0, 128
        %2099 = vxpose.xlu0.c.b16.cont [6/8] 0, 128
        %2100 = vxpose.xlu0.c.b16.cont [7/8] 0, 128
        %2101 = vxpose.xlu0.c.b16.end [8/8] 0, 128
        %v2102 = vpop.trf.xlu0
        %v2103 = vpop.trf.xlu0
        %v2104 = vpop.trf.xlu0
        %v2105 = vpop.trf.xlu0
        %v2106 = vpop.trf.xlu0
        %v2107 = vpop.trf.xlu0
        %v2108 = vpop.trf.xlu0
        %v2109 = vpop.trf.xlu0
        %v2111 = vsel %vm598, %v2086, 0
        %v2114 = vsel %vm598, %v2087, 0
        %v2117 = vsel %vm598, %v2088, 0
        %v2120 = vsel %vm598, %v2089, 0
        %v2123 = vsel %vm598, %v2090, 0
        %v2126 = vsel %vm598, %v2091, 0
        %v2129 = vsel %vm598, %v2092, 0
        %v2132 = vsel %vm598, %v2093, 0
        %v2135 = vsel %vm598, %v2102, 0
        %v2138 = vsel %vm598, %v2103, 0
        %v2141 = vsel %vm598, %v2104, 0
        %v2144 = vsel %vm598, %v2105, 0
        %v2147 = vsel %vm598, %v2106, 0
        %v2150 = vsel %vm598, %v2107, 0
        %v2153 = vsel %vm598, %v2108, 0
        %v2156 = vsel %vm598, %v2109, 0
        %2158 = vmatprep.subr.bf16.mxu0 0
        %2159 = vmatpush1.bf16.msra.mxu0 %v2076
        %2160 = vmatprep.subr.bf16.mxu0 0
        %2161 = vmatpush1.bf16.msra.mxu0 %v2077
        %2162 = vmatprep.subr.bf16.mxu0 0
        %2163 = vmatpush1.bf16.msra.mxu0 0
        %2164 = vmatprep.subr.bf16.mxu0 0
        %2165 = vmatpush1.bf16.msra.mxu0 0
        %2166 = vmatprep.subr.bf16.mxu0 0
        %2167 = vmatpush1.bf16.msra.mxu0 0
        %2168 = vmatprep.subr.bf16.mxu0 0
        %2169 = vmatpush1.bf16.msra.mxu0 0
        %2170 = vmatprep.subr.bf16.mxu0 0
        %2171 = vmatpush1.bf16.msra.mxu0 0
        %2172 = vmatprep.subr.bf16.mxu0 0
        %2173 = vmatpush1.bf16.msra.mxu0 0
        %2174 = vmatprep.subr.bf16.mxu0 0
        %2175 = vmatpush1.bf16.msra.mxu0 0
        %2176 = vmatprep.subr.bf16.mxu0 0
        %2177 = vmatpush1.bf16.msra.mxu0 0
        %2178 = vmatprep.subr.bf16.mxu0 0
        %2179 = vmatpush1.bf16.msra.mxu0 0
        %2180 = vmatprep.subr.bf16.mxu0 0
        %2181 = vmatpush1.bf16.msra.mxu0 0
        %2182 = vmatprep.subr.bf16.mxu0 0
        %2183 = vmatpush1.bf16.msra.mxu0 0
        %2184 = vmatprep.subr.bf16.mxu0 0
        %2185 = vmatpush1.bf16.msra.mxu0 0
        %2186 = vmatprep.subr.bf16.mxu0 0
        %2187 = vmatpush1.bf16.msra.mxu0 0
        %2188 = vmatprep.subr.bf16.mxu0 0
        %2189 = vmatpush1.bf16.msra.mxu0 0
        %2190 = vmatprep.mubr.bf16.mxu0 0
        %2191 = vmatmul.mubr.bf16.gmra.mrb[0].mxu0 %v2111
        %v2192 = vpop.f32.mrb[0].mxu0
        %v2193 = vadd.f32 0.0, %v2192
        %v2194 = vpop.f32.mrb[0].mxu0
        %v2195 = vpop.f32.mrb[0].mxu0
        %v2196 = vadd.f32 0.0, %v2195
        %v2197 = vpop.f32.mrb[0].mxu0
        %2198 = vmatprep.mubr.bf16.mxu0 0
        %2199 = vmatmul.mubr.bf16.gmra.mrb[0].mxu0 %v2114
        %v2200 = vpop.f32.mrb[0].mxu0
        %v2201 = vadd.f32 0.0, %v2200
        %v2202 = vpop.f32.mrb[0].mxu0
        %v2203 = vpop.f32.mrb[0].mxu0
        %v2204 = vadd.f32 0.0, %v2203
        %v2205 = vpop.f32.mrb[0].mxu0
        %2206 = vmatprep.mubr.bf16.mxu0 0
        %2207 = vmatmul.mubr.bf16.gmra.mrb[0].mxu0 %v2117
        %v2208 = vpop.f32.mrb[0].mxu0
        %v2209 = vadd.f32 0.0, %v2208
        %v2210 = vpop.f32.mrb[0].mxu0
        %v2211 = vpop.f32.mrb[0].mxu0
        %v2212 = vadd.f32 0.0, %v2211
        %v2213 = vpop.f32.mrb[0].mxu0
        %2214 = vmatprep.mubr.bf16.mxu0 0
        %2215 = vmatmul.mubr.bf16.gmra.mrb[0].mxu0 %v2120
        %v2216 = vpop.f32.mrb[0].mxu0
        %v2217 = vadd.f32 0.0, %v2216
        %v2218 = vpop.f32.mrb[0].mxu0
        %v2219 = vpop.f32.mrb[0].mxu0
        %v2220 = vadd.f32 0.0, %v2219
        %v2221 = vpop.f32.mrb[0].mxu0
        %2222 = vmatprep.mubr.bf16.mxu0 0
        %2223 = vmatmul.mubr.bf16.gmra.mrb[0].mxu0 %v2123
        %v2224 = vpop.f32.mrb[0].mxu0
        %v2225 = vadd.f32 0.0, %v2224
        %v2226 = vpop.f32.mrb[0].mxu0
        %v2227 = vpop.f32.mrb[0].mxu0
        %v2228 = vadd.f32 0.0, %v2227
        %v2229 = vpop.f32.mrb[0].mxu0
        %2230 = vmatprep.mubr.bf16.mxu0 0
        %2231 = vmatmul.mubr.bf16.gmra.mrb[0].mxu0 %v2126
        %v2232 = vpop.f32.mrb[0].mxu0
        %v2233 = vadd.f32 0.0, %v2232
        %v2234 = vpop.f32.mrb[0].mxu0
        %v2235 = vpop.f32.mrb[0].mxu0
        %v2236 = vadd.f32 0.0, %v2235
        %v2237 = vpop.f32.mrb[0].mxu0
        %2238 = vmatprep.mubr.bf16.mxu0 0
        %2239 = vmatmul.mubr.bf16.gmra.mrb[0].mxu0 %v2129
        %v2240 = vpop.f32.mrb[0].mxu0
        %v2241 = vadd.f32 0.0, %v2240
        %v2242 = vpop.f32.mrb[0].mxu0
        %v2243 = vpop.f32.mrb[0].mxu0
        %v2244 = vadd.f32 0.0, %v2243
        %v2245 = vpop.f32.mrb[0].mxu0
        %2246 = vmatprep.mubr.bf16.mxu0 0
        %2247 = vmatmul.mubr.bf16.gmra.mrb[0].mxu0 %v2132
        %v2248 = vpop.f32.mrb[0].mxu0
        %v2249 = vadd.f32 0.0, %v2248
        %v2250 = vpop.f32.mrb[0].mxu0
        %v2251 = vpop.f32.mrb[0].mxu0
        %v2252 = vadd.f32 0.0, %v2251
        %v2253 = vpop.f32.mrb[0].mxu0
        %2254 = vmatprep.mubr.bf16.mxu0 0
        %2255 = vmatmul.mubr.bf16.gmra.mrb[0].mxu0 %v2135
        %v2256 = vpop.f32.mrb[0].mxu0
        %v2257 = vadd.f32 0.0, %v2256
        %v2258 = vpop.f32.mrb[0].mxu0
        %v2259 = vpop.f32.mrb[0].mxu0
        %v2260 = vadd.f32 0.0, %v2259
        %v2261 = vpop.f32.mrb[0].mxu0
        %2262 = vmatprep.mubr.bf16.mxu0 0
        %2263 = vmatmul.mubr.bf16.gmra.mrb[0].mxu0 %v2138
        %v2264 = vpop.f32.mrb[0].mxu0
        %v2265 = vadd.f32 0.0, %v2264
        %v2266 = vpop.f32.mrb[0].mxu0
        %v2267 = vpop.f32.mrb[0].mxu0
        %v2268 = vadd.f32 0.0, %v2267
        %v2269 = vpop.f32.mrb[0].mxu0
        %2270 = vmatprep.mubr.bf16.mxu0 0
        %2271 = vmatmul.mubr.bf16.gmra.mrb[0].mxu0 %v2141
        %v2272 = vpop.f32.mrb[0].mxu0
        %v2273 = vadd.f32 0.0, %v2272
        %v2274 = vpop.f32.mrb[0].mxu0
        %v2275 = vpop.f32.mrb[0].mxu0
        %v2276 = vadd.f32 0.0, %v2275
        %v2277 = vpop.f32.mrb[0].mxu0
        %2278 = vmatprep.mubr.bf16.mxu0 0
        %2279 = vmatmul.mubr.bf16.gmra.mrb[0].mxu0 %v2144
        %v2280 = vpop.f32.mrb[0].mxu0
        %v2281 = vadd.f32 0.0, %v2280
        %v2282 = vpop.f32.mrb[0].mxu0
        %v2283 = vpop.f32.mrb[0].mxu0
        %v2284 = vadd.f32 0.0, %v2283
        %v2285 = vpop.f32.mrb[0].mxu0
        %2286 = vmatprep.mubr.bf16.mxu0 0
        %2287 = vmatmul.mubr.bf16.gmra.mrb[0].mxu0 %v2147
        %v2288 = vpop.f32.mrb[0].mxu0
        %v2289 = vadd.f32 0.0, %v2288
        %v2290 = vpop.f32.mrb[0].mxu0
        %v2291 = vpop.f32.mrb[0].mxu0
        %v2292 = vadd.f32 0.0, %v2291
        %v2293 = vpop.f32.mrb[0].mxu0
        %2294 = vmatprep.mubr.bf16.mxu0 0
        %2295 = vmatmul.mubr.bf16.gmra.mrb[0].mxu0 %v2150
        %v2296 = vpop.f32.mrb[0].mxu0
        %v2297 = vadd.f32 0.0, %v2296
        %v2298 = vpop.f32.mrb[0].mxu0
        %v2299 = vpop.f32.mrb[0].mxu0
        %v2300 = vadd.f32 0.0, %v2299
        %v2301 = vpop.f32.mrb[0].mxu0
        %2302 = vmatprep.mubr.bf16.mxu0 0
        %2303 = vmatmul.mubr.bf16.gmra.mrb[0].mxu0 %v2153
        %v2304 = vpop.f32.mrb[0].mxu0
        %v2305 = vadd.f32 0.0, %v2304
        %v2306 = vpop.f32.mrb[0].mxu0
        %v2307 = vpop.f32.mrb[0].mxu0
        %v2308 = vadd.f32 0.0, %v2307
        %v2309 = vpop.f32.mrb[0].mxu0
        %2310 = vmatprep.mubr.bf16.mxu0 0
        %2311 = vmatmul.mubr.bf16.gmra.mrb[0].mxu0 %v2156
        %v2312 = vpop.f32.mrb[0].mxu0
        %v2313 = vadd.f32 0.0, %v2312
        %v2314 = vpop.f32.mrb[0].mxu0
        %v2315 = vpop.f32.mrb[0].mxu0
        %v2316 = vadd.f32 0.0, %v2315
        %v2317 = vpop.f32.mrb[0].mxu0
        %2318 = vdwg.mxu0
        %v2319 = vmax.f32 %v2193, %v2209
        %v2320 = vmax.f32 %v2196, %v2212
        %v2321 = vmax.f32 %v2201, %v2217
        %v2322 = vmax.f32 %v2204, %v2220
        %v2323 = vmax.f32 %v2319, %v2225
        %v2324 = vmax.f32 %v2320, %v2228
        %v2325 = vmax.f32 %v2321, %v2233
        %v2326 = vmax.f32 %v2322, %v2236
        %v2327 = vmax.f32 %v2323, %v2241
        %v2328 = vmax.f32 %v2324, %v2244
        %v2329 = vmax.f32 %v2325, %v2249
        %v2330 = vmax.f32 %v2326, %v2252
        %v2331 = vmax.f32 %v2327, %v2257
        %v2332 = vmax.f32 %v2328, %v2260
        %v2333 = vmax.f32 %v2329, %v2265
        %v2334 = vmax.f32 %v2330, %v2268
        %v2335 = vmax.f32 %v2331, %v2273
        %v2336 = vmax.f32 %v2332, %v2276
        %v2337 = vmax.f32 %v2333, %v2281
        %v2338 = vmax.f32 %v2334, %v2284
        %v2339 = vmax.f32 %v2335, %v2289
        %v2340 = vmax.f32 %v2336, %v2292
        %v2341 = vmax.f32 %v2337, %v2297
        %v2342 = vmax.f32 %v2338, %v2300
        %v2343 = vmax.f32 %v2339, %v2305
        %v2344 = vmax.f32 %v2340, %v2308
        %v2345 = vmax.f32 %v2341, %v2313
        %v2346 = vmax.f32 %v2342, %v2316
        %v2347 = vmax.f32 %v2343, %v2344
        %v2348 = vmax.f32 %v2345, %v2346
        %v2349 = vmax.f32 %v2347, %v2348
        %v2350 = vrot.slane %v2349, 4
        %v2351 = vmax.f32 %v2349, %v2350
        %v2352 = vrot.slane %v2351, 2
        %v2353 = vmax.f32 %v2351, %v2352
        %v2354 = vrot.slane %v2353, 1
        %v2355 = vmax.f32 %v2353, %v2354
        %v2356 = vsub.f32 %v2193, %v2355
        %v2357 = vsub.f32 %v2196, %v2355
        %v2358 = vsub.f32 %v2201, %v2355
        %v2359 = vsub.f32 %v2204, %v2355
        %v2360 = vsub.f32 %v2209, %v2355
        %v2361 = vsub.f32 %v2212, %v2355
        %v2362 = vsub.f32 %v2217, %v2355
        %v2363 = vsub.f32 %v2220, %v2355
        %v2364 = vsub.f32 %v2225, %v2355
        %v2365 = vsub.f32 %v2228, %v2355
        %v2366 = vsub.f32 %v2233, %v2355
        %v2367 = vsub.f32 %v2236, %v2355
        %v2368 = vsub.f32 %v2241, %v2355
        %v2369 = vsub.f32 %v2244, %v2355
        %v2370 = vsub.f32 %v2249, %v2355
        %v2371 = vsub.f32 %v2252, %v2355
        %v2372 = vsub.f32 %v2257, %v2355
        %v2373 = vsub.f32 %v2260, %v2355
        %v2374 = vsub.f32 %v2265, %v2355
        %v2375 = vsub.f32 %v2268, %v2355
        %v2376 = vsub.f32 %v2273, %v2355
        %v2377 = vsub.f32 %v2276, %v2355
        %v2378 = vsub.f32 %v2281, %v2355
        %v2379 = vsub.f32 %v2284, %v2355
        %v2380 = vsub.f32 %v2289, %v2355
        %v2381 = vsub.f32 %v2292, %v2355
        %v2382 = vsub.f32 %v2297, %v2355
        %v2383 = vsub.f32 %v2300, %v2355
        %v2384 = vsub.f32 %v2305, %v2355
        %v2385 = vsub.f32 %v2308, %v2355
        %v2386 = vsub.f32 %v2313, %v2355
        %v2387 = vsub.f32 %v2316, %v2355
        %v2388 = vmul.f32 %v2356, 1.442695
        %v2389 = vpow.pop %v2388
        %v2390 = vmul.f32 %v2357, 1.442695
        %v2391 = vpow.pop %v2390
        %v2392 = vmul.f32 %v2358, 1.442695
        %v2393 = vpow.pop %v2392
        %v2394 = vmul.f32 %v2359, 1.442695
        %v2395 = vpow.pop %v2394
        %v2396 = vmul.f32 %v2360, 1.442695
        %v2397 = vpow.pop %v2396
        %v2398 = vmul.f32 %v2361, 1.442695
        %v2399 = vpow.pop %v2398
        %v2400 = vmul.f32 %v2362, 1.442695
        %v2401 = vpow.pop %v2400
        %v2402 = vmul.f32 %v2363, 1.442695
        %v2403 = vpow.pop %v2402
        %v2404 = vmul.f32 %v2364, 1.442695
        %v2405 = vpow.pop %v2404
        %v2406 = vmul.f32 %v2365, 1.442695
        %v2407 = vpow.pop %v2406
        %v2408 = vmul.f32 %v2366, 1.442695
        %v2409 = vpow.pop %v2408
        %v2410 = vmul.f32 %v2367, 1.442695
        %v2411 = vpow.pop %v2410
        %v2412 = vmul.f32 %v2368, 1.442695
        %v2413 = vpow.pop %v2412
        %v2414 = vmul.f32 %v2369, 1.442695
        %v2415 = vpow.pop %v2414
        %v2416 = vmul.f32 %v2370, 1.442695
        %v2417 = vpow.pop %v2416
        %v2418 = vmul.f32 %v2371, 1.442695
        %v2419 = vpow.pop %v2418
        %v2420 = vmul.f32 %v2372, 1.442695
        %v2421 = vpow.pop %v2420
        %v2422 = vmul.f32 %v2373, 1.442695
        %v2423 = vpow.pop %v2422
        %v2424 = vmul.f32 %v2374, 1.442695
        %v2425 = vpow.pop %v2424
        %v2426 = vmul.f32 %v2375, 1.442695
        %v2427 = vpow.pop %v2426
        %v2428 = vmul.f32 %v2376, 1.442695
        %v2429 = vpow.pop %v2428
        %v2430 = vmul.f32 %v2377, 1.442695
        %v2431 = vpow.pop %v2430
        %v2432 = vmul.f32 %v2378, 1.442695
        %v2433 = vpow.pop %v2432
        %v2434 = vmul.f32 %v2379, 1.442695
        %v2435 = vpow.pop %v2434
        %v2436 = vmul.f32 %v2380, 1.442695
        %v2437 = vpow.pop %v2436
        %v2438 = vmul.f32 %v2381, 1.442695
        %v2439 = vpow.pop %v2438
        %v2440 = vmul.f32 %v2382, 1.442695
        %v2441 = vpow.pop %v2440
        %v2442 = vmul.f32 %v2383, 1.442695
        %v2443 = vpow.pop %v2442
        %v2444 = vmul.f32 %v2384, 1.442695
        %v2445 = vpow.pop %v2444
        %v2446 = vmul.f32 %v2385, 1.442695
        %v2447 = vpow.pop %v2446
        %v2448 = vmul.f32 %v2386, 1.442695
        %v2449 = vpow.pop %v2448
        %v2450 = vmul.f32 %v2387, 1.442695
        %v2451 = vpow.pop %v2450
        %v2452 = vadd.f32 %v2389, %v2391
        %v2453 = vadd.f32 %v2452, %v2393
        %v2454 = vadd.f32 %v2453, %v2395
        %v2455 = vadd.f32 %v2454, %v2397
        %v2456 = vadd.f32 %v2455, %v2399
        %v2457 = vadd.f32 %v2456, %v2401
        %v2458 = vadd.f32 %v2457, %v2403
        %v2459 = vadd.f32 %v2458, %v2405
        %v2460 = vadd.f32 %v2459, %v2407
        %v2461 = vadd.f32 %v2460, %v2409
        %v2462 = vadd.f32 %v2461, %v2411
        %v2463 = vadd.f32 %v2462, %v2413
        %v2464 = vadd.f32 %v2463, %v2415
        %v2465 = vadd.f32 %v2464, %v2417
        %v2466 = vadd.f32 %v2465, %v2419
        %v2467 = vadd.f32 %v2466, %v2421
        %v2468 = vadd.f32 %v2467, %v2423
        %v2469 = vadd.f32 %v2468, %v2425
        %v2470 = vadd.f32 %v2469, %v2427
        %v2471 = vadd.f32 %v2470, %v2429
        %v2472 = vadd.f32 %v2471, %v2431
        %v2473 = vadd.f32 %v2472, %v2433
        %v2474 = vadd.f32 %v2473, %v2435
        %v2475 = vadd.f32 %v2474, %v2437
        %v2476 = vadd.f32 %v2475, %v2439
        %v2477 = vadd.f32 %v2476, %v2441
        %v2478 = vadd.f32 %v2477, %v2443
        %v2479 = vadd.f32 %v2478, %v2445
        %v2480 = vadd.f32 %v2479, %v2447
        %v2481 = vadd.f32 %v2480, %v2449
        %v2482 = vadd.f32 %v2481, %v2451
        %v2483 = vrot.slane %v2482, 4
        %v2484 = vadd.f32 %v2482, %v2483
        %v2485 = vrot.slane %v2484, 2
        %v2486 = vadd.f32 %v2484, %v2485
        %v2487 = vrot.slane %v2486, 1
        %v2488 = vadd.f32 %v2486, %v2487
        %v2489 = vrcp.pop %v2488
        %v2490 = vpack.c.bf16 %v2058, %v2054
        %v2491 = vpack.c.bf16 %v2060, %v2056
        %v2492 = vpack.c.bf16 %v2068, %v2064
        %v2493 = vpack.c.bf16 %v2070, %v2066
        %v2494 = vpack.c.bf16 %v2391, %v2389
        %v2495 = vpack.c.bf16 %v2395, %v2393
        %v2496 = vpack.c.bf16 %v2399, %v2397
        %v2497 = vpack.c.bf16 %v2403, %v2401
        %v2498 = vpack.c.bf16 %v2407, %v2405
        %v2499 = vpack.c.bf16 %v2411, %v2409
        %v2500 = vpack.c.bf16 %v2415, %v2413
        %v2501 = vpack.c.bf16 %v2419, %v2417
        %v2502 = vpack.c.bf16 %v2423, %v2421
        %v2503 = vpack.c.bf16 %v2427, %v2425
        %v2504 = vpack.c.bf16 %v2431, %v2429
        %v2505 = vpack.c.bf16 %v2435, %v2433
        %v2506 = vpack.c.bf16 %v2439, %v2437
        %v2507 = vpack.c.bf16 %v2443, %v2441
        %v2508 = vpack.c.bf16 %v2447, %v2445
        %v2509 = vpack.c.bf16 %v2451, %v2449
        %2510 = vmatprep.subr.bf16.mxu0 0
        %2511 = vmatpush1.bf16.msra.mxu0 %v2494
        %2512 = vmatprep.subr.bf16.mxu0 0
        %2513 = vmatpush1.bf16.msra.mxu0 %v2495
        %2514 = vmatprep.subr.bf16.mxu0 0
        %2515 = vmatpush1.bf16.msra.mxu0 %v2496
        %2516 = vmatprep.subr.bf16.mxu0 0
        %2517 = vmatpush1.bf16.msra.mxu0 %v2497
        %2518 = vmatprep.subr.bf16.mxu0 0
        %2519 = vmatpush1.bf16.msra.mxu0 %v2498
        %2520 = vmatprep.subr.bf16.mxu0 0
        %2521 = vmatpush1.bf16.msra.mxu0 %v2499
        %2522 = vmatprep.subr.bf16.mxu0 0
        %2523 = vmatpush1.bf16.msra.mxu0 %v2500
        %2524 = vmatprep.subr.bf16.mxu0 0
        %2525 = vmatpush1.bf16.msra.mxu0 %v2501
        %2526 = vmatprep.subr.bf16.mxu0 0
        %2527 = vmatpush1.bf16.msra.mxu0 %v2502
        %2528 = vmatprep.subr.bf16.mxu0 0
        %2529 = vmatpush1.bf16.msra.mxu0 %v2503
        %2530 = vmatprep.subr.bf16.mxu0 0
        %2531 = vmatpush1.bf16.msra.mxu0 %v2504
        %2532 = vmatprep.subr.bf16.mxu0 0
        %2533 = vmatpush1.bf16.msra.mxu0 %v2505
        %2534 = vmatprep.subr.bf16.mxu0 0
        %2535 = vmatpush1.bf16.msra.mxu0 %v2506
        %2536 = vmatprep.subr.bf16.mxu0 0
        %2537 = vmatpush1.bf16.msra.mxu0 %v2507
        %2538 = vmatprep.subr.bf16.mxu0 0
        %2539 = vmatpush1.bf16.msra.mxu0 %v2508
        %2540 = vmatprep.subr.bf16.mxu0 0
        %2541 = vmatpush1.bf16.msra.mxu0 %v2509
        %2542 = vmatprep.mubr.bf16.mxu0 %v2491
        %2543 = vmatmul.mubr.bf16.gmra.mrb[0].mxu0 %v2490
        %v2544 = vpop.f32.mrb[0].mxu0
        %v2545 = vadd.f32 0.0, %v2544
        %v2546 = vpop.f32.mrb[0].mxu0
        %v2547 = vpop.f32.mrb[0].mxu0
        %v2548 = vadd.f32 0.0, %v2547
        %v2549 = vpop.f32.mrb[0].mxu0
        %2550 = vmatprep.mubr.bf16.mxu0 %v2493
        %2551 = vmatmul.mubr.bf16.gmra.mrb[0].mxu0 %v2492
        %v2552 = vpop.f32.mrb[0].mxu0
        %v2553 = vadd.f32 0.0, %v2552
        %v2554 = vpop.f32.mrb[0].mxu0
        %v2555 = vpop.f32.mrb[0].mxu0
        %v2556 = vadd.f32 0.0, %v2555
        %v2557 = vpop.f32.mrb[0].mxu0
        %2558 = vdwg.mxu0
        %v2559 = vmul.f32 %v2545, %v2489
        %v2560 = vmul.f32 %v2548, %v2489
        %v2561 = vmul.f32 %v2553, %v2489
        %v2562 = vmul.f32 %v2556, %v2489
        %s2563 = scalar_lea.vmem %s5, 4
        %v2564 = vld [vmem:[%s2563] sm:$0x3]
        %v2565 = vpack.c.bf16 %v2560, %v2559
        %v2566 = vpack.c.bf16 %v2562, %v2561
        %v2568 = vsel %vm598, %v2564, 0
        %2570 = vmatprep.subr.bf16.mxu0 0
        %2571 = vmatpush1.bf16.msra.mxu0 %v2565
        %2572 = vmatprep.subr.bf16.mxu0 0
        %2573 = vmatpush1.bf16.msra.mxu0 %v2566
        %2574 = vmatprep.subr.bf16.mxu0 0
        %2575 = vmatpush1.bf16.msra.mxu0 0
        %2576 = vmatprep.subr.bf16.mxu0 0
        %2577 = vmatpush1.bf16.msra.mxu0 0
        %2578 = vmatprep.subr.bf16.mxu0 0
        %2579 = vmatpush1.bf16.msra.mxu0 0
        %2580 = vmatprep.subr.bf16.mxu0 0
        %2581 = vmatpush1.bf16.msra.mxu0 0
        %2582 = vmatprep.subr.bf16.mxu0 0
        %2583 = vmatpush1.bf16.msra.mxu0 0
        %2584 = vmatprep.subr.bf16.mxu0 0
        %2585 = vmatpush1.bf16.msra.mxu0 0
        %2586 = vmatprep.subr.bf16.mxu0 0
        %2587 = vmatpush1.bf16.msra.mxu0 0
        %2588 = vmatprep.subr.bf16.mxu0 0
        %2589 = vmatpush1.bf16.msra.mxu0 0
        %2590 = vmatprep.subr.bf16.mxu0 0
        %2591 = vmatpush1.bf16.msra.mxu0 0
        %2592 = vmatprep.subr.bf16.mxu0 0
        %2593 = vmatpush1.bf16.msra.mxu0 0
        %2594 = vmatprep.subr.bf16.mxu0 0
        %2595 = vmatpush1.bf16.msra.mxu0 0
        %2596 = vmatprep.subr.bf16.mxu0 0
        %2597 = vmatpush1.bf16.msra.mxu0 0
        %2598 = vmatprep.subr.bf16.mxu0 0
        %2599 = vmatpush1.bf16.msra.mxu0 0
        %2600 = vmatprep.subr.bf16.mxu0 0
        %2601 = vmatpush1.bf16.msra.mxu0 0
        %2602 = vmatprep.mubr.bf16.mxu0 0
        %2603 = vmatmul.mubr.bf16.gmra.mrb[0].mxu0 %v2568
        %v2604 = vpop.f32.mrb[0].mxu0
        %v2605 = vadd.f32 0.0, %v2604
        %v2606 = vpop.f32.mrb[0].mxu0
        %v2607 = vpop.f32.mrb[0].mxu0
        %v2608 = vpop.f32.mrb[0].mxu0
        %2609 = vdwg.mxu0
        %v2610 = vadd.f32 %v1849, %v2605
        %s2611 = scalar_lea.vmem %s2, 48
        %v2612 = vld [vmem:[%s2611] sm:$0xf]
        %v2613 = vld [vmem:[%s2611 + $0x4] sm:$0xf]
        %v2614 = vld [vmem:[%s2611 + $0x8] sm:$0xf]
        %v2615 = vld [vmem:[%s2611 + $0xc] sm:$0xf]
        %v2620 = vunpack.c.l.b16 %v2612
        %v2621 = vunpack.c.l.b16 %v2613
        %v2622 = vunpack.c.l.b16 %v2614
        %v2623 = vunpack.c.l.b16 %v2615
        %v2624 = vpack.c.b16 %v2621, %v2620
        %v2625 = vpack.c.b16 %v2623, %v2622
        %v2627 = vsel %vm339, %v2624, 0
        %v2630 = vsel %vm339, %v2625, 0
        %2632 = vmatprep.subr.bf16.mxu0 0
        %2633 = vmatpush1.bf16.msra.mxu0 %v348
        %2634 = vmatprep.subr.bf16.mxu0 0
        %2635 = vmatpush1.bf16.msra.mxu0 0
        %2636 = vmatprep.subr.bf16.mxu0 0
        %2637 = vmatpush1.bf16.msra.mxu0 0
        %2638 = vmatprep.subr.bf16.mxu0 0
        %2639 = vmatpush1.bf16.msra.mxu0 0
        %2640 = vmatprep.subr.bf16.mxu0 0
        %2641 = vmatpush1.bf16.msra.mxu0 0
        %2642 = vmatprep.subr.bf16.mxu0 0
        %2643 = vmatpush1.bf16.msra.mxu0 0
        %2644 = vmatprep.subr.bf16.mxu0 0
        %2645 = vmatpush1.bf16.msra.mxu0 0
        %2646 = vmatprep.subr.bf16.mxu0 0
        %2647 = vmatpush1.bf16.msra.mxu0 0
        %2648 = vmatprep.subr.bf16.mxu0 0
        %2649 = vmatpush1.bf16.msra.mxu0 0
        %2650 = vmatprep.subr.bf16.mxu0 0
        %2651 = vmatpush1.bf16.msra.mxu0 0
        %2652 = vmatprep.subr.bf16.mxu0 0
        %2653 = vmatpush1.bf16.msra.mxu0 0
        %2654 = vmatprep.subr.bf16.mxu0 0
        %2655 = vmatpush1.bf16.msra.mxu0 0
        %2656 = vmatprep.subr.bf16.mxu0 0
        %2657 = vmatpush1.bf16.msra.mxu0 0
        %2658 = vmatprep.subr.bf16.mxu0 0
        %2659 = vmatpush1.bf16.msra.mxu0 0
        %2660 = vmatprep.subr.bf16.mxu0 0
        %2661 = vmatpush1.bf16.msra.mxu0 0
        %2662 = vmatprep.subr.bf16.mxu0 0
        %2663 = vmatpush1.bf16.msra.mxu0 0
        %2664 = vmatprep.mubr.bf16.mxu0 0
        %2665 = vmatmul.mubr.bf16.gmra.mrb[0].mxu0 %v2627
        %v2666 = vpop.f32.mrb[0].mxu0
        %v2667 = vadd.f32 0.0, %v2666
        %v2668 = vpop.f32.mrb[0].mxu0
        %v2669 = vpop.f32.mrb[0].mxu0
        %v2670 = vadd.f32 0.0, %v2669
        %v2671 = vpop.f32.mrb[0].mxu0
        %2672 = vmatprep.mubr.bf16.mxu0 0
        %2673 = vmatmul.mubr.bf16.gmra.mrb[0].mxu0 %v2630
        %v2674 = vpop.f32.mrb[0].mxu0
        %v2675 = vadd.f32 0.0, %v2674
        %v2676 = vpop.f32.mrb[0].mxu0
        %v2677 = vpop.f32.mrb[0].mxu0
        %v2678 = vadd.f32 0.0, %v2677
        %v2679 = vpop.f32.mrb[0].mxu0
        %2680 = vdwg.mxu0
        %s2681 = scalar_lea.vmem %s3, 48
        %v2682 = vld [vmem:[%s2681] sm:$0xf]
        %v2683 = vld [vmem:[%s2681 + $0x4] sm:$0xf]
        %v2684 = vld [vmem:[%s2681 + $0x8] sm:$0xf]
        %v2685 = vld [vmem:[%s2681 + $0xc] sm:$0xf]
        %v2690 = vunpack.c.l.b16 %v2682
        %v2691 = vunpack.c.l.b16 %v2683
        %v2692 = vunpack.c.l.b16 %v2684
        %v2693 = vunpack.c.l.b16 %v2685
        %v2694 = vpack.c.b16 %v2691, %v2690
        %v2695 = vpack.c.b16 %v2693, %v2692
        %v2697 = vsel %vm339, %v2694, 0
        %v2700 = vsel %vm339, %v2695, 0
        %2702 = vmatprep.subr.bf16.mxu0 %v432
        %2703 = vmatpush1.bf16.msra.mxu0 %v429
        %2704 = vmatprep.subr.bf16.mxu0 0
        %2705 = vmatpush1.bf16.msra.mxu0 0
        %2706 = vmatprep.subr.bf16.mxu0 0
        %2707 = vmatpush1.bf16.msra.mxu0 0
        %2708 = vmatprep.subr.bf16.mxu0 0
        %2709 = vmatpush1.bf16.msra.mxu0 0
        %2710 = vmatprep.subr.bf16.mxu0 0
        %2711 = vmatpush1.bf16.msra.mxu0 0
        %2712 = vmatprep.subr.bf16.mxu0 0
        %2713 = vmatpush1.bf16.msra.mxu0 0
        %2714 = vmatprep.subr.bf16.mxu0 0
        %2715 = vmatpush1.bf16.msra.mxu0 0
        %2716 = vmatprep.subr.bf16.mxu0 0
        %2717 = vmatpush1.bf16.msra.mxu0 0
        %2718 = vmatprep.subr.bf16.mxu0 0
        %2719 = vmatpush1.bf16.msra.mxu0 0
        %2720 = vmatprep.subr.bf16.mxu0 0
        %2721 = vmatpush1.bf16.msra.mxu0 0
        %2722 = vmatprep.subr.bf16.mxu0 0
        %2723 = vmatpush1.bf16.msra.mxu0 0
        %2724 = vmatprep.subr.bf16.mxu0 0
        %2725 = vmatpush1.bf16.msra.mxu0 0
        %2726 = vmatprep.subr.bf16.mxu0 0
        %2727 = vmatpush1.bf16.msra.mxu0 0
        %2728 = vmatprep.subr.bf16.mxu0 0
        %2729 = vmatpush1.bf16.msra.mxu0 0
        %2730 = vmatprep.subr.bf16.mxu0 0
        %2731 = vmatpush1.bf16.msra.mxu0 0
        %2732 = vmatprep.subr.bf16.mxu0 0
        %2733 = vmatpush1.bf16.msra.mxu0 0
        %2734 = vmatprep.mubr.bf16.mxu0 0
        %2735 = vmatmul.mubr.bf16.gmra.mrb[0].mxu0 %v2697
        %v2736 = vpop.f32.mrb[0].mxu0
        %v2737 = vadd.f32 0.0, %v2736
        %v2738 = vpop.f32.mrb[0].mxu0
        %v2739 = vadd.f32 0.0, %v2738
        %v2740 = vpop.f32.mrb[0].mxu0
        %v2741 = vadd.f32 0.0, %v2740
        %v2742 = vpop.f32.mrb[0].mxu0
        %v2743 = vadd.f32 0.0, %v2742
        %2744 = vmatprep.mubr.bf16.mxu0 0
        %2745 = vmatmul.mubr.bf16.gmra.mrb[0].mxu0 %v2700
        %v2746 = vpop.f32.mrb[0].mxu0
        %v2747 = vadd.f32 0.0, %v2746
        %v2748 = vpop.f32.mrb[0].mxu0
        %v2749 = vadd.f32 0.0, %v2748
        %v2750 = vpop.f32.mrb[0].mxu0
        %v2751 = vadd.f32 0.0, %v2750
        %v2752 = vpop.f32.mrb[0].mxu0
        %v2753 = vadd.f32 0.0, %v2752
        %2754 = vdwg.mxu0
        %s2755 = scalar_lea.vmem %s4, 48
        %v2756 = vld [vmem:[%s2755] sm:$0xf]
        %v2757 = vld [vmem:[%s2755 + $0x4] sm:$0xf]
        %v2758 = vld [vmem:[%s2755 + $0x8] sm:$0xf]
        %v2759 = vld [vmem:[%s2755 + $0xc] sm:$0xf]
        %v2764 = vunpack.c.l.b16 %v2756
        %v2765 = vunpack.c.l.b16 %v2757
        %v2766 = vunpack.c.l.b16 %v2758
        %v2767 = vunpack.c.l.b16 %v2759
        %v2768 = vpack.c.b16 %v2765, %v2764
        %v2769 = vpack.c.b16 %v2767, %v2766
        %v2771 = vsel %vm339, %v2768, 0
        %v2774 = vsel %vm339, %v2769, 0
        %2776 = vmatprep.subr.bf16.mxu0 %v432
        %2777 = vmatpush1.bf16.msra.mxu0 %v429
        %2778 = vmatprep.subr.bf16.mxu0 0
        %2779 = vmatpush1.bf16.msra.mxu0 0
        %2780 = vmatprep.subr.bf16.mxu0 0
        %2781 = vmatpush1.bf16.msra.mxu0 0
        %2782 = vmatprep.subr.bf16.mxu0 0
        %2783 = vmatpush1.bf16.msra.mxu0 0
        %2784 = vmatprep.subr.bf16.mxu0 0
        %2785 = vmatpush1.bf16.msra.mxu0 0
        %2786 = vmatprep.subr.bf16.mxu0 0
        %2787 = vmatpush1.bf16.msra.mxu0 0
        %2788 = vmatprep.subr.bf16.mxu0 0
        %2789 = vmatpush1.bf16.msra.mxu0 0
        %2790 = vmatprep.subr.bf16.mxu0 0
        %2791 = vmatpush1.bf16.msra.mxu0 0
        %2792 = vmatprep.subr.bf16.mxu0 0
        %2793 = vmatpush1.bf16.msra.mxu0 0
        %2794 = vmatprep.subr.bf16.mxu0 0
        %2795 = vmatpush1.bf16.msra.mxu0 0
        %2796 = vmatprep.subr.bf16.mxu0 0
        %2797 = vmatpush1.bf16.msra.mxu0 0
        %2798 = vmatprep.subr.bf16.mxu0 0
        %2799 = vmatpush1.bf16.msra.mxu0 0
        %2800 = vmatprep.subr.bf16.mxu0 0
        %2801 = vmatpush1.bf16.msra.mxu0 0
        %2802 = vmatprep.subr.bf16.mxu0 0
        %2803 = vmatpush1.bf16.msra.mxu0 0
        %2804 = vmatprep.subr.bf16.mxu0 0
        %2805 = vmatpush1.bf16.msra.mxu0 0
        %2806 = vmatprep.subr.bf16.mxu0 0
        %2807 = vmatpush1.bf16.msra.mxu0 0
        %2808 = vmatprep.mubr.bf16.mxu0 0
        %2809 = vmatmul.mubr.bf16.gmra.mrb[0].mxu0 %v2771
        %v2810 = vpop.f32.mrb[0].mxu0
        %v2811 = vadd.f32 0.0, %v2810
        %v2812 = vpop.f32.mrb[0].mxu0
        %v2813 = vadd.f32 0.0, %v2812
        %v2814 = vpop.f32.mrb[0].mxu0
        %v2815 = vadd.f32 0.0, %v2814
        %v2816 = vpop.f32.mrb[0].mxu0
        %v2817 = vadd.f32 0.0, %v2816
        %2818 = vmatprep.mubr.bf16.mxu0 0
        %2819 = vmatmul.mubr.bf16.gmra.mrb[0].mxu0 %v2774
        %v2820 = vpop.f32.mrb[0].mxu0
        %v2821 = vadd.f32 0.0, %v2820
        %v2822 = vpop.f32.mrb[0].mxu0
        %v2823 = vadd.f32 0.0, %v2822
        %v2824 = vpop.f32.mrb[0].mxu0
        %v2825 = vadd.f32 0.0, %v2824
        %v2826 = vpop.f32.mrb[0].mxu0
        %v2827 = vadd.f32 0.0, %v2826
        %2828 = vdwg.mxu0
        %v2829 = vpack.c.bf16 %v2741, %v2737
        %v2830 = vpack.c.bf16 %v2743, %v2739
        %v2831 = vpack.c.bf16 %v2751, %v2747
        %v2832 = vpack.c.bf16 %v2753, %v2749
        %v2833 = vpack.c.bf16 %v2670, %v2667
        %v2834 = vpack.c.bf16 %v2678, %v2675
        %2835 = vxpose.xlu0.c.b16.start [1/8] %v2829, 128
        %2836 = vxpose.xlu0.c.b16.cont [2/8] %v2831, 128
        %2837 = vxpose.xlu0.c.b16.cont [3/8] 0, 128
        %2838 = vxpose.xlu0.c.b16.cont [4/8] 0, 128
        %2839 = vxpose.xlu0.c.b16.cont [5/8] 0, 128
        %2840 = vxpose.xlu0.c.b16.cont [6/8] 0, 128
        %2841 = vxpose.xlu0.c.b16.cont [7/8] 0, 128
        %2842 = vxpose.xlu0.c.b16.end [8/8] 0, 128
        %v2843 = vpop.trf.xlu0
        %v2844 = vpop.trf.xlu0
        %v2845 = vpop.trf.xlu0
        %v2846 = vpop.trf.xlu0
        %v2847 = vpop.trf.xlu0
        %v2848 = vpop.trf.xlu0
        %v2849 = vpop.trf.xlu0
        %v2850 = vpop.trf.xlu0
        %2851 = vxpose.xlu0.c.b16.start [1/8] %v2830, 128
        %2852 = vxpose.xlu0.c.b16.cont [2/8] %v2832, 128
        %2853 = vxpose.xlu0.c.b16.cont [3/8] 0, 128
        %2854 = vxpose.xlu0.c.b16.cont [4/8] 0, 128
        %2855 = vxpose.xlu0.c.b16.cont [5/8] 0, 128
        %2856 = vxpose.xlu0.c.b16.cont [6/8] 0, 128
        %2857 = vxpose.xlu0.c.b16.cont [7/8] 0, 128
        %2858 = vxpose.xlu0.c.b16.end [8/8] 0, 128
        %v2859 = vpop.trf.xlu0
        %v2860 = vpop.trf.xlu0
        %v2861 = vpop.trf.xlu0
        %v2862 = vpop.trf.xlu0
        %v2863 = vpop.trf.xlu0
        %v2864 = vpop.trf.xlu0
        %v2865 = vpop.trf.xlu0
        %v2866 = vpop.trf.xlu0
        %v2868 = vsel %vm598, %v2843, 0
        %v2871 = vsel %vm598, %v2844, 0
        %v2874 = vsel %vm598, %v2845, 0
        %v2877 = vsel %vm598, %v2846, 0
        %v2880 = vsel %vm598, %v2847, 0
        %v2883 = vsel %vm598, %v2848, 0
        %v2886 = vsel %vm598, %v2849, 0
        %v2889 = vsel %vm598, %v2850, 0
        %v2892 = vsel %vm598, %v2859, 0
        %v2895 = vsel %vm598, %v2860, 0
        %v2898 = vsel %vm598, %v2861, 0
        %v2901 = vsel %vm598, %v2862, 0
        %v2904 = vsel %vm598, %v2863, 0
        %v2907 = vsel %vm598, %v2864, 0
        %v2910 = vsel %vm598, %v2865, 0
        %v2913 = vsel %vm598, %v2866, 0
        %2915 = vmatprep.subr.bf16.mxu0 0
        %2916 = vmatpush1.bf16.msra.mxu0 %v2833
        %2917 = vmatprep.subr.bf16.mxu0 0
        %2918 = vmatpush1.bf16.msra.mxu0 %v2834
        %2919 = vmatprep.subr.bf16.mxu0 0
        %2920 = vmatpush1.bf16.msra.mxu0 0
        %2921 = vmatprep.subr.bf16.mxu0 0
        %2922 = vmatpush1.bf16.msra.mxu0 0
        %2923 = vmatprep.subr.bf16.mxu0 0
        %2924 = vmatpush1.bf16.msra.mxu0 0
        %2925 = vmatprep.subr.bf16.mxu0 0
        %2926 = vmatpush1.bf16.msra.mxu0 0
        %2927 = vmatprep.subr.bf16.mxu0 0
        %2928 = vmatpush1.bf16.msra.mxu0 0
        %2929 = vmatprep.subr.bf16.mxu0 0
        %2930 = vmatpush1.bf16.msra.mxu0 0
        %2931 = vmatprep.subr.bf16.mxu0 0
        %2932 = vmatpush1.bf16.msra.mxu0 0
        %2933 = vmatprep.subr.bf16.mxu0 0
        %2934 = vmatpush1.bf16.msra.mxu0 0
        %2935 = vmatprep.subr.bf16.mxu0 0
        %2936 = vmatpush1.bf16.msra.mxu0 0
        %2937 = vmatprep.subr.bf16.mxu0 0
        %2938 = vmatpush1.bf16.msra.mxu0 0
        %2939 = vmatprep.subr.bf16.mxu0 0
        %2940 = vmatpush1.bf16.msra.mxu0 0
        %2941 = vmatprep.subr.bf16.mxu0 0
        %2942 = vmatpush1.bf16.msra.mxu0 0
        %2943 = vmatprep.subr.bf16.mxu0 0
        %2944 = vmatpush1.bf16.msra.mxu0 0
        %2945 = vmatprep.subr.bf16.mxu0 0
        %2946 = vmatpush1.bf16.msra.mxu0 0
        %2947 = vmatprep.mubr.bf16.mxu0 0
        %2948 = vmatmul.mubr.bf16.gmra.mrb[0].mxu0 %v2868
        %v2949 = vpop.f32.mrb[0].mxu0
        %v2950 = vadd.f32 0.0, %v2949
        %v2951 = vpop.f32.mrb[0].mxu0
        %v2952 = vpop.f32.mrb[0].mxu0
        %v2953 = vadd.f32 0.0, %v2952
        %v2954 = vpop.f32.mrb[0].mxu0
        %2955 = vmatprep.mubr.bf16.mxu0 0
        %2956 = vmatmul.mubr.bf16.gmra.mrb[0].mxu0 %v2871
        %v2957 = vpop.f32.mrb[0].mxu0
        %v2958 = vadd.f32 0.0, %v2957
        %v2959 = vpop.f32.mrb[0].mxu0
        %v2960 = vpop.f32.mrb[0].mxu0
        %v2961 = vadd.f32 0.0, %v2960
        %v2962 = vpop.f32.mrb[0].mxu0
        %2963 = vmatprep.mubr.bf16.mxu0 0
        %2964 = vmatmul.mubr.bf16.gmra.mrb[0].mxu0 %v2874
        %v2965 = vpop.f32.mrb[0].mxu0
        %v2966 = vadd.f32 0.0, %v2965
        %v2967 = vpop.f32.mrb[0].mxu0
        %v2968 = vpop.f32.mrb[0].mxu0
        %v2969 = vadd.f32 0.0, %v2968
        %v2970 = vpop.f32.mrb[0].mxu0
        %2971 = vmatprep.mubr.bf16.mxu0 0
        %2972 = vmatmul.mubr.bf16.gmra.mrb[0].mxu0 %v2877
        %v2973 = vpop.f32.mrb[0].mxu0
        %v2974 = vadd.f32 0.0, %v2973
        %v2975 = vpop.f32.mrb[0].mxu0
        %v2976 = vpop.f32.mrb[0].mxu0
        %v2977 = vadd.f32 0.0, %v2976
        %v2978 = vpop.f32.mrb[0].mxu0
        %2979 = vmatprep.mubr.bf16.mxu0 0
        %2980 = vmatmul.mubr.bf16.gmra.mrb[0].mxu0 %v2880
        %v2981 = vpop.f32.mrb[0].mxu0
        %v2982 = vadd.f32 0.0, %v2981
        %v2983 = vpop.f32.mrb[0].mxu0
        %v2984 = vpop.f32.mrb[0].mxu0
        %v2985 = vadd.f32 0.0, %v2984
        %v2986 = vpop.f32.mrb[0].mxu0
        %2987 = vmatprep.mubr.bf16.mxu0 0
        %2988 = vmatmul.mubr.bf16.gmra.mrb[0].mxu0 %v2883
        %v2989 = vpop.f32.mrb[0].mxu0
        %v2990 = vadd.f32 0.0, %v2989
        %v2991 = vpop.f32.mrb[0].mxu0
        %v2992 = vpop.f32.mrb[0].mxu0
        %v2993 = vadd.f32 0.0, %v2992
        %v2994 = vpop.f32.mrb[0].mxu0
        %2995 = vmatprep.mubr.bf16.mxu0 0
        %2996 = vmatmul.mubr.bf16.gmra.mrb[0].mxu0 %v2886
        %v2997 = vpop.f32.mrb[0].mxu0
        %v2998 = vadd.f32 0.0, %v2997
        %v2999 = vpop.f32.mrb[0].mxu0
        %v3000 = vpop.f32.mrb[0].mxu0
        %v3001 = vadd.f32 0.0, %v3000
        %v3002 = vpop.f32.mrb[0].mxu0
        %3003 = vmatprep.mubr.bf16.mxu0 0
        %3004 = vmatmul.mubr.bf16.gmra.mrb[0].mxu0 %v2889
        %v3005 = vpop.f32.mrb[0].mxu0
        %v3006 = vadd.f32 0.0, %v3005
        %v3007 = vpop.f32.mrb[0].mxu0
        %v3008 = vpop.f32.mrb[0].mxu0
        %v3009 = vadd.f32 0.0, %v3008
        %v3010 = vpop.f32.mrb[0].mxu0
        %3011 = vmatprep.mubr.bf16.mxu0 0
        %3012 = vmatmul.mubr.bf16.gmra.mrb[0].mxu0 %v2892
        %v3013 = vpop.f32.mrb[0].mxu0
        %v3014 = vadd.f32 0.0, %v3013
        %v3015 = vpop.f32.mrb[0].mxu0
        %v3016 = vpop.f32.mrb[0].mxu0
        %v3017 = vadd.f32 0.0, %v3016
        %v3018 = vpop.f32.mrb[0].mxu0
        %3019 = vmatprep.mubr.bf16.mxu0 0
        %3020 = vmatmul.mubr.bf16.gmra.mrb[0].mxu0 %v2895
        %v3021 = vpop.f32.mrb[0].mxu0
        %v3022 = vadd.f32 0.0, %v3021
        %v3023 = vpop.f32.mrb[0].mxu0
        %v3024 = vpop.f32.mrb[0].mxu0
        %v3025 = vadd.f32 0.0, %v3024
        %v3026 = vpop.f32.mrb[0].mxu0
        %3027 = vmatprep.mubr.bf16.mxu0 0
        %3028 = vmatmul.mubr.bf16.gmra.mrb[0].mxu0 %v2898
        %v3029 = vpop.f32.mrb[0].mxu0
        %v3030 = vadd.f32 0.0, %v3029
        %v3031 = vpop.f32.mrb[0].mxu0
        %v3032 = vpop.f32.mrb[0].mxu0
        %v3033 = vadd.f32 0.0, %v3032
        %v3034 = vpop.f32.mrb[0].mxu0
        %3035 = vmatprep.mubr.bf16.mxu0 0
        %3036 = vmatmul.mubr.bf16.gmra.mrb[0].mxu0 %v2901
        %v3037 = vpop.f32.mrb[0].mxu0
        %v3038 = vadd.f32 0.0, %v3037
        %v3039 = vpop.f32.mrb[0].mxu0
        %v3040 = vpop.f32.mrb[0].mxu0
        %v3041 = vadd.f32 0.0, %v3040
        %v3042 = vpop.f32.mrb[0].mxu0
        %3043 = vmatprep.mubr.bf16.mxu0 0
        %3044 = vmatmul.mubr.bf16.gmra.mrb[0].mxu0 %v2904
        %v3045 = vpop.f32.mrb[0].mxu0
        %v3046 = vadd.f32 0.0, %v3045
        %v3047 = vpop.f32.mrb[0].mxu0
        %v3048 = vpop.f32.mrb[0].mxu0
        %v3049 = vadd.f32 0.0, %v3048
        %v3050 = vpop.f32.mrb[0].mxu0
        %3051 = vmatprep.mubr.bf16.mxu0 0
        %3052 = vmatmul.mubr.bf16.gmra.mrb[0].mxu0 %v2907
        %v3053 = vpop.f32.mrb[0].mxu0
        %v3054 = vadd.f32 0.0, %v3053
        %v3055 = vpop.f32.mrb[0].mxu0
        %v3056 = vpop.f32.mrb[0].mxu0
        %v3057 = vadd.f32 0.0, %v3056
        %v3058 = vpop.f32.mrb[0].mxu0
        %3059 = vmatprep.mubr.bf16.mxu0 0
        %3060 = vmatmul.mubr.bf16.gmra.mrb[0].mxu0 %v2910
        %v3061 = vpop.f32.mrb[0].mxu0
        %v3062 = vadd.f32 0.0, %v3061
        %v3063 = vpop.f32.mrb[0].mxu0
        %v3064 = vpop.f32.mrb[0].mxu0
        %v3065 = vadd.f32 0.0, %v3064
        %v3066 = vpop.f32.mrb[0].mxu0
        %3067 = vmatprep.mubr.bf16.mxu0 0
        %3068 = vmatmul.mubr.bf16.gmra.mrb[0].mxu0 %v2913
        %v3069 = vpop.f32.mrb[0].mxu0
        %v3070 = vadd.f32 0.0, %v3069
        %v3071 = vpop.f32.mrb[0].mxu0
        %v3072 = vpop.f32.mrb[0].mxu0
        %v3073 = vadd.f32 0.0, %v3072
        %v3074 = vpop.f32.mrb[0].mxu0
        %3075 = vdwg.mxu0
        %v3076 = vmax.f32 %v2950, %v2966
        %v3077 = vmax.f32 %v2953, %v2969
        %v3078 = vmax.f32 %v2958, %v2974
        %v3079 = vmax.f32 %v2961, %v2977
        %v3080 = vmax.f32 %v3076, %v2982
        %v3081 = vmax.f32 %v3077, %v2985
        %v3082 = vmax.f32 %v3078, %v2990
        %v3083 = vmax.f32 %v3079, %v2993
        %v3084 = vmax.f32 %v3080, %v2998
        %v3085 = vmax.f32 %v3081, %v3001
        %v3086 = vmax.f32 %v3082, %v3006
        %v3087 = vmax.f32 %v3083, %v3009
        %v3088 = vmax.f32 %v3084, %v3014
        %v3089 = vmax.f32 %v3085, %v3017
        %v3090 = vmax.f32 %v3086, %v3022
        %v3091 = vmax.f32 %v3087, %v3025
        %v3092 = vmax.f32 %v3088, %v3030
        %v3093 = vmax.f32 %v3089, %v3033
        %v3094 = vmax.f32 %v3090, %v3038
        %v3095 = vmax.f32 %v3091, %v3041
        %v3096 = vmax.f32 %v3092, %v3046
        %v3097 = vmax.f32 %v3093, %v3049
        %v3098 = vmax.f32 %v3094, %v3054
        %v3099 = vmax.f32 %v3095, %v3057
        %v3100 = vmax.f32 %v3096, %v3062
        %v3101 = vmax.f32 %v3097, %v3065
        %v3102 = vmax.f32 %v3098, %v3070
        %v3103 = vmax.f32 %v3099, %v3073
        %v3104 = vmax.f32 %v3100, %v3101
        %v3105 = vmax.f32 %v3102, %v3103
        %v3106 = vmax.f32 %v3104, %v3105
        %v3107 = vrot.slane %v3106, 4
        %v3108 = vmax.f32 %v3106, %v3107
        %v3109 = vrot.slane %v3108, 2
        %v3110 = vmax.f32 %v3108, %v3109
        %v3111 = vrot.slane %v3110, 1
        %v3112 = vmax.f32 %v3110, %v3111
        %v3113 = vsub.f32 %v2950, %v3112
        %v3114 = vsub.f32 %v2953, %v3112
        %v3115 = vsub.f32 %v2958, %v3112
        %v3116 = vsub.f32 %v2961, %v3112
        %v3117 = vsub.f32 %v2966, %v3112
        %v3118 = vsub.f32 %v2969, %v3112
        %v3119 = vsub.f32 %v2974, %v3112
        %v3120 = vsub.f32 %v2977, %v3112
        %v3121 = vsub.f32 %v2982, %v3112
        %v3122 = vsub.f32 %v2985, %v3112
        %v3123 = vsub.f32 %v2990, %v3112
        %v3124 = vsub.f32 %v2993, %v3112
        %v3125 = vsub.f32 %v2998, %v3112
        %v3126 = vsub.f32 %v3001, %v3112
        %v3127 = vsub.f32 %v3006, %v3112
        %v3128 = vsub.f32 %v3009, %v3112
        %v3129 = vsub.f32 %v3014, %v3112
        %v3130 = vsub.f32 %v3017, %v3112
        %v3131 = vsub.f32 %v3022, %v3112
        %v3132 = vsub.f32 %v3025, %v3112
        %v3133 = vsub.f32 %v3030, %v3112
        %v3134 = vsub.f32 %v3033, %v3112
        %v3135 = vsub.f32 %v3038, %v3112
        %v3136 = vsub.f32 %v3041, %v3112
        %v3137 = vsub.f32 %v3046, %v3112
        %v3138 = vsub.f32 %v3049, %v3112
        %v3139 = vsub.f32 %v3054, %v3112
        %v3140 = vsub.f32 %v3057, %v3112
        %v3141 = vsub.f32 %v3062, %v3112
        %v3142 = vsub.f32 %v3065, %v3112
        %v3143 = vsub.f32 %v3070, %v3112
        %v3144 = vsub.f32 %v3073, %v3112
        %v3145 = vmul.f32 %v3113, 1.442695
        %v3146 = vpow.pop %v3145
        %v3147 = vmul.f32 %v3114, 1.442695
        %v3148 = vpow.pop %v3147
        %v3149 = vmul.f32 %v3115, 1.442695
        %v3150 = vpow.pop %v3149
        %v3151 = vmul.f32 %v3116, 1.442695
        %v3152 = vpow.pop %v3151
        %v3153 = vmul.f32 %v3117, 1.442695
        %v3154 = vpow.pop %v3153
        %v3155 = vmul.f32 %v3118, 1.442695
        %v3156 = vpow.pop %v3155
        %v3157 = vmul.f32 %v3119, 1.442695
        %v3158 = vpow.pop %v3157
        %v3159 = vmul.f32 %v3120, 1.442695
        %v3160 = vpow.pop %v3159
        %v3161 = vmul.f32 %v3121, 1.442695
        %v3162 = vpow.pop %v3161
        %v3163 = vmul.f32 %v3122, 1.442695
        %v3164 = vpow.pop %v3163
        %v3165 = vmul.f32 %v3123, 1.442695
        %v3166 = vpow.pop %v3165
        %v3167 = vmul.f32 %v3124, 1.442695
        %v3168 = vpow.pop %v3167
        %v3169 = vmul.f32 %v3125, 1.442695
        %v3170 = vpow.pop %v3169
        %v3171 = vmul.f32 %v3126, 1.442695
        %v3172 = vpow.pop %v3171
        %v3173 = vmul.f32 %v3127, 1.442695
        %v3174 = vpow.pop %v3173
        %v3175 = vmul.f32 %v3128, 1.442695
        %v3176 = vpow.pop %v3175
        %v3177 = vmul.f32 %v3129, 1.442695
        %v3178 = vpow.pop %v3177
        %v3179 = vmul.f32 %v3130, 1.442695
        %v3180 = vpow.pop %v3179
        %v3181 = vmul.f32 %v3131, 1.442695
        %v3182 = vpow.pop %v3181
        %v3183 = vmul.f32 %v3132, 1.442695
        %v3184 = vpow.pop %v3183
        %v3185 = vmul.f32 %v3133, 1.442695
        %v3186 = vpow.pop %v3185
        %v3187 = vmul.f32 %v3134, 1.442695
        %v3188 = vpow.pop %v3187
        %v3189 = vmul.f32 %v3135, 1.442695
        %v3190 = vpow.pop %v3189
        %v3191 = vmul.f32 %v3136, 1.442695
        %v3192 = vpow.pop %v3191
        %v3193 = vmul.f32 %v3137, 1.442695
        %v3194 = vpow.pop %v3193
        %v3195 = vmul.f32 %v3138, 1.442695
        %v3196 = vpow.pop %v3195
        %v3197 = vmul.f32 %v3139, 1.442695
        %v3198 = vpow.pop %v3197
        %v3199 = vmul.f32 %v3140, 1.442695
        %v3200 = vpow.pop %v3199
        %v3201 = vmul.f32 %v3141, 1.442695
        %v3202 = vpow.pop %v3201
        %v3203 = vmul.f32 %v3142, 1.442695
        %v3204 = vpow.pop %v3203
        %v3205 = vmul.f32 %v3143, 1.442695
        %v3206 = vpow.pop %v3205
        %v3207 = vmul.f32 %v3144, 1.442695
        %v3208 = vpow.pop %v3207
        %v3209 = vadd.f32 %v3146, %v3148
        %v3210 = vadd.f32 %v3209, %v3150
        %v3211 = vadd.f32 %v3210, %v3152
        %v3212 = vadd.f32 %v3211, %v3154
        %v3213 = vadd.f32 %v3212, %v3156
        %v3214 = vadd.f32 %v3213, %v3158
        %v3215 = vadd.f32 %v3214, %v3160
        %v3216 = vadd.f32 %v3215, %v3162
        %v3217 = vadd.f32 %v3216, %v3164
        %v3218 = vadd.f32 %v3217, %v3166
        %v3219 = vadd.f32 %v3218, %v3168
        %v3220 = vadd.f32 %v3219, %v3170
        %v3221 = vadd.f32 %v3220, %v3172
        %v3222 = vadd.f32 %v3221, %v3174
        %v3223 = vadd.f32 %v3222, %v3176
        %v3224 = vadd.f32 %v3223, %v3178
        %v3225 = vadd.f32 %v3224, %v3180
        %v3226 = vadd.f32 %v3225, %v3182
        %v3227 = vadd.f32 %v3226, %v3184
        %v3228 = vadd.f32 %v3227, %v3186
        %v3229 = vadd.f32 %v3228, %v3188
        %v3230 = vadd.f32 %v3229, %v3190
        %v3231 = vadd.f32 %v3230, %v3192
        %v3232 = vadd.f32 %v3231, %v3194
        %v3233 = vadd.f32 %v3232, %v3196
        %v3234 = vadd.f32 %v3233, %v3198
        %v3235 = vadd.f32 %v3234, %v3200
        %v3236 = vadd.f32 %v3235, %v3202
        %v3237 = vadd.f32 %v3236, %v3204
        %v3238 = vadd.f32 %v3237, %v3206
        %v3239 = vadd.f32 %v3238, %v3208
        %v3240 = vrot.slane %v3239, 4
        %v3241 = vadd.f32 %v3239, %v3240
        %v3242 = vrot.slane %v3241, 2
        %v3243 = vadd.f32 %v3241, %v3242
        %v3244 = vrot.slane %v3243, 1
        %v3245 = vadd.f32 %v3243, %v3244
        %v3246 = vrcp.pop %v3245
        %v3247 = vpack.c.bf16 %v2815, %v2811
        %v3248 = vpack.c.bf16 %v2817, %v2813
        %v3249 = vpack.c.bf16 %v2825, %v2821
        %v3250 = vpack.c.bf16 %v2827, %v2823
        %v3251 = vpack.c.bf16 %v3148, %v3146
        %v3252 = vpack.c.bf16 %v3152, %v3150
        %v3253 = vpack.c.bf16 %v3156, %v3154
        %v3254 = vpack.c.bf16 %v3160, %v3158
        %v3255 = vpack.c.bf16 %v3164, %v3162
        %v3256 = vpack.c.bf16 %v3168, %v3166
        %v3257 = vpack.c.bf16 %v3172, %v3170
        %v3258 = vpack.c.bf16 %v3176, %v3174
        %v3259 = vpack.c.bf16 %v3180, %v3178
        %v3260 = vpack.c.bf16 %v3184, %v3182
        %v3261 = vpack.c.bf16 %v3188, %v3186
        %v3262 = vpack.c.bf16 %v3192, %v3190
        %v3263 = vpack.c.bf16 %v3196, %v3194
        %v3264 = vpack.c.bf16 %v3200, %v3198
        %v3265 = vpack.c.bf16 %v3204, %v3202
        %v3266 = vpack.c.bf16 %v3208, %v3206
        %3267 = vmatprep.subr.bf16.mxu0 0
        %3268 = vmatpush1.bf16.msra.mxu0 %v3251
        %3269 = vmatprep.subr.bf16.mxu0 0
        %3270 = vmatpush1.bf16.msra.mxu0 %v3252
        %3271 = vmatprep.subr.bf16.mxu0 0
        %3272 = vmatpush1.bf16.msra.mxu0 %v3253
        %3273 = vmatprep.subr.bf16.mxu0 0
        %3274 = vmatpush1.bf16.msra.mxu0 %v3254
        %3275 = vmatprep.subr.bf16.mxu0 0
        %3276 = vmatpush1.bf16.msra.mxu0 %v3255
        %3277 = vmatprep.subr.bf16.mxu0 0
        %3278 = vmatpush1.bf16.msra.mxu0 %v3256
        %3279 = vmatprep.subr.bf16.mxu0 0
        %3280 = vmatpush1.bf16.msra.mxu0 %v3257
        %3281 = vmatprep.subr.bf16.mxu0 0
        %3282 = vmatpush1.bf16.msra.mxu0 %v3258
        %3283 = vmatprep.subr.bf16.mxu0 0
        %3284 = vmatpush1.bf16.msra.mxu0 %v3259
        %3285 = vmatprep.subr.bf16.mxu0 0
        %3286 = vmatpush1.bf16.msra.mxu0 %v3260
        %3287 = vmatprep.subr.bf16.mxu0 0
        %3288 = vmatpush1.bf16.msra.mxu0 %v3261
        %3289 = vmatprep.subr.bf16.mxu0 0
        %3290 = vmatpush1.bf16.msra.mxu0 %v3262
        %3291 = vmatprep.subr.bf16.mxu0 0
        %3292 = vmatpush1.bf16.msra.mxu0 %v3263
        %3293 = vmatprep.subr.bf16.mxu0 0
        %3294 = vmatpush1.bf16.msra.mxu0 %v3264
        %3295 = vmatprep.subr.bf16.mxu0 0
        %3296 = vmatpush1.bf16.msra.mxu0 %v3265
        %3297 = vmatprep.subr.bf16.mxu0 0
        %3298 = vmatpush1.bf16.msra.mxu0 %v3266
        %3299 = vmatprep.mubr.bf16.mxu0 %v3248
        %3300 = vmatmul.mubr.bf16.gmra.mrb[0].mxu0 %v3247
        %v3301 = vpop.f32.mrb[0].mxu0
        %v3302 = vadd.f32 0.0, %v3301
        %v3303 = vpop.f32.mrb[0].mxu0
        %v3304 = vpop.f32.mrb[0].mxu0
        %v3305 = vadd.f32 0.0, %v3304
        %v3306 = vpop.f32.mrb[0].mxu0
        %3307 = vmatprep.mubr.bf16.mxu0 %v3250
        %3308 = vmatmul.mubr.bf16.gmra.mrb[0].mxu0 %v3249
        %v3309 = vpop.f32.mrb[0].mxu0
        %v3310 = vadd.f32 0.0, %v3309
        %v3311 = vpop.f32.mrb[0].mxu0
        %v3312 = vpop.f32.mrb[0].mxu0
        %v3313 = vadd.f32 0.0, %v3312
        %v3314 = vpop.f32.mrb[0].mxu0
        %3315 = vdwg.mxu0
        %v3316 = vmul.f32 %v3302, %v3246
        %v3317 = vmul.f32 %v3305, %v3246
        %v3318 = vmul.f32 %v3310, %v3246
        %v3319 = vmul.f32 %v3313, %v3246
        %s3320 = scalar_lea.vmem %s5, 6
        %v3321 = vld [vmem:[%s3320] sm:$0x3]
        %v3322 = vpack.c.bf16 %v3317, %v3316
        %v3323 = vpack.c.bf16 %v3319, %v3318
        %v3325 = vsel %vm598, %v3321, 0
        %3327 = vmatprep.subr.bf16.mxu0 0
        %3328 = vmatpush1.bf16.msra.mxu0 %v3322
        %3329 = vmatprep.subr.bf16.mxu0 0
        %3330 = vmatpush1.bf16.msra.mxu0 %v3323
        %3331 = vmatprep.subr.bf16.mxu0 0
        %3332 = vmatpush1.bf16.msra.mxu0 0
        %3333 = vmatprep.subr.bf16.mxu0 0
        %3334 = vmatpush1.bf16.msra.mxu0 0
        %3335 = vmatprep.subr.bf16.mxu0 0
        %3336 = vmatpush1.bf16.msra.mxu0 0
        %3337 = vmatprep.subr.bf16.mxu0 0
        %3338 = vmatpush1.bf16.msra.mxu0 0
        %3339 = vmatprep.subr.bf16.mxu0 0
        %3340 = vmatpush1.bf16.msra.mxu0 0
        %3341 = vmatprep.subr.bf16.mxu0 0
        %3342 = vmatpush1.bf16.msra.mxu0 0
        %3343 = vmatprep.subr.bf16.mxu0 0
        %3344 = vmatpush1.bf16.msra.mxu0 0
        %3345 = vmatprep.subr.bf16.mxu0 0
        %3346 = vmatpush1.bf16.msra.mxu0 0
        %3347 = vmatprep.subr.bf16.mxu0 0
        %3348 = vmatpush1.bf16.msra.mxu0 0
        %3349 = vmatprep.subr.bf16.mxu0 0
        %3350 = vmatpush1.bf16.msra.mxu0 0
        %3351 = vmatprep.subr.bf16.mxu0 0
        %3352 = vmatpush1.bf16.msra.mxu0 0
        %3353 = vmatprep.subr.bf16.mxu0 0
        %3354 = vmatpush1.bf16.msra.mxu0 0
        %3355 = vmatprep.subr.bf16.mxu0 0
        %3356 = vmatpush1.bf16.msra.mxu0 0
        %3357 = vmatprep.subr.bf16.mxu0 0
        %3358 = vmatpush1.bf16.msra.mxu0 0
        %3359 = vmatprep.mubr.bf16.mxu0 0
        %3360 = vmatmul.mubr.bf16.gmra.mrb[0].mxu0 %v3325
        %v3361 = vpop.f32.mrb[0].mxu0
        %v3362 = vadd.f32 0.0, %v3361
        %v3363 = vpop.f32.mrb[0].mxu0
        %v3364 = vpop.f32.mrb[0].mxu0
        %v3365 = vpop.f32.mrb[0].mxu0
        %3366 = vdwg.mxu0
        %v3367 = vadd.f32 %v2610, %v3362
        %v3368 = vld [vmem:[%s6] sm:$0xf]
        %3370 = vset.pattern.permute.xlu0 0
        %3371 = vperm.xlu0 %3370, %v3368
        %v3372 = vpop.permute.xlu0 %3371
        %v3374 = vadd.f32 %v3367, %v3372
        %3375 = vst [vmem:[%s308] sm:$0xf] %v3374
        %s3376 = sand.u32 %s202, 1
        %s3377 = scalar_lea.sflag [#allocation3], %s3376
        %s3378 = sand.u32 %s202, 1
        %s3379 = smul.addr %s3378, 4
        %s3380 = scalar_lea.vmem [#allocation2], %s3379
        // Predicated region
        $region49: #{tpu_custom_call.1} parent=47 // pred_check
          %p3381 = pneg %p212
        $region50: #{tpu_custom_call.1} parent=47 // pred_check_branch
          %3383 = sbr.rel (%p3381) target = $region52
        $region51: #{tpu_custom_call.1} parent=47 // pred_region
          %s3385 = ssub.s32 64, 64
          %3386 = vsyncadd %s3377, %s3385
          %s3387 = smul.addr %s25, 2
          %s3388 = sadd.s32 %s26, %s3387
          %s3389 = smul.addr %s3388, 64
          %s3390 = scalar_lea.hbm %s7, %s3389
          %s3392 = sshll.u32 %s3380, 4
          %s3393 = int_to_ptr.vmem [resolvable:$true] %s3392
          %3395 = dma.vmem_to_hbm [thread:$0]  %s3393, 64, %s3390, %s3377
        $region52: #{tpu_custom_call.1} parent=47 // pred_fallthru
          _
      $region48: #{tpu_custom_call.1} parent=5 // pred_fallthru
        _
      %p3396 = scmp.le.s32.totalorder 2, %s16
      // Predicated region
      $region53: #{tpu_custom_call.1} parent=5 // pred_check
        %p3397 = pneg %p3396
      $region54: #{tpu_custom_call.1} parent=5 // pred_check_branch
        %3399 = sbr.rel (%p3397) target = $region56
      $region55: #{tpu_custom_call.1} parent=5 // pred_region
        %s3400 = ssub.s32 %s16, 2
        // Predicated region
        $region57: #{tpu_custom_call.1} parent=55 // pred_check
          %p3401 = pneg %p218
        $region58: #{tpu_custom_call.1} parent=55 // pred_check_branch
          %3403 = sbr.rel (%p3401) target = $region60
        $region59: #{tpu_custom_call.1} parent=55 // pred_region
          %s3404 = sand.u32 %s203, 1
          %s3405 = scalar_lea.sflag [#allocation3], %s3404
          %s3406 = sand.u32 %s203, 1
          %s3407 = smul.addr %s3406, 4
          %s3408 = scalar_lea.vmem [#allocation2], %s3407
          %3409 = dma.done %s3405, 64
        $region60: #{tpu_custom_call.1} parent=55 // pred_fallthru
          _
      $region56: #{tpu_custom_call.1} parent=5 // pred_fallthru
        _
    $region6: #{tpu_custom_call.1} parent=1 // loop_footer
      %s20 = sadd.s32 1, %s16
    $region7: #{tpu_custom_call.1} parent=1 // loop_footer_branch
      %15 = sbr.rel target = $region3
    $region8: #{tpu_custom_call.1} parent=1 // loop_exit
      _
    %3410 = vsyncpa [#allocation3], 1
    %s3411 = scalar_lea.sflag [#allocation3], 1
    %3412 = vsyncpa %s3411, 1

</llo_original>
